<compile_context>
chip_gen: v7x
topology: tpu7x:2x2x1
jax: 0.10.0
libtpu: 0.0.40
codegen_flags: <defaults>
</compile_context>

<pallas_src>
import functools

import jax
import jax.numpy as jnp
from jax.experimental import pallas as pl
from jax.experimental.pallas import tpu as pltpu

_BN_EPS = 1e-5
_LANE = 128
_TB_MAX = 256                         # max batch-tile rows (fills 256-wide MXU on v6e/v7x)
_VMEM_X_BUDGET = 16 * 1024 * 1024     # budget for the double-buffered x block (v7x-safe)
_VMEM_LIMIT_CAP = 56 << 20            # v7x has 64 MiB VMEM per TensorCore


def _round_up(x, m):
    return ((x + m - 1) // m) * m


# --------------------------------------------------------------------------------------
# Kernel
# --------------------------------------------------------------------------------------
def _densevm_kernel(
    bn1_s_ref,   # (C,)   f32 SMEM   folded BN1 scale  g/sqrt(v+eps)
    bn1_t_ref,   # (C,)   f32 SMEM   folded BN1 shift  b - m*scale
    x_ref,       # (C, TB, S_in_p)   f32   channel-major input block
    vm_ws_ref,   # (S_in_p, H_a_p)   bf16  W^T  (zero-padded)
    vm_wc_ref,   # (S_in_p, H_a_p)   bf16  Z^T  (zero-padded)
    fc1_w_ref,   # (C, H_a_p, H_b_p) bf16  fc1 weight per channel, BN2 folded in
    fc1_b_ref,   # (1, H_b_p)        f32   fc1 bias, BN2 folded in
    fc2_w_ref,   # (H_b_p, S_out_p)  bf16
    fc2_b_ref,   # (1, S_out_p)      f32
    out_ref,     # (TB, S_out_p)     f32
):
    C, TB, S_in_p = x_ref.shape
    H_a_p = vm_ws_ref.shape[1]
    H_b_p = fc1_b_ref.shape[1]

    # Free leading-dim merge (TB is a multiple of 8, so no relayout): one big M = C*TB
    # VonMises matmul instead of 8 small ones. No f32 concat is materialized; sin/cos
    # results are cast to bf16 and fed to two accumulating MXU dots (same total K work).
    # Transcendentals stay f32 (accuracy budget + v5e has no bf16 EUP).
    xf = x_ref[...].reshape(C * TB, S_in_p)
    sin_b = jnp.sin(xf).astype(jnp.bfloat16)
    cos_b = jnp.cos(xf).astype(jnp.bfloat16)
    h = (jnp.dot(sin_b, vm_ws_ref[...], preferred_element_type=jnp.float32)
         + jnp.dot(cos_b, vm_wc_ref[...], preferred_element_type=jnp.float32))
    h3 = h.reshape(C, TB, H_a_p)                          # free leading-dim split

    acc = jnp.zeros((TB, H_b_p), jnp.float32)
    for c in range(C):                                    # C == 8, fully unrolled
        # BatchNorm2d(8) (eval, folded scale/shift) + sigmoid (single EUP tanh).
        # Dropout(p=0.5) is identity in eval mode.
        g = h3[c] * bn1_s_ref[c] + bn1_t_ref[c]
        g = 0.5 * jnp.tanh(0.5 * g) + 0.5
        # fc1 (with BN2 pre-folded) as a per-channel partial matmul: realizes the
        # Flatten() contraction without a (TB, C, Ha) -> (TB, C*Ha) lane relayout.
        acc = acc + jnp.dot(g.astype(jnp.bfloat16), fc1_w_ref[c],
                            preferred_element_type=jnp.float32)

    g2 = jnp.maximum(acc + fc1_b_ref[...], 0.0)           # bias + ReLU
    out_ref[...] = (jnp.dot(g2.astype(jnp.bfloat16), fc2_w_ref[...],
                            preferred_element_type=jnp.float32)
                    + fc2_b_ref[...])


# --------------------------------------------------------------------------------------
# Parameter packing (one-time constant folding: fold BN / pad to 128 / bf16)
# --------------------------------------------------------------------------------------
def pack_params(raw, channels=8):
    C = channels
    Wt = raw["vm_W"].T                               # (S_in, H_a)
    Zt = raw["vm_Z"].T
    S_in, H_a = Wt.shape
    H_b = raw["fc1_w"].shape[0]
    S_out = raw["fc2_w"].shape[0]

    S_in_p = _round_up(S_in, _LANE)
    H_a_p = _round_up(H_a, _LANE)
    H_b_p = _round_up(H_b, _LANE)
    S_out_p = _round_up(S_out, _LANE)

    # VonMises weights, zero rows/cols in padded regions (padded x lanes contribute 0).
    vm_ws = jnp.zeros((S_in_p, H_a_p), jnp.float32).at[:S_in, :H_a].set(Wt)
    vm_wc = jnp.zeros((S_in_p, H_a_p), jnp.float32).at[:S_in, :H_a].set(Zt)

    # BN1 folded to per-channel scale/shift.
    s1 = raw["bn1_g"] * jax.lax.rsqrt(raw["bn1_v"] + _BN_EPS)
    t1 = raw["bn1_b"] - raw["bn1_m"] * s1

    # fc1 with BN2 folded in, reshaped per channel (torch Flatten order: c*H_a + a),
    # zero-padded so padded activation columns contribute exactly zero.
    s2 = raw["bn2_g"] * jax.lax.rsqrt(raw["bn2_v"] + _BN_EPS)
    fc1_wT = raw["fc1_w"].T * s2[None, :]            # (C*H_a, H_b)
    fc1_b = (raw["fc1_b"] - raw["bn2_m"]) * s2 + raw["bn2_b"]
    w3 = fc1_wT.reshape(C, H_a, H_b)
    fc1 = jnp.zeros((C, H_a_p, H_b_p), jnp.float32).at[:, :H_a, :H_b].set(w3)
    fc1_b_p = jnp.zeros((1, H_b_p), jnp.float32).at[0, :H_b].set(fc1_b)

    fc2 = jnp.zeros((H_b_p, S_out_p), jnp.float32).at[:H_b, :S_out].set(raw["fc2_w"].T)
    fc2_b_p = jnp.zeros((1, S_out_p), jnp.float32).at[0, :S_out].set(raw["fc2_b"])

    return {
        "vm_ws": vm_ws.astype(jnp.bfloat16),
        "vm_wc": vm_wc.astype(jnp.bfloat16),
        "fc1_w": fc1.astype(jnp.bfloat16),
        "fc1_b": fc1_b_p,
        "fc2_w": fc2.astype(jnp.bfloat16),
        "fc2_b": fc2_b_p,
        "bn1_s": s1.astype(jnp.float32),
        "bn1_t": t1.astype(jnp.float32),
    }


# --------------------------------------------------------------------------------------
# Wrapper
# --------------------------------------------------------------------------------------
def _pick_batch_tile(B, C, S_in_p):
    per_row = C * S_in_p * 4                         # f32 bytes of one batch row
    cap = max(8, min(_TB_MAX, ((_VMEM_X_BUDGET // (2 * per_row)) // 8) * 8))
    B8 = _round_up(B, 8)
    if B8 <= 8:
        return 8
    # Aim for >= 2 grid steps so both v7x TensorCores get work under "parallel";
    # extra step overhead (~0.35 us) is negligible on 1-TC chips.
    half = _round_up((B8 + 1) // 2, 8)
    return min(cap, half)


@functools.partial(jax.jit, static_argnames=("size_out",))
def densevm_forward(x_nchw, packed, *, size_out):
    """x_nchw: (B, 8, H, W) float32.  Returns (B, size_out) float32."""
    B, C, H, W = x_nchw.shape
    S_in = H * W
    S_in_p, H_a_p = packed["vm_ws"].shape
    H_b_p = packed["fc1_w"].shape[2]
    S_out_p = packed["fc2_w"].shape[1]

    # Layout plumbing in the wrapper (one XLA transpose): channel-major (C, B, S_in_p)
    # so the kernel slices channels on the leading axis with no in-kernel relayout.
    # (If input bandwidth ever matters at large B, produce x in this layout upstream.)
    x = x_nchw.reshape(B, C, S_in)                   # torch.flatten(start_dim=2)
    if S_in_p != S_in:
        x = jnp.pad(x, ((0, 0), (0, 0), (0, S_in_p - S_in)))
    x = jnp.transpose(x, (1, 0, 2))                  # (C, B, S_in_p)

    TB = _pick_batch_tile(B, C, S_in_p)              # multiple of 8
    B_pad = _round_up(max(B, 8), TB)
    if B_pad != B:
        x = jnp.pad(x, ((0, 0), (0, B_pad - B), (0, 0)))
    grid = (B_pad // TB,)

    smem = pl.BlockSpec(memory_space=pltpu.MemorySpace.SMEM)
    in_specs = [
        smem, smem,                                                  # BN1 scale/shift
        pl.BlockSpec((C, TB, S_in_p), lambda i: (0, i, 0)),          # batch-tiled input
        pl.BlockSpec((S_in_p, H_a_p), lambda i: (0, 0)),             # resident weights
        pl.BlockSpec((S_in_p, H_a_p), lambda i: (0, 0)),
        pl.BlockSpec((C, H_a_p, H_b_p), lambda i: (0, 0, 0)),
        pl.BlockSpec((1, H_b_p), lambda i: (0, 0)),
        pl.BlockSpec((H_b_p, S_out_p), lambda i: (0, 0)),
        pl.BlockSpec((1, S_out_p), lambda i: (0, 0)),
    ]
    out_spec = pl.BlockSpec((TB, S_out_p), lambda i: (i, 0))

    w_bytes = ((packed["vm_ws"].size + packed["vm_wc"].size
                + packed["fc1_w"].size + packed["fc2_w"].size) * 2
               + (packed["fc1_b"].size + packed["fc2_b"].size) * 4)
    x_blk_bytes = C * TB * S_in_p * 4
    out_blk_bytes = TB * S_out_p * 4
    # In-kernel intermediates (sin/cos bf16 + h f32), rough upper bound.
    scratch_bytes = C * TB * (2 * S_in_p * 2 + 2 * H_a_p * 4)
    vmem_limit = int(min(max(2 * (x_blk_bytes + out_blk_bytes) + w_bytes
                             + scratch_bytes + (8 << 20), 32 << 20),
                         _VMEM_LIMIT_CAP))           # <= 56 MiB: v7x-safe (64 MiB VMEM)

    flops = (2 * B_pad * C * (2 * S_in_p * H_a_p + H_a_p * H_b_p)
             + 2 * B_pad * H_b_p * S_out_p)
    transcendentals = B_pad * C * (2 * S_in_p + H_a_p)       # sin, cos, tanh(sigmoid)
    bytes_accessed = int(B_pad * C * S_in_p * 4 + w_bytes + B_pad * S_out_p * 4)

    out = pl.pallas_call(
        _densevm_kernel,
        out_shape=jax.ShapeDtypeStruct((B_pad, S_out_p), jnp.float32),
        grid=grid,
        in_specs=in_specs,
        out_specs=out_spec,
        compiler_params=pltpu.CompilerParams(
            dimension_semantics=("parallel",),               # megacore sharding on v7x
            vmem_limit_bytes=vmem_limit),
        cost_estimate=pl.CostEstimate(flops=flops,
                                      transcendentals=transcendentals,
                                      bytes_accessed=bytes_accessed),
    )(packed["bn1_s"], packed["bn1_t"], x,
      packed["vm_ws"], packed["vm_wc"], packed["fc1_w"], packed["fc1_b"],
      packed["fc2_w"], packed["fc2_b"])

    return out[:B, :size_out]


# --------------------------------------------------------------------------------------
# Pure-JAX reference (f32, PyTorch eval-mode semantics, raw/unfolded parameters)
# --------------------------------------------------------------------------------------
def _reference_forward(x_nchw, raw):
    B, C, H, W = x_nchw.shape
    x = x_nchw.reshape(B, C, H * W)
    h = (jnp.einsum("bcs,hs->bch", jnp.sin(x), raw["vm_W"])
         + jnp.einsum("bcs,hs->bch", jnp.cos(x), raw["vm_Z"]))
    s1 = raw["bn1_g"] / jnp.sqrt(raw["bn1_v"] + _BN_EPS)
    h = (h - raw["bn1_m"][None, :, None]) * s1[None, :, None] + raw["bn1_b"][None, :, None]
    h = jax.nn.sigmoid(h).reshape(B, -1)
    h = h @ raw["fc1_w"].T + raw["fc1_b"]
    h = (h - raw["bn2_m"]) / jnp.sqrt(raw["bn2_v"] + _BN_EPS) * raw["bn2_g"] + raw["bn2_b"]
    h = jnp.maximum(h, 0.0)
    return h @ raw["fc2_w"].T + raw["fc2_b"]


def make_params(key, size_in, size_hidden_a, size_hidden_b, size_out, channels=8):
    ks = jax.random.split(key, 14)

    def u(k, shape, fan_in):
        lim = 1.0 / float(fan_in) ** 0.5
        return jax.random.uniform(k, shape, jnp.float32, -lim, lim)

    flat = size_hidden_a * channels
    return {
        # PyTorch nn.Linear convention: weight is (out, in)
        "vm_W": u(ks[0], (size_hidden_a, size_in), size_in),
        "vm_Z": u(ks[1], (size_hidden_a, size_in), size_in),
        "fc1_w": u(ks[2], (size_hidden_b, flat), flat),
        "fc1_b": u(ks[3], (size_hidden_b,), flat),
        "fc2_w": u(ks[4], (size_out, size_hidden_b), size_hidden_b),
        "fc2_b": u(ks[5], (size_out,), size_hidden_b),
        # BatchNorm eval-mode running stats (non-trivial, deterministic)
        "bn1_g": 1.0 + 0.1 * jax.random.normal(ks[6], (channels,), jnp.float32),
        "bn1_b": 0.1 * jax.random.normal(ks[7], (channels,), jnp.float32),
        "bn1_m": 0.1 * jax.random.normal(ks[8], (channels,), jnp.float32),
        "bn1_v": 0.5 + 0.2 * jnp.abs(jax.random.normal(ks[9], (channels,), jnp.float32)),
        "bn2_g": 1.0 + 0.1 * jax.random.normal(ks[10], (size_hidden_b,), jnp.float32),
        "bn2_b": 0.1 * jax.random.normal(ks[11], (size_hidden_b,), jnp.float32),
        "bn2_m": 0.1 * jax.random.normal(ks[12], (size_hidden_b,), jnp.float32),
        "bn2_v": 0.5 + 0.2 * jnp.abs(jax.random.normal(ks[13], (size_hidden_b,), jnp.float32)),
    }


if __name__ == "__main__":
    # Small shapes consistent with the module: channels fixed at 8 (BatchNorm2d(8)),
    # spatial 16x16 -> size_in = 256, hidden_a = 128, hidden_b = 128, out = 8.
    C = 8
    B, Hs, Ws = 2, 16, 16
    size_in, size_hidden_a, size_hidden_b, size_out = Hs * Ws, 128, 128, 8

    key = jax.random.PRNGKey(0)
    kx, kp = jax.random.split(key)
    x = jax.random.normal(kx, (B, C, Hs, Ws), jnp.float32)
    raw = make_params(kp, size_in, size_hidden_a, size_hidden_b, size_out, channels=C)
    packed = pack_params(raw, channels=C)

    out = jax.block_until_ready(densevm_forward(x, packed, size_out=size_out))
    ref = _reference_forward(x, raw)
    assert out.shape == (B, size_out), out.shape
    assert jnp.allclose(out, ref, atol=3e-2, rtol=3e-2), float(jnp.max(jnp.abs(out - ref)))

    # Larger batch exercising the batch grid (>= 2 tiles + batch-padding path).
    B2 = 200
    x2 = jax.random.normal(jax.random.PRNGKey(1), (B2, C, Hs, Ws), jnp.float32)
    out2 = jax.block_until_ready(densevm_forward(x2, packed, size_out=size_out))
    ref2 = _reference_forward(x2, raw)
    assert out2.shape == (B2, size_out), out2.shape
    assert jnp.allclose(out2, ref2, atol=3e-2, rtol=3e-2), float(jnp.max(jnp.abs(out2 - ref2)))

    print("KERNEL_OK")
</pallas_src>

<mosaic_0001>
module attributes {stable_mosaic.version = 11 : i64} {
  func.func @_densevm_kernel(%arg0: i32, %arg1: memref<8xf32, #tpu.memory_space<smem>>, %arg2: memref<8xf32, #tpu.memory_space<smem>>, %arg3: memref<8x8x256xf32, #tpu.memory_space<vmem>>, %arg4: memref<256x128xbf16, #tpu.memory_space<vmem>>, %arg5: memref<256x128xbf16, #tpu.memory_space<vmem>>, %arg6: memref<8x128x128xbf16, #tpu.memory_space<vmem>>, %arg7: memref<1x128xf32, #tpu.memory_space<vmem>>, %arg8: memref<128x128xbf16, #tpu.memory_space<vmem>>, %arg9: memref<1x128xf32, #tpu.memory_space<vmem>>, %arg10: memref<8x128xf32, #tpu.memory_space<vmem>>) attributes {dimension_semantics = [#tpu.dimension_semantics<parallel>], iteration_bounds = array<i64: 1>, scalar_prefetch = 0 : i64, scratch_operands = 0 : i64, tpu.core_type = #tpu.core_type<tc>, window_params = [{transform_indices = @transform_0, window_bounds = array<i64: 8>}, {transform_indices = @transform_1, window_bounds = array<i64: 8>}, {transform_indices = @transform_2, window_bounds = array<i64: 8, 8, 256>}, {pipeline_mode = #tpu.pipeline_mode<synchronous>, transform_indices = @transform_3, window_bounds = array<i64: 256, 128>}, {pipeline_mode = #tpu.pipeline_mode<synchronous>, transform_indices = @transform_4, window_bounds = array<i64: 256, 128>}, {pipeline_mode = #tpu.pipeline_mode<synchronous>, transform_indices = @transform_5, window_bounds = array<i64: 8, 128, 128>}, {pipeline_mode = #tpu.pipeline_mode<synchronous>, transform_indices = @transform_6, window_bounds = array<i64: 1, 128>}, {pipeline_mode = #tpu.pipeline_mode<synchronous>, transform_indices = @transform_7, window_bounds = array<i64: 128, 128>}, {pipeline_mode = #tpu.pipeline_mode<synchronous>, transform_indices = @transform_8, window_bounds = array<i64: 1, 128>}, {transform_indices = @transform_9, window_bounds = array<i64: 8, 128>}]} {
    %c0 = arith.constant 0 : index
    %c0_0 = arith.constant 0 : index
    %c0_1 = arith.constant 0 : index
    %0 = vector.load %arg3[%c0, %c0_0, %c0_1] : memref<8x8x256xf32, #tpu.memory_space<vmem>>, vector<8x8x256xf32>
    %1 = vector.shape_cast %0 : vector<8x8x256xf32> to vector<64x256xf32>
    %2 = math.sin %1 : vector<64x256xf32>
    %3 = arith.truncf %2 : vector<64x256xf32> to vector<64x256xbf16>
    %4 = math.cos %1 : vector<64x256xf32>
    %5 = arith.truncf %4 : vector<64x256xf32> to vector<64x256xbf16>
    %c0_2 = arith.constant 0 : index
    %c0_3 = arith.constant 0 : index
    %6 = vector.load %arg4[%c0_2, %c0_3] : memref<256x128xbf16, #tpu.memory_space<vmem>>, vector<256x128xbf16>
    %cst = arith.constant dense<0.000000e+00> : vector<64x128xf32>
    %7 = tpu.matmul %3, %6, %cst {dimension_numbers = #tpu.dot_dimension_numbers<[1], [0], [0], [1], [0, 0, 1, 1], [], []>} : vector<64x256xbf16>, vector<256x128xbf16>, vector<64x128xf32> -> vector<64x128xf32>
    %c0_4 = arith.constant 0 : index
    %c0_5 = arith.constant 0 : index
    %8 = vector.load %arg5[%c0_4, %c0_5] : memref<256x128xbf16, #tpu.memory_space<vmem>>, vector<256x128xbf16>
    %cst_6 = arith.constant dense<0.000000e+00> : vector<64x128xf32>
    %9 = tpu.matmul %5, %8, %cst_6 {dimension_numbers = #tpu.dot_dimension_numbers<[1], [0], [0], [1], [0, 0, 1, 1], [], []>} : vector<64x256xbf16>, vector<256x128xbf16>, vector<64x128xf32> -> vector<64x128xf32>
    %10 = arith.addf %7, %9 : vector<64x128xf32>
    %11 = vector.shape_cast %10 : vector<64x128xf32> to vector<8x8x128xf32>
    %cst_7 = arith.constant 0.000000e+00 : f32
    %12 = vector.broadcast %cst_7 : f32 to vector<8x128xf32>
    %13 = vector.extract_strided_slice %11 {offsets = [0, 0, 0], sizes = [1, 8, 128], strides = [1, 1, 1]} : vector<8x8x128xf32> to vector<1x8x128xf32>
    %14 = vector.shape_cast %13 : vector<1x8x128xf32> to vector<8x128xf32>
    %c0_8 = arith.constant 0 : index
    %15 = memref.load %arg1[%c0_8] : memref<8xf32, #tpu.memory_space<smem>>
    %16 = vector.broadcast %15 : f32 to vector<8x128xf32>
    %17 = arith.mulf %14, %16 : vector<8x128xf32>
    %c0_9 = arith.constant 0 : index
    %18 = memref.load %arg2[%c0_9] : memref<8xf32, #tpu.memory_space<smem>>
    %19 = vector.broadcast %18 : f32 to vector<8x128xf32>
    %20 = arith.addf %17, %19 : vector<8x128xf32>
    %cst_10 = arith.constant 5.000000e-01 : f32
    %21 = vector.broadcast %cst_10 : f32 to vector<8x128xf32>
    %22 = arith.mulf %21, %20 : vector<8x128xf32>
    %23 = math.tanh %22 : vector<8x128xf32>
    %cst_11 = arith.constant 5.000000e-01 : f32
    %24 = vector.broadcast %cst_11 : f32 to vector<8x128xf32>
    %25 = arith.mulf %24, %23 : vector<8x128xf32>
    %cst_12 = arith.constant 5.000000e-01 : f32
    %26 = vector.broadcast %cst_12 : f32 to vector<8x128xf32>
    %27 = arith.addf %25, %26 : vector<8x128xf32>
    %28 = arith.truncf %27 : vector<8x128xf32> to vector<8x128xbf16>
    %c0_13 = arith.constant 0 : index
    %c0_14 = arith.constant 0 : index
    %c0_15 = arith.constant 0 : index
    %29 = vector.load %arg6[%c0_13, %c0_14, %c0_15] : memref<8x128x128xbf16, #tpu.memory_space<vmem>>, vector<1x128x128xbf16>
    %30 = vector.shape_cast %29 : vector<1x128x128xbf16> to vector<128x128xbf16>
    %cst_16 = arith.constant dense<0.000000e+00> : vector<8x128xf32>
    %31 = tpu.matmul %28, %30, %cst_16 {dimension_numbers = #tpu.dot_dimension_numbers<[1], [0], [0], [1], [0, 0, 1, 1], [], []>} : vector<8x128xbf16>, vector<128x128xbf16>, vector<8x128xf32> -> vector<8x128xf32>
    %32 = arith.addf %12, %31 : vector<8x128xf32>
    %33 = vector.extract_strided_slice %11 {offsets = [1, 0, 0], sizes = [1, 8, 128], strides = [1, 1, 1]} : vector<8x8x128xf32> to vector<1x8x128xf32>
    %34 = vector.shape_cast %33 : vector<1x8x128xf32> to vector<8x128xf32>
    %c1 = arith.constant 1 : index
    %35 = memref.load %arg1[%c1] : memref<8xf32, #tpu.memory_space<smem>>
    %36 = vector.broadcast %35 : f32 to vector<8x128xf32>
    %37 = arith.mulf %34, %36 : vector<8x128xf32>
    %c1_17 = arith.constant 1 : index
    %38 = memref.load %arg2[%c1_17] : memref<8xf32, #tpu.memory_space<smem>>
    %39 = vector.broadcast %38 : f32 to vector<8x128xf32>
    %40 = arith.addf %37, %39 : vector<8x128xf32>
    %cst_18 = arith.constant 5.000000e-01 : f32
    %41 = vector.broadcast %cst_18 : f32 to vector<8x128xf32>
    %42 = arith.mulf %41, %40 : vector<8x128xf32>
    %43 = math.tanh %42 : vector<8x128xf32>
    %cst_19 = arith.constant 5.000000e-01 : f32
    %44 = vector.broadcast %cst_19 : f32 to vector<8x128xf32>
    %45 = arith.mulf %44, %43 : vector<8x128xf32>
    %cst_20 = arith.constant 5.000000e-01 : f32
    %46 = vector.broadcast %cst_20 : f32 to vector<8x128xf32>
    %47 = arith.addf %45, %46 : vector<8x128xf32>
    %48 = arith.truncf %47 : vector<8x128xf32> to vector<8x128xbf16>
    %c1_21 = arith.constant 1 : index
    %c0_22 = arith.constant 0 : index
    %c0_23 = arith.constant 0 : index
    %49 = vector.load %arg6[%c1_21, %c0_22, %c0_23] : memref<8x128x128xbf16, #tpu.memory_space<vmem>>, vector<1x128x128xbf16>
    %50 = vector.shape_cast %49 : vector<1x128x128xbf16> to vector<128x128xbf16>
    %cst_24 = arith.constant dense<0.000000e+00> : vector<8x128xf32>
    %51 = tpu.matmul %48, %50, %cst_24 {dimension_numbers = #tpu.dot_dimension_numbers<[1], [0], [0], [1], [0, 0, 1, 1], [], []>} : vector<8x128xbf16>, vector<128x128xbf16>, vector<8x128xf32> -> vector<8x128xf32>
    %52 = arith.addf %32, %51 : vector<8x128xf32>
    %53 = vector.extract_strided_slice %11 {offsets = [2, 0, 0], sizes = [1, 8, 128], strides = [1, 1, 1]} : vector<8x8x128xf32> to vector<1x8x128xf32>
    %54 = vector.shape_cast %53 : vector<1x8x128xf32> to vector<8x128xf32>
    %c2 = arith.constant 2 : index
    %55 = memref.load %arg1[%c2] : memref<8xf32, #tpu.memory_space<smem>>
    %56 = vector.broadcast %55 : f32 to vector<8x128xf32>
    %57 = arith.mulf %54, %56 : vector<8x128xf32>
    %c2_25 = arith.constant 2 : index
    %58 = memref.load %arg2[%c2_25] : memref<8xf32, #tpu.memory_space<smem>>
    %59 = vector.broadcast %58 : f32 to vector<8x128xf32>
    %60 = arith.addf %57, %59 : vector<8x128xf32>
    %cst_26 = arith.constant 5.000000e-01 : f32
    %61 = vector.broadcast %cst_26 : f32 to vector<8x128xf32>
    %62 = arith.mulf %61, %60 : vector<8x128xf32>
    %63 = math.tanh %62 : vector<8x128xf32>
    %cst_27 = arith.constant 5.000000e-01 : f32
    %64 = vector.broadcast %cst_27 : f32 to vector<8x128xf32>
    %65 = arith.mulf %64, %63 : vector<8x128xf32>
    %cst_28 = arith.constant 5.000000e-01 : f32
    %66 = vector.broadcast %cst_28 : f32 to vector<8x128xf32>
    %67 = arith.addf %65, %66 : vector<8x128xf32>
    %68 = arith.truncf %67 : vector<8x128xf32> to vector<8x128xbf16>
    %c2_29 = arith.constant 2 : index
    %c0_30 = arith.constant 0 : index
    %c0_31 = arith.constant 0 : index
    %69 = vector.load %arg6[%c2_29, %c0_30, %c0_31] : memref<8x128x128xbf16, #tpu.memory_space<vmem>>, vector<1x128x128xbf16>
    %70 = vector.shape_cast %69 : vector<1x128x128xbf16> to vector<128x128xbf16>
    %cst_32 = arith.constant dense<0.000000e+00> : vector<8x128xf32>
    %71 = tpu.matmul %68, %70, %cst_32 {dimension_numbers = #tpu.dot_dimension_numbers<[1], [0], [0], [1], [0, 0, 1, 1], [], []>} : vector<8x128xbf16>, vector<128x128xbf16>, vector<8x128xf32> -> vector<8x128xf32>
    %72 = arith.addf %52, %71 : vector<8x128xf32>
    %73 = vector.extract_strided_slice %11 {offsets = [3, 0, 0], sizes = [1, 8, 128], strides = [1, 1, 1]} : vector<8x8x128xf32> to vector<1x8x128xf32>
    %74 = vector.shape_cast %73 : vector<1x8x128xf32> to vector<8x128xf32>
    %c3 = arith.constant 3 : index
    %75 = memref.load %arg1[%c3] : memref<8xf32, #tpu.memory_space<smem>>
    %76 = vector.broadcast %75 : f32 to vector<8x128xf32>
    %77 = arith.mulf %74, %76 : vector<8x128xf32>
    %c3_33 = arith.constant 3 : index
    %78 = memref.load %arg2[%c3_33] : memref<8xf32, #tpu.memory_space<smem>>
    %79 = vector.broadcast %78 : f32 to vector<8x128xf32>
    %80 = arith.addf %77, %79 : vector<8x128xf32>
    %cst_34 = arith.constant 5.000000e-01 : f32
    %81 = vector.broadcast %cst_34 : f32 to vector<8x128xf32>
    %82 = arith.mulf %81, %80 : vector<8x128xf32>
    %83 = math.tanh %82 : vector<8x128xf32>
    %cst_35 = arith.constant 5.000000e-01 : f32
    %84 = vector.broadcast %cst_35 : f32 to vector<8x128xf32>
    %85 = arith.mulf %84, %83 : vector<8x128xf32>
    %cst_36 = arith.constant 5.000000e-01 : f32
    %86 = vector.broadcast %cst_36 : f32 to vector<8x128xf32>
    %87 = arith.addf %85, %86 : vector<8x128xf32>
    %88 = arith.truncf %87 : vector<8x128xf32> to vector<8x128xbf16>
    %c3_37 = arith.constant 3 : index
    %c0_38 = arith.constant 0 : index
    %c0_39 = arith.constant 0 : index
    %89 = vector.load %arg6[%c3_37, %c0_38, %c0_39] : memref<8x128x128xbf16, #tpu.memory_space<vmem>>, vector<1x128x128xbf16>
    %90 = vector.shape_cast %89 : vector<1x128x128xbf16> to vector<128x128xbf16>
    %cst_40 = arith.constant dense<0.000000e+00> : vector<8x128xf32>
    %91 = tpu.matmul %88, %90, %cst_40 {dimension_numbers = #tpu.dot_dimension_numbers<[1], [0], [0], [1], [0, 0, 1, 1], [], []>} : vector<8x128xbf16>, vector<128x128xbf16>, vector<8x128xf32> -> vector<8x128xf32>
    %92 = arith.addf %72, %91 : vector<8x128xf32>
    %93 = vector.extract_strided_slice %11 {offsets = [4, 0, 0], sizes = [1, 8, 128], strides = [1, 1, 1]} : vector<8x8x128xf32> to vector<1x8x128xf32>
    %94 = vector.shape_cast %93 : vector<1x8x128xf32> to vector<8x128xf32>
    %c4 = arith.constant 4 : index
    %95 = memref.load %arg1[%c4] : memref<8xf32, #tpu.memory_space<smem>>
    %96 = vector.broadcast %95 : f32 to vector<8x128xf32>
    %97 = arith.mulf %94, %96 : vector<8x128xf32>
    %c4_41 = arith.constant 4 : index
    %98 = memref.load %arg2[%c4_41] : memref<8xf32, #tpu.memory_space<smem>>
    %99 = vector.broadcast %98 : f32 to vector<8x128xf32>
    %100 = arith.addf %97, %99 : vector<8x128xf32>
    %cst_42 = arith.constant 5.000000e-01 : f32
    %101 = vector.broadcast %cst_42 : f32 to vector<8x128xf32>
    %102 = arith.mulf %101, %100 : vector<8x128xf32>
    %103 = math.tanh %102 : vector<8x128xf32>
    %cst_43 = arith.constant 5.000000e-01 : f32
    %104 = vector.broadcast %cst_43 : f32 to vector<8x128xf32>
    %105 = arith.mulf %104, %103 : vector<8x128xf32>
    %cst_44 = arith.constant 5.000000e-01 : f32
    %106 = vector.broadcast %cst_44 : f32 to vector<8x128xf32>
    %107 = arith.addf %105, %106 : vector<8x128xf32>
    %108 = arith.truncf %107 : vector<8x128xf32> to vector<8x128xbf16>
    %c4_45 = arith.constant 4 : index
    %c0_46 = arith.constant 0 : index
    %c0_47 = arith.constant 0 : index
    %109 = vector.load %arg6[%c4_45, %c0_46, %c0_47] : memref<8x128x128xbf16, #tpu.memory_space<vmem>>, vector<1x128x128xbf16>
    %110 = vector.shape_cast %109 : vector<1x128x128xbf16> to vector<128x128xbf16>
    %cst_48 = arith.constant dense<0.000000e+00> : vector<8x128xf32>
    %111 = tpu.matmul %108, %110, %cst_48 {dimension_numbers = #tpu.dot_dimension_numbers<[1], [0], [0], [1], [0, 0, 1, 1], [], []>} : vector<8x128xbf16>, vector<128x128xbf16>, vector<8x128xf32> -> vector<8x128xf32>
    %112 = arith.addf %92, %111 : vector<8x128xf32>
    %113 = vector.extract_strided_slice %11 {offsets = [5, 0, 0], sizes = [1, 8, 128], strides = [1, 1, 1]} : vector<8x8x128xf32> to vector<1x8x128xf32>
    %114 = vector.shape_cast %113 : vector<1x8x128xf32> to vector<8x128xf32>
    %c5 = arith.constant 5 : index
    %115 = memref.load %arg1[%c5] : memref<8xf32, #tpu.memory_space<smem>>
    %116 = vector.broadcast %115 : f32 to vector<8x128xf32>
    %117 = arith.mulf %114, %116 : vector<8x128xf32>
    %c5_49 = arith.constant 5 : index
    %118 = memref.load %arg2[%c5_49] : memref<8xf32, #tpu.memory_space<smem>>
    %119 = vector.broadcast %118 : f32 to vector<8x128xf32>
    %120 = arith.addf %117, %119 : vector<8x128xf32>
    %cst_50 = arith.constant 5.000000e-01 : f32
    %121 = vector.broadcast %cst_50 : f32 to vector<8x128xf32>
    %122 = arith.mulf %121, %120 : vector<8x128xf32>
    %123 = math.tanh %122 : vector<8x128xf32>
    %cst_51 = arith.constant 5.000000e-01 : f32
    %124 = vector.broadcast %cst_51 : f32 to vector<8x128xf32>
    %125 = arith.mulf %124, %123 : vector<8x128xf32>
    %cst_52 = arith.constant 5.000000e-01 : f32
    %126 = vector.broadcast %cst_52 : f32 to vector<8x128xf32>
    %127 = arith.addf %125, %126 : vector<8x128xf32>
    %128 = arith.truncf %127 : vector<8x128xf32> to vector<8x128xbf16>
    %c5_53 = arith.constant 5 : index
    %c0_54 = arith.constant 0 : index
    %c0_55 = arith.constant 0 : index
    %129 = vector.load %arg6[%c5_53, %c0_54, %c0_55] : memref<8x128x128xbf16, #tpu.memory_space<vmem>>, vector<1x128x128xbf16>
    %130 = vector.shape_cast %129 : vector<1x128x128xbf16> to vector<128x128xbf16>
    %cst_56 = arith.constant dense<0.000000e+00> : vector<8x128xf32>
    %131 = tpu.matmul %128, %130, %cst_56 {dimension_numbers = #tpu.dot_dimension_numbers<[1], [0], [0], [1], [0, 0, 1, 1], [], []>} : vector<8x128xbf16>, vector<128x128xbf16>, vector<8x128xf32> -> vector<8x128xf32>
    %132 = arith.addf %112, %131 : vector<8x128xf32>
    %133 = vector.extract_strided_slice %11 {offsets = [6, 0, 0], sizes = [1, 8, 128], strides = [1, 1, 1]} : vector<8x8x128xf32> to vector<1x8x128xf32>
    %134 = vector.shape_cast %133 : vector<1x8x128xf32> to vector<8x128xf32>
    %c6 = arith.constant 6 : index
    %135 = memref.load %arg1[%c6] : memref<8xf32, #tpu.memory_space<smem>>
    %136 = vector.broadcast %135 : f32 to vector<8x128xf32>
    %137 = arith.mulf %134, %136 : vector<8x128xf32>
    %c6_57 = arith.constant 6 : index
    %138 = memref.load %arg2[%c6_57] : memref<8xf32, #tpu.memory_space<smem>>
    %139 = vector.broadcast %138 : f32 to vector<8x128xf32>
    %140 = arith.addf %137, %139 : vector<8x128xf32>
    %cst_58 = arith.constant 5.000000e-01 : f32
    %141 = vector.broadcast %cst_58 : f32 to vector<8x128xf32>
    %142 = arith.mulf %141, %140 : vector<8x128xf32>
    %143 = math.tanh %142 : vector<8x128xf32>
    %cst_59 = arith.constant 5.000000e-01 : f32
    %144 = vector.broadcast %cst_59 : f32 to vector<8x128xf32>
    %145 = arith.mulf %144, %143 : vector<8x128xf32>
    %cst_60 = arith.constant 5.000000e-01 : f32
    %146 = vector.broadcast %cst_60 : f32 to vector<8x128xf32>
    %147 = arith.addf %145, %146 : vector<8x128xf32>
    %148 = arith.truncf %147 : vector<8x128xf32> to vector<8x128xbf16>
    %c6_61 = arith.constant 6 : index
    %c0_62 = arith.constant 0 : index
    %c0_63 = arith.constant 0 : index
    %149 = vector.load %arg6[%c6_61, %c0_62, %c0_63] : memref<8x128x128xbf16, #tpu.memory_space<vmem>>, vector<1x128x128xbf16>
    %150 = vector.shape_cast %149 : vector<1x128x128xbf16> to vector<128x128xbf16>
    %cst_64 = arith.constant dense<0.000000e+00> : vector<8x128xf32>
    %151 = tpu.matmul %148, %150, %cst_64 {dimension_numbers = #tpu.dot_dimension_numbers<[1], [0], [0], [1], [0, 0, 1, 1], [], []>} : vector<8x128xbf16>, vector<128x128xbf16>, vector<8x128xf32> -> vector<8x128xf32>
    %152 = arith.addf %132, %151 : vector<8x128xf32>
    %153 = vector.extract_strided_slice %11 {offsets = [7, 0, 0], sizes = [1, 8, 128], strides = [1, 1, 1]} : vector<8x8x128xf32> to vector<1x8x128xf32>
    %154 = vector.shape_cast %153 : vector<1x8x128xf32> to vector<8x128xf32>
    %c7 = arith.constant 7 : index
    %155 = memref.load %arg1[%c7] : memref<8xf32, #tpu.memory_space<smem>>
    %156 = vector.broadcast %155 : f32 to vector<8x128xf32>
    %157 = arith.mulf %154, %156 : vector<8x128xf32>
    %c7_65 = arith.constant 7 : index
    %158 = memref.load %arg2[%c7_65] : memref<8xf32, #tpu.memory_space<smem>>
    %159 = vector.broadcast %158 : f32 to vector<8x128xf32>
    %160 = arith.addf %157, %159 : vector<8x128xf32>
    %cst_66 = arith.constant 5.000000e-01 : f32
    %161 = vector.broadcast %cst_66 : f32 to vector<8x128xf32>
    %162 = arith.mulf %161, %160 : vector<8x128xf32>
    %163 = math.tanh %162 : vector<8x128xf32>
    %cst_67 = arith.constant 5.000000e-01 : f32
    %164 = vector.broadcast %cst_67 : f32 to vector<8x128xf32>
    %165 = arith.mulf %164, %163 : vector<8x128xf32>
    %cst_68 = arith.constant 5.000000e-01 : f32
    %166 = vector.broadcast %cst_68 : f32 to vector<8x128xf32>
    %167 = arith.addf %165, %166 : vector<8x128xf32>
    %168 = arith.truncf %167 : vector<8x128xf32> to vector<8x128xbf16>
    %c7_69 = arith.constant 7 : index
    %c0_70 = arith.constant 0 : index
    %c0_71 = arith.constant 0 : index
    %169 = vector.load %arg6[%c7_69, %c0_70, %c0_71] : memref<8x128x128xbf16, #tpu.memory_space<vmem>>, vector<1x128x128xbf16>
    %170 = vector.shape_cast %169 : vector<1x128x128xbf16> to vector<128x128xbf16>
    %cst_72 = arith.constant dense<0.000000e+00> : vector<8x128xf32>
    %171 = tpu.matmul %168, %170, %cst_72 {dimension_numbers = #tpu.dot_dimension_numbers<[1], [0], [0], [1], [0, 0, 1, 1], [], []>} : vector<8x128xbf16>, vector<128x128xbf16>, vector<8x128xf32> -> vector<8x128xf32>
    %172 = arith.addf %152, %171 : vector<8x128xf32>
    %c0_73 = arith.constant 0 : index
    %c0_74 = arith.constant 0 : index
    %173 = vector.load %arg7[%c0_73, %c0_74] : memref<1x128xf32, #tpu.memory_space<vmem>>, vector<1x128xf32>
    %174 = vector.broadcast %173 : vector<1x128xf32> to vector<8x128xf32>
    %175 = arith.addf %172, %174 : vector<8x128xf32>
    %cst_75 = arith.constant 0.000000e+00 : f32
    %176 = vector.broadcast %cst_75 : f32 to vector<8x128xf32>
    %177 = arith.maximumf %175, %176 : vector<8x128xf32>
    %178 = arith.truncf %177 : vector<8x128xf32> to vector<8x128xbf16>
    %c0_76 = arith.constant 0 : index
    %c0_77 = arith.constant 0 : index
    %179 = vector.load %arg8[%c0_76, %c0_77] : memref<128x128xbf16, #tpu.memory_space<vmem>>, vector<128x128xbf16>
    %cst_78 = arith.constant dense<0.000000e+00> : vector<8x128xf32>
    %180 = tpu.matmul %178, %179, %cst_78 {dimension_numbers = #tpu.dot_dimension_numbers<[1], [0], [0], [1], [0, 0, 1, 1], [], []>} : vector<8x128xbf16>, vector<128x128xbf16>, vector<8x128xf32> -> vector<8x128xf32>
    %c0_79 = arith.constant 0 : index
    %c0_80 = arith.constant 0 : index
    %181 = vector.load %arg9[%c0_79, %c0_80] : memref<1x128xf32, #tpu.memory_space<vmem>>, vector<1x128xf32>
    %182 = vector.broadcast %181 : vector<1x128xf32> to vector<8x128xf32>
    %183 = arith.addf %180, %182 : vector<8x128xf32>
    %c0_81 = arith.constant 0 : index
    %c0_82 = arith.constant 0 : index
    %184 = vector.load %arg10[%c0_81, %c0_82] : memref<8x128xf32, #tpu.memory_space<vmem>>, vector<8x128xf32>
    tpu.vector_store %arg10[%c0_81, %c0_82], %183 {strides = array<i32>} : memref<8x128xf32, #tpu.memory_space<vmem>>, vector<8x128xf32>,
    return
  }
  func.func @transform_0(%arg0: i32) -> i32 {
    %c0_i32 = arith.constant 0 : i32
    %c0_i32_0 = arith.constant 0 : i32
    return %c0_i32 : i32
  }
  func.func @transform_1(%arg0: i32) -> i32 {
    %c0_i32 = arith.constant 0 : i32
    %c0_i32_0 = arith.constant 0 : i32
    return %c0_i32 : i32
  }
  func.func @transform_2(%arg0: i32) -> (i32, i32, i32) {
    %c0_i32 = arith.constant 0 : i32
    %c0_i32_0 = arith.constant 0 : i32
    %c0_i32_1 = arith.constant 0 : i32
    return %c0_i32, %arg0, %c0_i32_0 : i32, i32, i32
  }
  func.func @transform_3(%arg0: i32) -> (i32, i32) {
    %c0_i32 = arith.constant 0 : i32
    %c0_i32_0 = arith.constant 0 : i32
    %c0_i32_1 = arith.constant 0 : i32
    return %c0_i32, %c0_i32_0 : i32, i32
  }
  func.func @transform_4(%arg0: i32) -> (i32, i32) {
    %c0_i32 = arith.constant 0 : i32
    %c0_i32_0 = arith.constant 0 : i32
    %c0_i32_1 = arith.constant 0 : i32
    return %c0_i32, %c0_i32_0 : i32, i32
  }
  func.func @transform_5(%arg0: i32) -> (i32, i32, i32) {
    %c0_i32 = arith.constant 0 : i32
    %c0_i32_0 = arith.constant 0 : i32
    %c0_i32_1 = arith.constant 0 : i32
    %c0_i32_2 = arith.constant 0 : i32
    return %c0_i32, %c0_i32_0, %c0_i32_1 : i32, i32, i32
  }
  func.func @transform_6(%arg0: i32) -> (i32, i32) {
    %c0_i32 = arith.constant 0 : i32
    %c0_i32_0 = arith.constant 0 : i32
    %c0_i32_1 = arith.constant 0 : i32
    return %c0_i32, %c0_i32_0 : i32, i32
  }
  func.func @transform_7(%arg0: i32) -> (i32, i32) {
    %c0_i32 = arith.constant 0 : i32
    %c0_i32_0 = arith.constant 0 : i32
    %c0_i32_1 = arith.constant 0 : i32
    return %c0_i32, %c0_i32_0 : i32, i32
  }
  func.func @transform_8(%arg0: i32) -> (i32, i32) {
    %c0_i32 = arith.constant 0 : i32
    %c0_i32_0 = arith.constant 0 : i32
    %c0_i32_1 = arith.constant 0 : i32
    return %c0_i32, %c0_i32_0 : i32, i32
  }
  func.func @transform_9(%arg0: i32) -> (i32, i32) {
    %c0_i32 = arith.constant 0 : i32
    %c0_i32_0 = arith.constant 0 : i32
    return %arg0, %c0_i32 : i32, i32
  }
}

</mosaic_0001>

<llo_original>
// kernel: densevm_forward.1
$region0: #{densevm_forward.1}
  #allocation0 [shape = 'u32[]', space=smem, size = 0x4, offset = 0x4, fixed_abs, tag = 'smem constant byte address 0x4 - core index']
  #allocation1 [shape = 'u32[144,128]{1,0:T(1,128)}', space=vmem, size = 0x12000, scoped, tag = 'internal scratch']
  %s0 = inlined_call_operand.vmem [shape: f32[8], index: 0, kind: input, shape index: {}]
  %s1 = inlined_call_operand.vmem [shape: f32[8], index: 1, kind: input, shape index: {}]
  %s2 = inlined_call_operand.vmem [shape: f32[8,8,256], index: 2, kind: input, shape index: {}]
  %s3 = inlined_call_operand.hbm [shape: bf16[256,128], index: 3, kind: input, shape index: {}]
  %s4 = inlined_call_operand.hbm [shape: bf16[256,128], index: 4, kind: input, shape index: {}]
  %s5 = inlined_call_operand.vmem [shape: bf16[8,128,128], index: 5, kind: input, shape index: {}]
  %s6 = inlined_call_operand.vmem [shape: f32[1,128], index: 6, kind: input, shape index: {}]
  %s7 = inlined_call_operand.hbm [shape: bf16[128,128], index: 7, kind: input, shape index: {}]
  %s8 = inlined_call_operand.vmem [shape: f32[1,128], index: 8, kind: input, shape index: {}]
  %s9 = inlined_call_operand.vmem [shape: f32[8,128], index: 9, kind: output, shape index: {}]
  %s10 = sld [smem:[#allocation0]]
  $region66: #{densevm_forward.1} parent=0
    _
  %s12 = ssub.s32 1, %s10
  %s13 = scalar_select 0, %s12, %s10
  $region1: #{densevm_forward.1} parent=0
    #allocation2 [shape = 'u8[512]{0}', space=smem, size = 0x200, scoped, tag = 'input window, operand 0, single buffered']
    #allocation3 [shape = 's32[1]{0}', space=sflag, size = 0x4, scoped, tag = 'scoped memory for densevm_forward.1']
    #allocation4 [shape = 's32[1]{0}', space=sflag, size = 0x4, scoped, tag = 'scoped memory for densevm_forward.1']
    #allocation5 [shape = 'u8[512]{0}', space=smem, size = 0x200, scoped, tag = 'input window, operand 1, single buffered']
    #allocation6 [shape = 's32[1]{0}', space=sflag, size = 0x4, scoped, tag = 'scoped memory for densevm_forward.1']
    #allocation7 [shape = 'u8[65536]{0}', space=vmem, size = 0x10000, scoped, tag = 'input window, operand 3, single buffered']
    #allocation8 [shape = 'u8[65536]{0}', space=vmem, size = 0x10000, scoped, tag = 'input window, operand 4, single buffered']
    #allocation9 [shape = 's32[1]{0}', space=sflag, size = 0x4, scoped, tag = 'scoped memory for densevm_forward.1']
    #allocation10 [shape = 'u8[32768]{0}', space=vmem, size = 0x8000, scoped, tag = 'input window, operand 7, single buffered']
    %14 = vsyncpa [#allocation4], 0
    %15 = vsyncpa [#allocation6], 0
    %16 = vsyncpa [#allocation3], 0
    %17 = vsyncpa [#allocation9], 0
    // Predicated region
    $region2: #{densevm_forward.1} parent=1 // pred_check
      _
    $region3: #{densevm_forward.1} parent=1 // pred_check_branch
      %19 = sbr.rel (0) target = $region5
    $region4: #{densevm_forward.1} parent=1 // pred_region
      %s21 = ssub.s32 16, 16
      %22 = vsyncadd [#allocation4], %s21
      %s24 = sshll.u32 %s0, 4
      %s25 = int_to_ptr.vmem [resolvable:$true] %s24
      %27 = dma.vmem_to_smem %s25, 16, [#allocation2], [#allocation4]
    $region5: #{densevm_forward.1} parent=1 // pred_fallthru
      _
    // Predicated region
    $region6: #{densevm_forward.1} parent=1 // pred_check
      _
    $region7: #{densevm_forward.1} parent=1 // pred_check_branch
      %29 = sbr.rel (0) target = $region9
    $region8: #{densevm_forward.1} parent=1 // pred_region
      %s31 = ssub.s32 16, 16
      %32 = vsyncadd [#allocation6], %s31
      %s34 = sshll.u32 %s1, 4
      %s35 = int_to_ptr.vmem [resolvable:$true] %s34
      %37 = dma.vmem_to_smem %s35, 16, [#allocation5], [#allocation6]
    $region9: #{densevm_forward.1} parent=1 // pred_fallthru
      _
    // Predicated region
    $region10: #{densevm_forward.1} parent=1 // pred_check
      _
    $region11: #{densevm_forward.1} parent=1 // pred_check_branch
      %39 = sbr.rel (0) target = $region13
    $region12: #{densevm_forward.1} parent=1 // pred_region
      _
    $region13: #{densevm_forward.1} parent=1 // pred_fallthru
      _
    // Predicated region
    $region14: #{densevm_forward.1} parent=1 // pred_check
      _
    $region15: #{densevm_forward.1} parent=1 // pred_check_branch
      %41 = sbr.rel (0) target = $region17
    $region16: #{densevm_forward.1} parent=1 // pred_region
      %s43 = ssub.s32 2048, 2048
      %44 = vsyncadd [#allocation3], %s43
      %s45 = sshll.u32 [#allocation7], 4
      %s46 = int_to_ptr.vmem [resolvable:$true] %s45
      %51 = dma.hbm_to_vmem [thread:$0]  %s3, 2048, %s46, [#allocation3], 64, 64, 4
    $region17: #{densevm_forward.1} parent=1 // pred_fallthru
      _
    // Predicated region
    $region18: #{densevm_forward.1} parent=1 // pred_check
      _
    $region19: #{densevm_forward.1} parent=1 // pred_check_branch
      %53 = sbr.rel (0) target = $region21
    $region20: #{densevm_forward.1} parent=1 // pred_region
      %s55 = ssub.s32 2048, 2048
      %56 = vsyncadd [#allocation9], %s55
      %s57 = sshll.u32 [#allocation8], 4
      %s58 = int_to_ptr.vmem [resolvable:$true] %s57
      %63 = dma.hbm_to_vmem [thread:$0]  %s4, 2048, %s58, [#allocation9], 64, 64, 4
    $region21: #{densevm_forward.1} parent=1 // pred_fallthru
      _
    // Predicated region
    $region22: #{densevm_forward.1} parent=1 // pred_check
      _
    $region23: #{densevm_forward.1} parent=1 // pred_check_branch
      %65 = sbr.rel (0) target = $region25
    $region24: #{densevm_forward.1} parent=1 // pred_region
      _
    $region25: #{densevm_forward.1} parent=1 // pred_fallthru
      _
    // Predicated region
    $region26: #{densevm_forward.1} parent=1 // pred_check
      _
    $region27: #{densevm_forward.1} parent=1 // pred_check_branch
      %67 = sbr.rel (0) target = $region29
    $region28: #{densevm_forward.1} parent=1 // pred_region
      _
    $region29: #{densevm_forward.1} parent=1 // pred_fallthru
      _
    // Predicated region
    $region30: #{densevm_forward.1} parent=1 // pred_check
      _
    $region31: #{densevm_forward.1} parent=1 // pred_check_branch
      %69 = sbr.rel (0) target = $region33
    $region32: #{densevm_forward.1} parent=1 // pred_region
      %s71 = ssub.s32 1024, 1024
      %72 = vsyncadd [#allocation9], %s71
      %s73 = sshll.u32 [#allocation10], 4
      %s74 = int_to_ptr.vmem [resolvable:$true] %s73
      %79 = dma.hbm_to_vmem [thread:$0]  %s7, 1024, %s74, [#allocation9], 64, 64, 4
    $region33: #{densevm_forward.1} parent=1 // pred_fallthru
      _
    // Predicated region
    $region34: #{densevm_forward.1} parent=1 // pred_check
      _
    $region35: #{densevm_forward.1} parent=1 // pred_check_branch
      %81 = sbr.rel (0) target = $region37
    $region36: #{densevm_forward.1} parent=1 // pred_region
      _
    $region37: #{densevm_forward.1} parent=1 // pred_fallthru
      _
    // Predicated region
    $region38: #{densevm_forward.1} parent=1 // pred_check
      _
    $region39: #{densevm_forward.1} parent=1 // pred_check_branch
      %83 = sbr.rel (0) target = $region41
    $region40: #{densevm_forward.1} parent=1 // pred_region
      %84 = dma.done [#allocation4], 16
    $region41: #{densevm_forward.1} parent=1 // pred_fallthru
      _
    // Predicated region
    $region42: #{densevm_forward.1} parent=1 // pred_check
      _
    $region43: #{densevm_forward.1} parent=1 // pred_check_branch
      %86 = sbr.rel (0) target = $region45
    $region44: #{densevm_forward.1} parent=1 // pred_region
      %87 = dma.done [#allocation6], 16
    $region45: #{densevm_forward.1} parent=1 // pred_fallthru
      _
    // Predicated region
    $region46: #{densevm_forward.1} parent=1 // pred_check
      _
    $region47: #{densevm_forward.1} parent=1 // pred_check_branch
      %89 = sbr.rel (0) target = $region49
    $region48: #{densevm_forward.1} parent=1 // pred_region
      %90 = dma.done [#allocation3], 2048
    $region49: #{densevm_forward.1} parent=1 // pred_fallthru
      _
    // Predicated region
    $region50: #{densevm_forward.1} parent=1 // pred_check
      _
    $region51: #{densevm_forward.1} parent=1 // pred_check_branch
      %92 = sbr.rel (0) target = $region53
    $region52: #{densevm_forward.1} parent=1 // pred_region
      %93 = dma.done [#allocation9], 2048
    $region53: #{densevm_forward.1} parent=1 // pred_fallthru
      _
    // Predicated region
    $region54: #{densevm_forward.1} parent=1 // pred_check
      _
    $region55: #{densevm_forward.1} parent=1 // pred_check_branch
      %95 = sbr.rel (0) target = $region57
    $region56: #{densevm_forward.1} parent=1 // pred_region
      %96 = dma.done [#allocation9], 1024
    $region57: #{densevm_forward.1} parent=1 // pred_fallthru
      _
    %97 = sfence
    %v99 = vld [vmem:[%s2] sm:$0xff]
    %v100 = vld [vmem:[%s2 + $0x8] sm:$0xff]
    %v101 = vld [vmem:[%s2 + $0x10] sm:$0xff]
    %v102 = vld [vmem:[%s2 + $0x18] sm:$0xff]
    %v103 = vld [vmem:[%s2 + $0x20] sm:$0xff]
    %v104 = vld [vmem:[%s2 + $0x28] sm:$0xff]
    %v105 = vld [vmem:[%s2 + $0x30] sm:$0xff]
    %v106 = vld [vmem:[%s2 + $0x38] sm:$0xff]
    %v107 = vld [vmem:[%s2 + $0x40] sm:$0xff]
    %v108 = vld [vmem:[%s2 + $0x48] sm:$0xff]
    %v109 = vld [vmem:[%s2 + $0x50] sm:$0xff]
    %v110 = vld [vmem:[%s2 + $0x58] sm:$0xff]
    %v111 = vld [vmem:[%s2 + $0x60] sm:$0xff]
    %v112 = vld [vmem:[%s2 + $0x68] sm:$0xff]
    %v113 = vld [vmem:[%s2 + $0x70] sm:$0xff]
    %v114 = vld [vmem:[%s2 + $0x78] sm:$0xff]
    %v115 = vand.u32 2147483647, %v99
    %vm116 = vcmp.le.f32.partialorder %v115, 0.7853982
    %vm117 = vcmp.lt.s32.totalorder %v99, 0
    %v118 = vand.u32 %v99, 2139095040
    %v119 = vshrl.u32 %v118, 23
    %v120 = vsub.s32 %v119, 127
    %v121 = vand.u32 2147483647, %v99
    %v122 = vand.u32 %v121, 8388607
    %v123 = vor.u32 %v122, 8388608
    %v124 = vsub.s32 0, %v123
    %v125 = vadd.s32 %v120, 1
    %vm126 = vcmp.gt.s32.totalorder %v125, 0
    %v127 = vsel %vm126, %v125, 0
    %v128 = vshrl.u32 %v127, 5
    %v129 = vand.u32 %v127, 31
    %v130 = vsub.s32 32, %v129
    %v131 = vshrl.u32 683565275, %v130
    %v132 = vshll.u32 683565275, %v129
    %v133 = vshrl.u32 2475754826, %v130
    %v134 = vor.u32 %v132, %v133
    %v135 = vshll.u32 2475754826, %v129
    %v136 = vshrl.u32 2131351028, %v130
    %v137 = vor.u32 %v135, %v136
    %v138 = vshll.u32 2131351028, %v129
    %v139 = vshrl.u32 2102212464, %v130
    %v140 = vor.u32 %v138, %v139
    %v141 = vshll.u32 2102212464, %v129
    %v142 = vshrl.u32 920167782, %v130
    %v143 = vor.u32 %v141, %v142
    %v144 = vshll.u32 920167782, %v129
    %v145 = vshrl.u32 1326507024, %v130
    %v146 = vor.u32 %v144, %v145
    %vm147 = vcmp.lt.s32.totalorder %v128, 1
    %vm148 = vcmp.lt.s32.totalorder %v128, 2
    %vm149 = vcmp.lt.s32.totalorder %v128, 3
    %vm150 = vcmp.lt.s32.totalorder %v128, 4
    %v151 = vsel %vm147, %v131, %v134
    %v152 = vsel %vm150, %v140, 2102212464
    %v153 = vsel %vm149, %v137, %v152
    %v154 = vsel %vm148, %v151, %v153
    %v155 = vsel %vm147, %v134, %v137
    %v156 = vsel %vm150, %v143, 920167782
    %v157 = vsel %vm149, %v140, %v156
    %v158 = vsel %vm148, %v155, %v157
    %v159 = vsel %vm147, %v137, %v140
    %v160 = vsel %vm150, %v146, 1326507024
    %v161 = vsel %vm149, %v143, %v160
    %v162 = vsel %vm148, %v159, %v161
    %v163 = vshll.u32 %v123, 8
    %v164 = vmul.u32.u64.compose %v163, %v162
    %v165 = vextract.low.u32 %v164
    %v166 = vextract.high.u32 %v164
    %v167 = vmul.u32.u64.compose %v163, %v158
    %v168 = vextract.low.u32 %v167
    %v169 = vextract.high.u32 %v167
    %v170 = vmul.u32 %v163, %v154
    %v171 = vadd.s32 %v166, %v168
    %vm172 = vc.u32 %v166, %v168
    %v173 = vadd.s32 %v169, 1
    %v174 = vsel %vm172, %v173, %v169
    %v175 = vadd.s32 %v170, %v174
    %v176 = vadd.s32 %v175, 536870912
    %v177 = vshrl.u32 %v176, 30
    %v178 = vshll.u32 %v177, 30
    %v179 = vsub.s32 %v175, %v178
    %vm180 = vcmp.lt.s32.totalorder %v179, 0
    %v181 = vsub.s32 0, %v179
    %v182 = vsel %vm180, %v181, %v179
    %v183 = vclz %v182
    %v184 = vsub.s32 %v183, 2
    %vm185 = vcmp.gt.s32.totalorder 0, %v184
    %v186 = vsel %vm185, 0, %v184
    %v187 = vsub.s32 32, %v186
    %v188 = vshll.u32 %v179, %v186
    %v189 = vshrl.u32 %v171, %v187
    %v190 = vor.u32 %v188, %v189
    %v191 = vsub.s32 4294967266, %v186
    %v192 = vadd.s32 %v191, 127
    %v193 = vshll.u32 %v192, 23
    %v194 = vor.u32 4788187, %v193
    %v195 = vand.u32 2147483647, %v194
    %v197 = vcvt.s32.f32 %v190
    %v198 = vmul.f32 %v197, %v195
    %v199 = vxor.u32 %v198, 2147483648
    %v200 = vsel %vm117, %v199, %v198
    %v201 = vsub.s32 4, %v177
    %v202 = vsel %vm117, %v201, %v177
    %v203 = vsel %vm116, %v99, %v200
    %v204 = vsel %vm116, 0, %v202
    %v205 = vcosq.f32.pop %v203
    %v206 = vsinq.f32.pop %v203
    %vm207 = vweird.f32 %v99
    %v208 = vadd.s32 %v204, 3
    %v209 = vand.u32 %v208, 3
    %vm210 = vcmp.lt.s32.totalorder %v209, 2
    %vm211 = vcmp.eq.s32.totalorder %v209, 0
    %v212 = vxor.u32 %v206, 2147483648
    %v213 = vsel %vm211, %v205, %v212
    %vm214 = vcmp.eq.s32.totalorder %v209, 2
    %v215 = vxor.u32 %v205, 2147483648
    %v216 = vsel %vm214, %v215, %v206
    %v217 = vsel %vm210, %v213, %v216
    %v218 = vsel %vm207, nan, %v217
    %v219 = vand.u32 2147483647, %v100
    %vm220 = vcmp.le.f32.partialorder %v219, 0.7853982
    %vm221 = vcmp.lt.s32.totalorder %v100, 0
    %v222 = vand.u32 %v100, 2139095040
    %v223 = vshrl.u32 %v222, 23
    %v224 = vsub.s32 %v223, 127
    %v225 = vand.u32 2147483647, %v100
    %v226 = vand.u32 %v225, 8388607
    %v227 = vor.u32 %v226, 8388608
    %v228 = vsub.s32 0, %v227
    %v229 = vadd.s32 %v224, 1
    %vm230 = vcmp.gt.s32.totalorder %v229, 0
    %v231 = vsel %vm230, %v229, 0
    %v232 = vshrl.u32 %v231, 5
    %v233 = vand.u32 %v231, 31
    %v234 = vsub.s32 32, %v233
    %v235 = vshrl.u32 683565275, %v234
    %v236 = vshll.u32 683565275, %v233
    %v237 = vshrl.u32 2475754826, %v234
    %v238 = vor.u32 %v236, %v237
    %v239 = vshll.u32 2475754826, %v233
    %v240 = vshrl.u32 2131351028, %v234
    %v241 = vor.u32 %v239, %v240
    %v242 = vshll.u32 2131351028, %v233
    %v243 = vshrl.u32 2102212464, %v234
    %v244 = vor.u32 %v242, %v243
    %v245 = vshll.u32 2102212464, %v233
    %v246 = vshrl.u32 920167782, %v234
    %v247 = vor.u32 %v245, %v246
    %v248 = vshll.u32 920167782, %v233
    %v249 = vshrl.u32 1326507024, %v234
    %v250 = vor.u32 %v248, %v249
    %vm251 = vcmp.lt.s32.totalorder %v232, 1
    %vm252 = vcmp.lt.s32.totalorder %v232, 2
    %vm253 = vcmp.lt.s32.totalorder %v232, 3
    %vm254 = vcmp.lt.s32.totalorder %v232, 4
    %v255 = vsel %vm251, %v235, %v238
    %v256 = vsel %vm254, %v244, 2102212464
    %v257 = vsel %vm253, %v241, %v256
    %v258 = vsel %vm252, %v255, %v257
    %v259 = vsel %vm251, %v238, %v241
    %v260 = vsel %vm254, %v247, 920167782
    %v261 = vsel %vm253, %v244, %v260
    %v262 = vsel %vm252, %v259, %v261
    %v263 = vsel %vm251, %v241, %v244
    %v264 = vsel %vm254, %v250, 1326507024
    %v265 = vsel %vm253, %v247, %v264
    %v266 = vsel %vm252, %v263, %v265
    %v267 = vshll.u32 %v227, 8
    %v268 = vmul.u32.u64.compose %v267, %v266
    %v269 = vextract.low.u32 %v268
    %v270 = vextract.high.u32 %v268
    %v271 = vmul.u32.u64.compose %v267, %v262
    %v272 = vextract.low.u32 %v271
    %v273 = vextract.high.u32 %v271
    %v274 = vmul.u32 %v267, %v258
    %v275 = vadd.s32 %v270, %v272
    %vm276 = vc.u32 %v270, %v272
    %v277 = vadd.s32 %v273, 1
    %v278 = vsel %vm276, %v277, %v273
    %v279 = vadd.s32 %v274, %v278
    %v280 = vadd.s32 %v279, 536870912
    %v281 = vshrl.u32 %v280, 30
    %v282 = vshll.u32 %v281, 30
    %v283 = vsub.s32 %v279, %v282
    %vm284 = vcmp.lt.s32.totalorder %v283, 0
    %v285 = vsub.s32 0, %v283
    %v286 = vsel %vm284, %v285, %v283
    %v287 = vclz %v286
    %v288 = vsub.s32 %v287, 2
    %vm289 = vcmp.gt.s32.totalorder 0, %v288
    %v290 = vsel %vm289, 0, %v288
    %v291 = vsub.s32 32, %v290
    %v292 = vshll.u32 %v283, %v290
    %v293 = vshrl.u32 %v275, %v291
    %v294 = vor.u32 %v292, %v293
    %v295 = vsub.s32 4294967266, %v290
    %v296 = vadd.s32 %v295, 127
    %v297 = vshll.u32 %v296, 23
    %v298 = vor.u32 4788187, %v297
    %v299 = vand.u32 2147483647, %v298
    %v301 = vcvt.s32.f32 %v294
    %v302 = vmul.f32 %v301, %v299
    %v303 = vxor.u32 %v302, 2147483648
    %v304 = vsel %vm221, %v303, %v302
    %v305 = vsub.s32 4, %v281
    %v306 = vsel %vm221, %v305, %v281
    %v307 = vsel %vm220, %v100, %v304
    %v308 = vsel %vm220, 0, %v306
    %v309 = vcosq.f32.pop %v307
    %v310 = vsinq.f32.pop %v307
    %vm311 = vweird.f32 %v100
    %v312 = vadd.s32 %v308, 3
    %v313 = vand.u32 %v312, 3
    %vm314 = vcmp.lt.s32.totalorder %v313, 2
    %vm315 = vcmp.eq.s32.totalorder %v313, 0
    %v316 = vxor.u32 %v310, 2147483648
    %v317 = vsel %vm315, %v309, %v316
    %vm318 = vcmp.eq.s32.totalorder %v313, 2
    %v319 = vxor.u32 %v309, 2147483648
    %v320 = vsel %vm318, %v319, %v310
    %v321 = vsel %vm314, %v317, %v320
    %v322 = vsel %vm311, nan, %v321
    %v323 = vand.u32 2147483647, %v101
    %vm324 = vcmp.le.f32.partialorder %v323, 0.7853982
    %vm325 = vcmp.lt.s32.totalorder %v101, 0
    %v326 = vand.u32 %v101, 2139095040
    %v327 = vshrl.u32 %v326, 23
    %v328 = vsub.s32 %v327, 127
    %v329 = vand.u32 2147483647, %v101
    %v330 = vand.u32 %v329, 8388607
    %v331 = vor.u32 %v330, 8388608
    %v332 = vsub.s32 0, %v331
    %v333 = vadd.s32 %v328, 1
    %vm334 = vcmp.gt.s32.totalorder %v333, 0
    %v335 = vsel %vm334, %v333, 0
    %v336 = vshrl.u32 %v335, 5
    %v337 = vand.u32 %v335, 31
    %v338 = vsub.s32 32, %v337
    %v339 = vshrl.u32 683565275, %v338
    %v340 = vshll.u32 683565275, %v337
    %v341 = vshrl.u32 2475754826, %v338
    %v342 = vor.u32 %v340, %v341
    %v343 = vshll.u32 2475754826, %v337
    %v344 = vshrl.u32 2131351028, %v338
    %v345 = vor.u32 %v343, %v344
    %v346 = vshll.u32 2131351028, %v337
    %v347 = vshrl.u32 2102212464, %v338
    %v348 = vor.u32 %v346, %v347
    %v349 = vshll.u32 2102212464, %v337
    %v350 = vshrl.u32 920167782, %v338
    %v351 = vor.u32 %v349, %v350
    %v352 = vshll.u32 920167782, %v337
    %v353 = vshrl.u32 1326507024, %v338
    %v354 = vor.u32 %v352, %v353
    %vm355 = vcmp.lt.s32.totalorder %v336, 1
    %vm356 = vcmp.lt.s32.totalorder %v336, 2
    %vm357 = vcmp.lt.s32.totalorder %v336, 3
    %vm358 = vcmp.lt.s32.totalorder %v336, 4
    %v359 = vsel %vm355, %v339, %v342
    %v360 = vsel %vm358, %v348, 2102212464
    %v361 = vsel %vm357, %v345, %v360
    %v362 = vsel %vm356, %v359, %v361
    %v363 = vsel %vm355, %v342, %v345
    %v364 = vsel %vm358, %v351, 920167782
    %v365 = vsel %vm357, %v348, %v364
    %v366 = vsel %vm356, %v363, %v365
    %v367 = vsel %vm355, %v345, %v348
    %v368 = vsel %vm358, %v354, 1326507024
    %v369 = vsel %vm357, %v351, %v368
    %v370 = vsel %vm356, %v367, %v369
    %v371 = vshll.u32 %v331, 8
    %v372 = vmul.u32.u64.compose %v371, %v370
    %v373 = vextract.low.u32 %v372
    %v374 = vextract.high.u32 %v372
    %v375 = vmul.u32.u64.compose %v371, %v366
    %v376 = vextract.low.u32 %v375
    %v377 = vextract.high.u32 %v375
    %v378 = vmul.u32 %v371, %v362
    %v379 = vadd.s32 %v374, %v376
    %vm380 = vc.u32 %v374, %v376
    %v381 = vadd.s32 %v377, 1
    %v382 = vsel %vm380, %v381, %v377
    %v383 = vadd.s32 %v378, %v382
    %v384 = vadd.s32 %v383, 536870912
    %v385 = vshrl.u32 %v384, 30
    %v386 = vshll.u32 %v385, 30
    %v387 = vsub.s32 %v383, %v386
    %vm388 = vcmp.lt.s32.totalorder %v387, 0
    %v389 = vsub.s32 0, %v387
    %v390 = vsel %vm388, %v389, %v387
    %v391 = vclz %v390
    %v392 = vsub.s32 %v391, 2
    %vm393 = vcmp.gt.s32.totalorder 0, %v392
    %v394 = vsel %vm393, 0, %v392
    %v395 = vsub.s32 32, %v394
    %v396 = vshll.u32 %v387, %v394
    %v397 = vshrl.u32 %v379, %v395
    %v398 = vor.u32 %v396, %v397
    %v399 = vsub.s32 4294967266, %v394
    %v400 = vadd.s32 %v399, 127
    %v401 = vshll.u32 %v400, 23
    %v402 = vor.u32 4788187, %v401
    %v403 = vand.u32 2147483647, %v402
    %v405 = vcvt.s32.f32 %v398
    %v406 = vmul.f32 %v405, %v403
    %v407 = vxor.u32 %v406, 2147483648
    %v408 = vsel %vm325, %v407, %v406
    %v409 = vsub.s32 4, %v385
    %v410 = vsel %vm325, %v409, %v385
    %v411 = vsel %vm324, %v101, %v408
    %v412 = vsel %vm324, 0, %v410
    %v413 = vcosq.f32.pop %v411
    %v414 = vsinq.f32.pop %v411
    %vm415 = vweird.f32 %v101
    %v416 = vadd.s32 %v412, 3
    %v417 = vand.u32 %v416, 3
    %vm418 = vcmp.lt.s32.totalorder %v417, 2
    %vm419 = vcmp.eq.s32.totalorder %v417, 0
    %v420 = vxor.u32 %v414, 2147483648
    %v421 = vsel %vm419, %v413, %v420
    %vm422 = vcmp.eq.s32.totalorder %v417, 2
    %v423 = vxor.u32 %v413, 2147483648
    %v424 = vsel %vm422, %v423, %v414
    %v425 = vsel %vm418, %v421, %v424
    %v426 = vsel %vm415, nan, %v425
    %v427 = vand.u32 2147483647, %v102
    %vm428 = vcmp.le.f32.partialorder %v427, 0.7853982
    %vm429 = vcmp.lt.s32.totalorder %v102, 0
    %v430 = vand.u32 %v102, 2139095040
    %v431 = vshrl.u32 %v430, 23
    %v432 = vsub.s32 %v431, 127
    %v433 = vand.u32 2147483647, %v102
    %v434 = vand.u32 %v433, 8388607
    %v435 = vor.u32 %v434, 8388608
    %v436 = vsub.s32 0, %v435
    %v437 = vadd.s32 %v432, 1
    %vm438 = vcmp.gt.s32.totalorder %v437, 0
    %v439 = vsel %vm438, %v437, 0
    %v440 = vshrl.u32 %v439, 5
    %v441 = vand.u32 %v439, 31
    %v442 = vsub.s32 32, %v441
    %v443 = vshrl.u32 683565275, %v442
    %v444 = vshll.u32 683565275, %v441
    %v445 = vshrl.u32 2475754826, %v442
    %v446 = vor.u32 %v444, %v445
    %v447 = vshll.u32 2475754826, %v441
    %v448 = vshrl.u32 2131351028, %v442
    %v449 = vor.u32 %v447, %v448
    %v450 = vshll.u32 2131351028, %v441
    %v451 = vshrl.u32 2102212464, %v442
    %v452 = vor.u32 %v450, %v451
    %v453 = vshll.u32 2102212464, %v441
    %v454 = vshrl.u32 920167782, %v442
    %v455 = vor.u32 %v453, %v454
    %v456 = vshll.u32 920167782, %v441
    %v457 = vshrl.u32 1326507024, %v442
    %v458 = vor.u32 %v456, %v457
    %vm459 = vcmp.lt.s32.totalorder %v440, 1
    %vm460 = vcmp.lt.s32.totalorder %v440, 2
    %vm461 = vcmp.lt.s32.totalorder %v440, 3
    %vm462 = vcmp.lt.s32.totalorder %v440, 4
    %v463 = vsel %vm459, %v443, %v446
    %v464 = vsel %vm462, %v452, 2102212464
    %v465 = vsel %vm461, %v449, %v464
    %v466 = vsel %vm460, %v463, %v465
    %v467 = vsel %vm459, %v446, %v449
    %v468 = vsel %vm462, %v455, 920167782
    %v469 = vsel %vm461, %v452, %v468
    %v470 = vsel %vm460, %v467, %v469
    %v471 = vsel %vm459, %v449, %v452
    %v472 = vsel %vm462, %v458, 1326507024
    %v473 = vsel %vm461, %v455, %v472
    %v474 = vsel %vm460, %v471, %v473
    %v475 = vshll.u32 %v435, 8
    %v476 = vmul.u32.u64.compose %v475, %v474
    %v477 = vextract.low.u32 %v476
    %v478 = vextract.high.u32 %v476
    %v479 = vmul.u32.u64.compose %v475, %v470
    %v480 = vextract.low.u32 %v479
    %v481 = vextract.high.u32 %v479
    %v482 = vmul.u32 %v475, %v466
    %v483 = vadd.s32 %v478, %v480
    %vm484 = vc.u32 %v478, %v480
    %v485 = vadd.s32 %v481, 1
    %v486 = vsel %vm484, %v485, %v481
    %v487 = vadd.s32 %v482, %v486
    %v488 = vadd.s32 %v487, 536870912
    %v489 = vshrl.u32 %v488, 30
    %v490 = vshll.u32 %v489, 30
    %v491 = vsub.s32 %v487, %v490
    %vm492 = vcmp.lt.s32.totalorder %v491, 0
    %v493 = vsub.s32 0, %v491
    %v494 = vsel %vm492, %v493, %v491
    %v495 = vclz %v494
    %v496 = vsub.s32 %v495, 2
    %vm497 = vcmp.gt.s32.totalorder 0, %v496
    %v498 = vsel %vm497, 0, %v496
    %v499 = vsub.s32 32, %v498
    %v500 = vshll.u32 %v491, %v498
    %v501 = vshrl.u32 %v483, %v499
    %v502 = vor.u32 %v500, %v501
    %v503 = vsub.s32 4294967266, %v498
    %v504 = vadd.s32 %v503, 127
    %v505 = vshll.u32 %v504, 23
    %v506 = vor.u32 4788187, %v505
    %v507 = vand.u32 2147483647, %v506
    %v509 = vcvt.s32.f32 %v502
    %v510 = vmul.f32 %v509, %v507
    %v511 = vxor.u32 %v510, 2147483648
    %v512 = vsel %vm429, %v511, %v510
    %v513 = vsub.s32 4, %v489
    %v514 = vsel %vm429, %v513, %v489
    %v515 = vsel %vm428, %v102, %v512
    %v516 = vsel %vm428, 0, %v514
    %v517 = vcosq.f32.pop %v515
    %v518 = vsinq.f32.pop %v515
    %vm519 = vweird.f32 %v102
    %v520 = vadd.s32 %v516, 3
    %v521 = vand.u32 %v520, 3
    %vm522 = vcmp.lt.s32.totalorder %v521, 2
    %vm523 = vcmp.eq.s32.totalorder %v521, 0
    %v524 = vxor.u32 %v518, 2147483648
    %v525 = vsel %vm523, %v517, %v524
    %vm526 = vcmp.eq.s32.totalorder %v521, 2
    %v527 = vxor.u32 %v517, 2147483648
    %v528 = vsel %vm526, %v527, %v518
    %v529 = vsel %vm522, %v525, %v528
    %v530 = vsel %vm519, nan, %v529
    %v531 = vand.u32 2147483647, %v103
    %vm532 = vcmp.le.f32.partialorder %v531, 0.7853982
    %vm533 = vcmp.lt.s32.totalorder %v103, 0
    %v534 = vand.u32 %v103, 2139095040
    %v535 = vshrl.u32 %v534, 23
    %v536 = vsub.s32 %v535, 127
    %v537 = vand.u32 2147483647, %v103
    %v538 = vand.u32 %v537, 8388607
    %v539 = vor.u32 %v538, 8388608
    %v540 = vsub.s32 0, %v539
    %v541 = vadd.s32 %v536, 1
    %vm542 = vcmp.gt.s32.totalorder %v541, 0
    %v543 = vsel %vm542, %v541, 0
    %v544 = vshrl.u32 %v543, 5
    %v545 = vand.u32 %v543, 31
    %v546 = vsub.s32 32, %v545
    %v547 = vshrl.u32 683565275, %v546
    %v548 = vshll.u32 683565275, %v545
    %v549 = vshrl.u32 2475754826, %v546
    %v550 = vor.u32 %v548, %v549
    %v551 = vshll.u32 2475754826, %v545
    %v552 = vshrl.u32 2131351028, %v546
    %v553 = vor.u32 %v551, %v552
    %v554 = vshll.u32 2131351028, %v545
    %v555 = vshrl.u32 2102212464, %v546
    %v556 = vor.u32 %v554, %v555
    %v557 = vshll.u32 2102212464, %v545
    %v558 = vshrl.u32 920167782, %v546
    %v559 = vor.u32 %v557, %v558
    %v560 = vshll.u32 920167782, %v545
    %v561 = vshrl.u32 1326507024, %v546
    %v562 = vor.u32 %v560, %v561
    %vm563 = vcmp.lt.s32.totalorder %v544, 1
    %vm564 = vcmp.lt.s32.totalorder %v544, 2
    %vm565 = vcmp.lt.s32.totalorder %v544, 3
    %vm566 = vcmp.lt.s32.totalorder %v544, 4
    %v567 = vsel %vm563, %v547, %v550
    %v568 = vsel %vm566, %v556, 2102212464
    %v569 = vsel %vm565, %v553, %v568
    %v570 = vsel %vm564, %v567, %v569
    %v571 = vsel %vm563, %v550, %v553
    %v572 = vsel %vm566, %v559, 920167782
    %v573 = vsel %vm565, %v556, %v572
    %v574 = vsel %vm564, %v571, %v573
    %v575 = vsel %vm563, %v553, %v556
    %v576 = vsel %vm566, %v562, 1326507024
    %v577 = vsel %vm565, %v559, %v576
    %v578 = vsel %vm564, %v575, %v577
    %v579 = vshll.u32 %v539, 8
    %v580 = vmul.u32.u64.compose %v579, %v578
    %v581 = vextract.low.u32 %v580
    %v582 = vextract.high.u32 %v580
    %v583 = vmul.u32.u64.compose %v579, %v574
    %v584 = vextract.low.u32 %v583
    %v585 = vextract.high.u32 %v583
    %v586 = vmul.u32 %v579, %v570
    %v587 = vadd.s32 %v582, %v584
    %vm588 = vc.u32 %v582, %v584
    %v589 = vadd.s32 %v585, 1
    %v590 = vsel %vm588, %v589, %v585
    %v591 = vadd.s32 %v586, %v590
    %v592 = vadd.s32 %v591, 536870912
    %v593 = vshrl.u32 %v592, 30
    %v594 = vshll.u32 %v593, 30
    %v595 = vsub.s32 %v591, %v594
    %vm596 = vcmp.lt.s32.totalorder %v595, 0
    %v597 = vsub.s32 0, %v595
    %v598 = vsel %vm596, %v597, %v595
    %v599 = vclz %v598
    %v600 = vsub.s32 %v599, 2
    %vm601 = vcmp.gt.s32.totalorder 0, %v600
    %v602 = vsel %vm601, 0, %v600
    %v603 = vsub.s32 32, %v602
    %v604 = vshll.u32 %v595, %v602
    %v605 = vshrl.u32 %v587, %v603
    %v606 = vor.u32 %v604, %v605
    %v607 = vsub.s32 4294967266, %v602
    %v608 = vadd.s32 %v607, 127
    %v609 = vshll.u32 %v608, 23
    %v610 = vor.u32 4788187, %v609
    %v611 = vand.u32 2147483647, %v610
    %v613 = vcvt.s32.f32 %v606
    %v614 = vmul.f32 %v613, %v611
    %v615 = vxor.u32 %v614, 2147483648
    %v616 = vsel %vm533, %v615, %v614
    %v617 = vsub.s32 4, %v593
    %v618 = vsel %vm533, %v617, %v593
    %v619 = vsel %vm532, %v103, %v616
    %v620 = vsel %vm532, 0, %v618
    %v621 = vcosq.f32.pop %v619
    %v622 = vsinq.f32.pop %v619
    %vm623 = vweird.f32 %v103
    %v624 = vadd.s32 %v620, 3
    %v625 = vand.u32 %v624, 3
    %vm626 = vcmp.lt.s32.totalorder %v625, 2
    %vm627 = vcmp.eq.s32.totalorder %v625, 0
    %v628 = vxor.u32 %v622, 2147483648
    %v629 = vsel %vm627, %v621, %v628
    %vm630 = vcmp.eq.s32.totalorder %v625, 2
    %v631 = vxor.u32 %v621, 2147483648
    %v632 = vsel %vm630, %v631, %v622
    %v633 = vsel %vm626, %v629, %v632
    %v634 = vsel %vm623, nan, %v633
    %v635 = vand.u32 2147483647, %v104
    %vm636 = vcmp.le.f32.partialorder %v635, 0.7853982
    %vm637 = vcmp.lt.s32.totalorder %v104, 0
    %v638 = vand.u32 %v104, 2139095040
    %v639 = vshrl.u32 %v638, 23
    %v640 = vsub.s32 %v639, 127
    %v641 = vand.u32 2147483647, %v104
    %v642 = vand.u32 %v641, 8388607
    %v643 = vor.u32 %v642, 8388608
    %v644 = vsub.s32 0, %v643
    %v645 = vadd.s32 %v640, 1
    %vm646 = vcmp.gt.s32.totalorder %v645, 0
    %v647 = vsel %vm646, %v645, 0
    %v648 = vshrl.u32 %v647, 5
    %v649 = vand.u32 %v647, 31
    %v650 = vsub.s32 32, %v649
    %v651 = vshrl.u32 683565275, %v650
    %v652 = vshll.u32 683565275, %v649
    %v653 = vshrl.u32 2475754826, %v650
    %v654 = vor.u32 %v652, %v653
    %v655 = vshll.u32 2475754826, %v649
    %v656 = vshrl.u32 2131351028, %v650
    %v657 = vor.u32 %v655, %v656
    %v658 = vshll.u32 2131351028, %v649
    %v659 = vshrl.u32 2102212464, %v650
    %v660 = vor.u32 %v658, %v659
    %v661 = vshll.u32 2102212464, %v649
    %v662 = vshrl.u32 920167782, %v650
    %v663 = vor.u32 %v661, %v662
    %v664 = vshll.u32 920167782, %v649
    %v665 = vshrl.u32 1326507024, %v650
    %v666 = vor.u32 %v664, %v665
    %vm667 = vcmp.lt.s32.totalorder %v648, 1
    %vm668 = vcmp.lt.s32.totalorder %v648, 2
    %vm669 = vcmp.lt.s32.totalorder %v648, 3
    %vm670 = vcmp.lt.s32.totalorder %v648, 4
    %v671 = vsel %vm667, %v651, %v654
    %v672 = vsel %vm670, %v660, 2102212464
    %v673 = vsel %vm669, %v657, %v672
    %v674 = vsel %vm668, %v671, %v673
    %v675 = vsel %vm667, %v654, %v657
    %v676 = vsel %vm670, %v663, 920167782
    %v677 = vsel %vm669, %v660, %v676
    %v678 = vsel %vm668, %v675, %v677
    %v679 = vsel %vm667, %v657, %v660
    %v680 = vsel %vm670, %v666, 1326507024
    %v681 = vsel %vm669, %v663, %v680
    %v682 = vsel %vm668, %v679, %v681
    %v683 = vshll.u32 %v643, 8
    %v684 = vmul.u32.u64.compose %v683, %v682
    %v685 = vextract.low.u32 %v684
    %v686 = vextract.high.u32 %v684
    %v687 = vmul.u32.u64.compose %v683, %v678
    %v688 = vextract.low.u32 %v687
    %v689 = vextract.high.u32 %v687
    %v690 = vmul.u32 %v683, %v674
    %v691 = vadd.s32 %v686, %v688
    %vm692 = vc.u32 %v686, %v688
    %v693 = vadd.s32 %v689, 1
    %v694 = vsel %vm692, %v693, %v689
    %v695 = vadd.s32 %v690, %v694
    %v696 = vadd.s32 %v695, 536870912
    %v697 = vshrl.u32 %v696, 30
    %v698 = vshll.u32 %v697, 30
    %v699 = vsub.s32 %v695, %v698
    %vm700 = vcmp.lt.s32.totalorder %v699, 0
    %v701 = vsub.s32 0, %v699
    %v702 = vsel %vm700, %v701, %v699
    %v703 = vclz %v702
    %v704 = vsub.s32 %v703, 2
    %vm705 = vcmp.gt.s32.totalorder 0, %v704
    %v706 = vsel %vm705, 0, %v704
    %v707 = vsub.s32 32, %v706
    %v708 = vshll.u32 %v699, %v706
    %v709 = vshrl.u32 %v691, %v707
    %v710 = vor.u32 %v708, %v709
    %v711 = vsub.s32 4294967266, %v706
    %v712 = vadd.s32 %v711, 127
    %v713 = vshll.u32 %v712, 23
    %v714 = vor.u32 4788187, %v713
    %v715 = vand.u32 2147483647, %v714
    %v717 = vcvt.s32.f32 %v710
    %v718 = vmul.f32 %v717, %v715
    %v719 = vxor.u32 %v718, 2147483648
    %v720 = vsel %vm637, %v719, %v718
    %v721 = vsub.s32 4, %v697
    %v722 = vsel %vm637, %v721, %v697
    %v723 = vsel %vm636, %v104, %v720
    %v724 = vsel %vm636, 0, %v722
    %v725 = vcosq.f32.pop %v723
    %v726 = vsinq.f32.pop %v723
    %vm727 = vweird.f32 %v104
    %v728 = vadd.s32 %v724, 3
    %v729 = vand.u32 %v728, 3
    %vm730 = vcmp.lt.s32.totalorder %v729, 2
    %vm731 = vcmp.eq.s32.totalorder %v729, 0
    %v732 = vxor.u32 %v726, 2147483648
    %v733 = vsel %vm731, %v725, %v732
    %vm734 = vcmp.eq.s32.totalorder %v729, 2
    %v735 = vxor.u32 %v725, 2147483648
    %v736 = vsel %vm734, %v735, %v726
    %v737 = vsel %vm730, %v733, %v736
    %v738 = vsel %vm727, nan, %v737
    %v739 = vand.u32 2147483647, %v105
    %vm740 = vcmp.le.f32.partialorder %v739, 0.7853982
    %vm741 = vcmp.lt.s32.totalorder %v105, 0
    %v742 = vand.u32 %v105, 2139095040
    %v743 = vshrl.u32 %v742, 23
    %v744 = vsub.s32 %v743, 127
    %v745 = vand.u32 2147483647, %v105
    %v746 = vand.u32 %v745, 8388607
    %v747 = vor.u32 %v746, 8388608
    %v748 = vsub.s32 0, %v747
    %v749 = vadd.s32 %v744, 1
    %vm750 = vcmp.gt.s32.totalorder %v749, 0
    %v751 = vsel %vm750, %v749, 0
    %v752 = vshrl.u32 %v751, 5
    %v753 = vand.u32 %v751, 31
    %v754 = vsub.s32 32, %v753
    %v755 = vshrl.u32 683565275, %v754
    %v756 = vshll.u32 683565275, %v753
    %v757 = vshrl.u32 2475754826, %v754
    %v758 = vor.u32 %v756, %v757
    %v759 = vshll.u32 2475754826, %v753
    %v760 = vshrl.u32 2131351028, %v754
    %v761 = vor.u32 %v759, %v760
    %v762 = vshll.u32 2131351028, %v753
    %v763 = vshrl.u32 2102212464, %v754
    %v764 = vor.u32 %v762, %v763
    %v765 = vshll.u32 2102212464, %v753
    %v766 = vshrl.u32 920167782, %v754
    %v767 = vor.u32 %v765, %v766
    %v768 = vshll.u32 920167782, %v753
    %v769 = vshrl.u32 1326507024, %v754
    %v770 = vor.u32 %v768, %v769
    %vm771 = vcmp.lt.s32.totalorder %v752, 1
    %vm772 = vcmp.lt.s32.totalorder %v752, 2
    %vm773 = vcmp.lt.s32.totalorder %v752, 3
    %vm774 = vcmp.lt.s32.totalorder %v752, 4
    %v775 = vsel %vm771, %v755, %v758
    %v776 = vsel %vm774, %v764, 2102212464
    %v777 = vsel %vm773, %v761, %v776
    %v778 = vsel %vm772, %v775, %v777
    %v779 = vsel %vm771, %v758, %v761
    %v780 = vsel %vm774, %v767, 920167782
    %v781 = vsel %vm773, %v764, %v780
    %v782 = vsel %vm772, %v779, %v781
    %v783 = vsel %vm771, %v761, %v764
    %v784 = vsel %vm774, %v770, 1326507024
    %v785 = vsel %vm773, %v767, %v784
    %v786 = vsel %vm772, %v783, %v785
    %v787 = vshll.u32 %v747, 8
    %v788 = vmul.u32.u64.compose %v787, %v786
    %v789 = vextract.low.u32 %v788
    %v790 = vextract.high.u32 %v788
    %v791 = vmul.u32.u64.compose %v787, %v782
    %v792 = vextract.low.u32 %v791
    %v793 = vextract.high.u32 %v791
    %v794 = vmul.u32 %v787, %v778
    %v795 = vadd.s32 %v790, %v792
    %vm796 = vc.u32 %v790, %v792
    %v797 = vadd.s32 %v793, 1
    %v798 = vsel %vm796, %v797, %v793
    %v799 = vadd.s32 %v794, %v798
    %v800 = vadd.s32 %v799, 536870912
    %v801 = vshrl.u32 %v800, 30
    %v802 = vshll.u32 %v801, 30
    %v803 = vsub.s32 %v799, %v802
    %vm804 = vcmp.lt.s32.totalorder %v803, 0
    %v805 = vsub.s32 0, %v803
    %v806 = vsel %vm804, %v805, %v803
    %v807 = vclz %v806
    %v808 = vsub.s32 %v807, 2
    %vm809 = vcmp.gt.s32.totalorder 0, %v808
    %v810 = vsel %vm809, 0, %v808
    %v811 = vsub.s32 32, %v810
    %v812 = vshll.u32 %v803, %v810
    %v813 = vshrl.u32 %v795, %v811
    %v814 = vor.u32 %v812, %v813
    %v815 = vsub.s32 4294967266, %v810
    %v816 = vadd.s32 %v815, 127
    %v817 = vshll.u32 %v816, 23
    %v818 = vor.u32 4788187, %v817
    %v819 = vand.u32 2147483647, %v818
    %v821 = vcvt.s32.f32 %v814
    %v822 = vmul.f32 %v821, %v819
    %v823 = vxor.u32 %v822, 2147483648
    %v824 = vsel %vm741, %v823, %v822
    %v825 = vsub.s32 4, %v801
    %v826 = vsel %vm741, %v825, %v801
    %v827 = vsel %vm740, %v105, %v824
    %v828 = vsel %vm740, 0, %v826
    %v829 = vcosq.f32.pop %v827
    %v830 = vsinq.f32.pop %v827
    %vm831 = vweird.f32 %v105
    %v832 = vadd.s32 %v828, 3
    %v833 = vand.u32 %v832, 3
    %vm834 = vcmp.lt.s32.totalorder %v833, 2
    %vm835 = vcmp.eq.s32.totalorder %v833, 0
    %v836 = vxor.u32 %v830, 2147483648
    %v837 = vsel %vm835, %v829, %v836
    %vm838 = vcmp.eq.s32.totalorder %v833, 2
    %v839 = vxor.u32 %v829, 2147483648
    %v840 = vsel %vm838, %v839, %v830
    %v841 = vsel %vm834, %v837, %v840
    %v842 = vsel %vm831, nan, %v841
    %v843 = vand.u32 2147483647, %v106
    %vm844 = vcmp.le.f32.partialorder %v843, 0.7853982
    %vm845 = vcmp.lt.s32.totalorder %v106, 0
    %v846 = vand.u32 %v106, 2139095040
    %v847 = vshrl.u32 %v846, 23
    %v848 = vsub.s32 %v847, 127
    %v849 = vand.u32 2147483647, %v106
    %v850 = vand.u32 %v849, 8388607
    %v851 = vor.u32 %v850, 8388608
    %v852 = vsub.s32 0, %v851
    %v853 = vadd.s32 %v848, 1
    %vm854 = vcmp.gt.s32.totalorder %v853, 0
    %v855 = vsel %vm854, %v853, 0
    %v856 = vshrl.u32 %v855, 5
    %v857 = vand.u32 %v855, 31
    %v858 = vsub.s32 32, %v857
    %v859 = vshrl.u32 683565275, %v858
    %v860 = vshll.u32 683565275, %v857
    %v861 = vshrl.u32 2475754826, %v858
    %v862 = vor.u32 %v860, %v861
    %v863 = vshll.u32 2475754826, %v857
    %v864 = vshrl.u32 2131351028, %v858
    %v865 = vor.u32 %v863, %v864
    %v866 = vshll.u32 2131351028, %v857
    %v867 = vshrl.u32 2102212464, %v858
    %v868 = vor.u32 %v866, %v867
    %v869 = vshll.u32 2102212464, %v857
    %v870 = vshrl.u32 920167782, %v858
    %v871 = vor.u32 %v869, %v870
    %v872 = vshll.u32 920167782, %v857
    %v873 = vshrl.u32 1326507024, %v858
    %v874 = vor.u32 %v872, %v873
    %vm875 = vcmp.lt.s32.totalorder %v856, 1
    %vm876 = vcmp.lt.s32.totalorder %v856, 2
    %vm877 = vcmp.lt.s32.totalorder %v856, 3
    %vm878 = vcmp.lt.s32.totalorder %v856, 4
    %v879 = vsel %vm875, %v859, %v862
    %v880 = vsel %vm878, %v868, 2102212464
    %v881 = vsel %vm877, %v865, %v880
    %v882 = vsel %vm876, %v879, %v881
    %v883 = vsel %vm875, %v862, %v865
    %v884 = vsel %vm878, %v871, 920167782
    %v885 = vsel %vm877, %v868, %v884
    %v886 = vsel %vm876, %v883, %v885
    %v887 = vsel %vm875, %v865, %v868
    %v888 = vsel %vm878, %v874, 1326507024
    %v889 = vsel %vm877, %v871, %v888
    %v890 = vsel %vm876, %v887, %v889
    %v891 = vshll.u32 %v851, 8
    %v892 = vmul.u32.u64.compose %v891, %v890
    %v893 = vextract.low.u32 %v892
    %v894 = vextract.high.u32 %v892
    %v895 = vmul.u32.u64.compose %v891, %v886
    %v896 = vextract.low.u32 %v895
    %v897 = vextract.high.u32 %v895
    %v898 = vmul.u32 %v891, %v882
    %v899 = vadd.s32 %v894, %v896
    %vm900 = vc.u32 %v894, %v896
    %v901 = vadd.s32 %v897, 1
    %v902 = vsel %vm900, %v901, %v897
    %v903 = vadd.s32 %v898, %v902
    %v904 = vadd.s32 %v903, 536870912
    %v905 = vshrl.u32 %v904, 30
    %v906 = vshll.u32 %v905, 30
    %v907 = vsub.s32 %v903, %v906
    %vm908 = vcmp.lt.s32.totalorder %v907, 0
    %v909 = vsub.s32 0, %v907
    %v910 = vsel %vm908, %v909, %v907
    %v911 = vclz %v910
    %v912 = vsub.s32 %v911, 2
    %vm913 = vcmp.gt.s32.totalorder 0, %v912
    %v914 = vsel %vm913, 0, %v912
    %v915 = vsub.s32 32, %v914
    %v916 = vshll.u32 %v907, %v914
    %v917 = vshrl.u32 %v899, %v915
    %v918 = vor.u32 %v916, %v917
    %v919 = vsub.s32 4294967266, %v914
    %v920 = vadd.s32 %v919, 127
    %v921 = vshll.u32 %v920, 23
    %v922 = vor.u32 4788187, %v921
    %v923 = vand.u32 2147483647, %v922
    %v925 = vcvt.s32.f32 %v918
    %v926 = vmul.f32 %v925, %v923
    %v927 = vxor.u32 %v926, 2147483648
    %v928 = vsel %vm845, %v927, %v926
    %v929 = vsub.s32 4, %v905
    %v930 = vsel %vm845, %v929, %v905
    %v931 = vsel %vm844, %v106, %v928
    %v932 = vsel %vm844, 0, %v930
    %v933 = vcosq.f32.pop %v931
    %v934 = vsinq.f32.pop %v931
    %vm935 = vweird.f32 %v106
    %v936 = vadd.s32 %v932, 3
    %v937 = vand.u32 %v936, 3
    %vm938 = vcmp.lt.s32.totalorder %v937, 2
    %vm939 = vcmp.eq.s32.totalorder %v937, 0
    %v940 = vxor.u32 %v934, 2147483648
    %v941 = vsel %vm939, %v933, %v940
    %vm942 = vcmp.eq.s32.totalorder %v937, 2
    %v943 = vxor.u32 %v933, 2147483648
    %v944 = vsel %vm942, %v943, %v934
    %v945 = vsel %vm938, %v941, %v944
    %v946 = vsel %vm935, nan, %v945
    %v947 = vand.u32 2147483647, %v107
    %vm948 = vcmp.le.f32.partialorder %v947, 0.7853982
    %vm949 = vcmp.lt.s32.totalorder %v107, 0
    %v950 = vand.u32 %v107, 2139095040
    %v951 = vshrl.u32 %v950, 23
    %v952 = vsub.s32 %v951, 127
    %v953 = vand.u32 2147483647, %v107
    %v954 = vand.u32 %v953, 8388607
    %v955 = vor.u32 %v954, 8388608
    %v956 = vsub.s32 0, %v955
    %v957 = vadd.s32 %v952, 1
    %vm958 = vcmp.gt.s32.totalorder %v957, 0
    %v959 = vsel %vm958, %v957, 0
    %v960 = vshrl.u32 %v959, 5
    %v961 = vand.u32 %v959, 31
    %v962 = vsub.s32 32, %v961
    %v963 = vshrl.u32 683565275, %v962
    %v964 = vshll.u32 683565275, %v961
    %v965 = vshrl.u32 2475754826, %v962
    %v966 = vor.u32 %v964, %v965
    %v967 = vshll.u32 2475754826, %v961
    %v968 = vshrl.u32 2131351028, %v962
    %v969 = vor.u32 %v967, %v968
    %v970 = vshll.u32 2131351028, %v961
    %v971 = vshrl.u32 2102212464, %v962
    %v972 = vor.u32 %v970, %v971
    %v973 = vshll.u32 2102212464, %v961
    %v974 = vshrl.u32 920167782, %v962
    %v975 = vor.u32 %v973, %v974
    %v976 = vshll.u32 920167782, %v961
    %v977 = vshrl.u32 1326507024, %v962
    %v978 = vor.u32 %v976, %v977
    %vm979 = vcmp.lt.s32.totalorder %v960, 1
    %vm980 = vcmp.lt.s32.totalorder %v960, 2
    %vm981 = vcmp.lt.s32.totalorder %v960, 3
    %vm982 = vcmp.lt.s32.totalorder %v960, 4
    %v983 = vsel %vm979, %v963, %v966
    %v984 = vsel %vm982, %v972, 2102212464
    %v985 = vsel %vm981, %v969, %v984
    %v986 = vsel %vm980, %v983, %v985
    %v987 = vsel %vm979, %v966, %v969
    %v988 = vsel %vm982, %v975, 920167782
    %v989 = vsel %vm981, %v972, %v988
    %v990 = vsel %vm980, %v987, %v989
    %v991 = vsel %vm979, %v969, %v972
    %v992 = vsel %vm982, %v978, 1326507024
    %v993 = vsel %vm981, %v975, %v992
    %v994 = vsel %vm980, %v991, %v993
    %v995 = vshll.u32 %v955, 8
    %v996 = vmul.u32.u64.compose %v995, %v994
    %v997 = vextract.low.u32 %v996
    %v998 = vextract.high.u32 %v996
    %v999 = vmul.u32.u64.compose %v995, %v990
    %v1000 = vextract.low.u32 %v999
    %v1001 = vextract.high.u32 %v999
    %v1002 = vmul.u32 %v995, %v986
    %v1003 = vadd.s32 %v998, %v1000
    %vm1004 = vc.u32 %v998, %v1000
    %v1005 = vadd.s32 %v1001, 1
    %v1006 = vsel %vm1004, %v1005, %v1001
    %v1007 = vadd.s32 %v1002, %v1006
    %v1008 = vadd.s32 %v1007, 536870912
    %v1009 = vshrl.u32 %v1008, 30
    %v1010 = vshll.u32 %v1009, 30
    %v1011 = vsub.s32 %v1007, %v1010
    %vm1012 = vcmp.lt.s32.totalorder %v1011, 0
    %v1013 = vsub.s32 0, %v1011
    %v1014 = vsel %vm1012, %v1013, %v1011
    %v1015 = vclz %v1014
    %v1016 = vsub.s32 %v1015, 2
    %vm1017 = vcmp.gt.s32.totalorder 0, %v1016
    %v1018 = vsel %vm1017, 0, %v1016
    %v1019 = vsub.s32 32, %v1018
    %v1020 = vshll.u32 %v1011, %v1018
    %v1021 = vshrl.u32 %v1003, %v1019
    %v1022 = vor.u32 %v1020, %v1021
    %v1023 = vsub.s32 4294967266, %v1018
    %v1024 = vadd.s32 %v1023, 127
    %v1025 = vshll.u32 %v1024, 23
    %v1026 = vor.u32 4788187, %v1025
    %v1027 = vand.u32 2147483647, %v1026
    %v1029 = vcvt.s32.f32 %v1022
    %v1030 = vmul.f32 %v1029, %v1027
    %v1031 = vxor.u32 %v1030, 2147483648
    %v1032 = vsel %vm949, %v1031, %v1030
    %v1033 = vsub.s32 4, %v1009
    %v1034 = vsel %vm949, %v1033, %v1009
    %v1035 = vsel %vm948, %v107, %v1032
    %v1036 = vsel %vm948, 0, %v1034
    %v1037 = vcosq.f32.pop %v1035
    %v1038 = vsinq.f32.pop %v1035
    %vm1039 = vweird.f32 %v107
    %v1040 = vadd.s32 %v1036, 3
    %v1041 = vand.u32 %v1040, 3
    %vm1042 = vcmp.lt.s32.totalorder %v1041, 2
    %vm1043 = vcmp.eq.s32.totalorder %v1041, 0
    %v1044 = vxor.u32 %v1038, 2147483648
    %v1045 = vsel %vm1043, %v1037, %v1044
    %vm1046 = vcmp.eq.s32.totalorder %v1041, 2
    %v1047 = vxor.u32 %v1037, 2147483648
    %v1048 = vsel %vm1046, %v1047, %v1038
    %v1049 = vsel %vm1042, %v1045, %v1048
    %v1050 = vsel %vm1039, nan, %v1049
    %v1051 = vand.u32 2147483647, %v108
    %vm1052 = vcmp.le.f32.partialorder %v1051, 0.7853982
    %vm1053 = vcmp.lt.s32.totalorder %v108, 0
    %v1054 = vand.u32 %v108, 2139095040
    %v1055 = vshrl.u32 %v1054, 23
    %v1056 = vsub.s32 %v1055, 127
    %v1057 = vand.u32 2147483647, %v108
    %v1058 = vand.u32 %v1057, 8388607
    %v1059 = vor.u32 %v1058, 8388608
    %v1060 = vsub.s32 0, %v1059
    %v1061 = vadd.s32 %v1056, 1
    %vm1062 = vcmp.gt.s32.totalorder %v1061, 0
    %v1063 = vsel %vm1062, %v1061, 0
    %v1064 = vshrl.u32 %v1063, 5
    %v1065 = vand.u32 %v1063, 31
    %v1066 = vsub.s32 32, %v1065
    %v1067 = vshrl.u32 683565275, %v1066
    %v1068 = vshll.u32 683565275, %v1065
    %v1069 = vshrl.u32 2475754826, %v1066
    %v1070 = vor.u32 %v1068, %v1069
    %v1071 = vshll.u32 2475754826, %v1065
    %v1072 = vshrl.u32 2131351028, %v1066
    %v1073 = vor.u32 %v1071, %v1072
    %v1074 = vshll.u32 2131351028, %v1065
    %v1075 = vshrl.u32 2102212464, %v1066
    %v1076 = vor.u32 %v1074, %v1075
    %v1077 = vshll.u32 2102212464, %v1065
    %v1078 = vshrl.u32 920167782, %v1066
    %v1079 = vor.u32 %v1077, %v1078
    %v1080 = vshll.u32 920167782, %v1065
    %v1081 = vshrl.u32 1326507024, %v1066
    %v1082 = vor.u32 %v1080, %v1081
    %vm1083 = vcmp.lt.s32.totalorder %v1064, 1
    %vm1084 = vcmp.lt.s32.totalorder %v1064, 2
    %vm1085 = vcmp.lt.s32.totalorder %v1064, 3
    %vm1086 = vcmp.lt.s32.totalorder %v1064, 4
    %v1087 = vsel %vm1083, %v1067, %v1070
    %v1088 = vsel %vm1086, %v1076, 2102212464
    %v1089 = vsel %vm1085, %v1073, %v1088
    %v1090 = vsel %vm1084, %v1087, %v1089
    %v1091 = vsel %vm1083, %v1070, %v1073
    %v1092 = vsel %vm1086, %v1079, 920167782
    %v1093 = vsel %vm1085, %v1076, %v1092
    %v1094 = vsel %vm1084, %v1091, %v1093
    %v1095 = vsel %vm1083, %v1073, %v1076
    %v1096 = vsel %vm1086, %v1082, 1326507024
    %v1097 = vsel %vm1085, %v1079, %v1096
    %v1098 = vsel %vm1084, %v1095, %v1097
    %v1099 = vshll.u32 %v1059, 8
    %v1100 = vmul.u32.u64.compose %v1099, %v1098
    %v1101 = vextract.low.u32 %v1100
    %v1102 = vextract.high.u32 %v1100
    %v1103 = vmul.u32.u64.compose %v1099, %v1094
    %v1104 = vextract.low.u32 %v1103
    %v1105 = vextract.high.u32 %v1103
    %v1106 = vmul.u32 %v1099, %v1090
    %v1107 = vadd.s32 %v1102, %v1104
    %vm1108 = vc.u32 %v1102, %v1104
    %v1109 = vadd.s32 %v1105, 1
    %v1110 = vsel %vm1108, %v1109, %v1105
    %v1111 = vadd.s32 %v1106, %v1110
    %v1112 = vadd.s32 %v1111, 536870912
    %v1113 = vshrl.u32 %v1112, 30
    %v1114 = vshll.u32 %v1113, 30
    %v1115 = vsub.s32 %v1111, %v1114
    %vm1116 = vcmp.lt.s32.totalorder %v1115, 0
    %v1117 = vsub.s32 0, %v1115
    %v1118 = vsel %vm1116, %v1117, %v1115
    %v1119 = vclz %v1118
    %v1120 = vsub.s32 %v1119, 2
    %vm1121 = vcmp.gt.s32.totalorder 0, %v1120
    %v1122 = vsel %vm1121, 0, %v1120
    %v1123 = vsub.s32 32, %v1122
    %v1124 = vshll.u32 %v1115, %v1122
    %v1125 = vshrl.u32 %v1107, %v1123
    %v1126 = vor.u32 %v1124, %v1125
    %v1127 = vsub.s32 4294967266, %v1122
    %v1128 = vadd.s32 %v1127, 127
    %v1129 = vshll.u32 %v1128, 23
    %v1130 = vor.u32 4788187, %v1129
    %v1131 = vand.u32 2147483647, %v1130
    %v1133 = vcvt.s32.f32 %v1126
    %v1134 = vmul.f32 %v1133, %v1131
    %v1135 = vxor.u32 %v1134, 2147483648
    %v1136 = vsel %vm1053, %v1135, %v1134
    %v1137 = vsub.s32 4, %v1113
    %v1138 = vsel %vm1053, %v1137, %v1113
    %v1139 = vsel %vm1052, %v108, %v1136
    %v1140 = vsel %vm1052, 0, %v1138
    %v1141 = vcosq.f32.pop %v1139
    %v1142 = vsinq.f32.pop %v1139
    %vm1143 = vweird.f32 %v108
    %v1144 = vadd.s32 %v1140, 3
    %v1145 = vand.u32 %v1144, 3
    %vm1146 = vcmp.lt.s32.totalorder %v1145, 2
    %vm1147 = vcmp.eq.s32.totalorder %v1145, 0
    %v1148 = vxor.u32 %v1142, 2147483648
    %v1149 = vsel %vm1147, %v1141, %v1148
    %vm1150 = vcmp.eq.s32.totalorder %v1145, 2
    %v1151 = vxor.u32 %v1141, 2147483648
    %v1152 = vsel %vm1150, %v1151, %v1142
    %v1153 = vsel %vm1146, %v1149, %v1152
    %v1154 = vsel %vm1143, nan, %v1153
    %v1155 = vand.u32 2147483647, %v109
    %vm1156 = vcmp.le.f32.partialorder %v1155, 0.7853982
    %vm1157 = vcmp.lt.s32.totalorder %v109, 0
    %v1158 = vand.u32 %v109, 2139095040
    %v1159 = vshrl.u32 %v1158, 23
    %v1160 = vsub.s32 %v1159, 127
    %v1161 = vand.u32 2147483647, %v109
    %v1162 = vand.u32 %v1161, 8388607
    %v1163 = vor.u32 %v1162, 8388608
    %v1164 = vsub.s32 0, %v1163
    %v1165 = vadd.s32 %v1160, 1
    %vm1166 = vcmp.gt.s32.totalorder %v1165, 0
    %v1167 = vsel %vm1166, %v1165, 0
    %v1168 = vshrl.u32 %v1167, 5
    %v1169 = vand.u32 %v1167, 31
    %v1170 = vsub.s32 32, %v1169
    %v1171 = vshrl.u32 683565275, %v1170
    %v1172 = vshll.u32 683565275, %v1169
    %v1173 = vshrl.u32 2475754826, %v1170
    %v1174 = vor.u32 %v1172, %v1173
    %v1175 = vshll.u32 2475754826, %v1169
    %v1176 = vshrl.u32 2131351028, %v1170
    %v1177 = vor.u32 %v1175, %v1176
    %v1178 = vshll.u32 2131351028, %v1169
    %v1179 = vshrl.u32 2102212464, %v1170
    %v1180 = vor.u32 %v1178, %v1179
    %v1181 = vshll.u32 2102212464, %v1169
    %v1182 = vshrl.u32 920167782, %v1170
    %v1183 = vor.u32 %v1181, %v1182
    %v1184 = vshll.u32 920167782, %v1169
    %v1185 = vshrl.u32 1326507024, %v1170
    %v1186 = vor.u32 %v1184, %v1185
    %vm1187 = vcmp.lt.s32.totalorder %v1168, 1
    %vm1188 = vcmp.lt.s32.totalorder %v1168, 2
    %vm1189 = vcmp.lt.s32.totalorder %v1168, 3
    %vm1190 = vcmp.lt.s32.totalorder %v1168, 4
    %v1191 = vsel %vm1187, %v1171, %v1174
    %v1192 = vsel %vm1190, %v1180, 2102212464
    %v1193 = vsel %vm1189, %v1177, %v1192
    %v1194 = vsel %vm1188, %v1191, %v1193
    %v1195 = vsel %vm1187, %v1174, %v1177
    %v1196 = vsel %vm1190, %v1183, 920167782
    %v1197 = vsel %vm1189, %v1180, %v1196
    %v1198 = vsel %vm1188, %v1195, %v1197
    %v1199 = vsel %vm1187, %v1177, %v1180
    %v1200 = vsel %vm1190, %v1186, 1326507024
    %v1201 = vsel %vm1189, %v1183, %v1200
    %v1202 = vsel %vm1188, %v1199, %v1201
    %v1203 = vshll.u32 %v1163, 8
    %v1204 = vmul.u32.u64.compose %v1203, %v1202
    %v1205 = vextract.low.u32 %v1204
    %v1206 = vextract.high.u32 %v1204
    %v1207 = vmul.u32.u64.compose %v1203, %v1198
    %v1208 = vextract.low.u32 %v1207
    %v1209 = vextract.high.u32 %v1207
    %v1210 = vmul.u32 %v1203, %v1194
    %v1211 = vadd.s32 %v1206, %v1208
    %vm1212 = vc.u32 %v1206, %v1208
    %v1213 = vadd.s32 %v1209, 1
    %v1214 = vsel %vm1212, %v1213, %v1209
    %v1215 = vadd.s32 %v1210, %v1214
    %v1216 = vadd.s32 %v1215, 536870912
    %v1217 = vshrl.u32 %v1216, 30
    %v1218 = vshll.u32 %v1217, 30
    %v1219 = vsub.s32 %v1215, %v1218
    %vm1220 = vcmp.lt.s32.totalorder %v1219, 0
    %v1221 = vsub.s32 0, %v1219
    %v1222 = vsel %vm1220, %v1221, %v1219
    %v1223 = vclz %v1222
    %v1224 = vsub.s32 %v1223, 2
    %vm1225 = vcmp.gt.s32.totalorder 0, %v1224
    %v1226 = vsel %vm1225, 0, %v1224
    %v1227 = vsub.s32 32, %v1226
    %v1228 = vshll.u32 %v1219, %v1226
    %v1229 = vshrl.u32 %v1211, %v1227
    %v1230 = vor.u32 %v1228, %v1229
    %v1231 = vsub.s32 4294967266, %v1226
    %v1232 = vadd.s32 %v1231, 127
    %v1233 = vshll.u32 %v1232, 23
    %v1234 = vor.u32 4788187, %v1233
    %v1235 = vand.u32 2147483647, %v1234
    %v1237 = vcvt.s32.f32 %v1230
    %v1238 = vmul.f32 %v1237, %v1235
    %v1239 = vxor.u32 %v1238, 2147483648
    %v1240 = vsel %vm1157, %v1239, %v1238
    %v1241 = vsub.s32 4, %v1217
    %v1242 = vsel %vm1157, %v1241, %v1217
    %v1243 = vsel %vm1156, %v109, %v1240
    %v1244 = vsel %vm1156, 0, %v1242
    %v1245 = vcosq.f32.pop %v1243
    %v1246 = vsinq.f32.pop %v1243
    %vm1247 = vweird.f32 %v109
    %v1248 = vadd.s32 %v1244, 3
    %v1249 = vand.u32 %v1248, 3
    %vm1250 = vcmp.lt.s32.totalorder %v1249, 2
    %vm1251 = vcmp.eq.s32.totalorder %v1249, 0
    %v1252 = vxor.u32 %v1246, 2147483648
    %v1253 = vsel %vm1251, %v1245, %v1252
    %vm1254 = vcmp.eq.s32.totalorder %v1249, 2
    %v1255 = vxor.u32 %v1245, 2147483648
    %v1256 = vsel %vm1254, %v1255, %v1246
    %v1257 = vsel %vm1250, %v1253, %v1256
    %v1258 = vsel %vm1247, nan, %v1257
    %v1259 = vand.u32 2147483647, %v110
    %vm1260 = vcmp.le.f32.partialorder %v1259, 0.7853982
    %vm1261 = vcmp.lt.s32.totalorder %v110, 0
    %v1262 = vand.u32 %v110, 2139095040
    %v1263 = vshrl.u32 %v1262, 23
    %v1264 = vsub.s32 %v1263, 127
    %v1265 = vand.u32 2147483647, %v110
    %v1266 = vand.u32 %v1265, 8388607
    %v1267 = vor.u32 %v1266, 8388608
    %v1268 = vsub.s32 0, %v1267
    %v1269 = vadd.s32 %v1264, 1
    %vm1270 = vcmp.gt.s32.totalorder %v1269, 0
    %v1271 = vsel %vm1270, %v1269, 0
    %v1272 = vshrl.u32 %v1271, 5
    %v1273 = vand.u32 %v1271, 31
    %v1274 = vsub.s32 32, %v1273
    %v1275 = vshrl.u32 683565275, %v1274
    %v1276 = vshll.u32 683565275, %v1273
    %v1277 = vshrl.u32 2475754826, %v1274
    %v1278 = vor.u32 %v1276, %v1277
    %v1279 = vshll.u32 2475754826, %v1273
    %v1280 = vshrl.u32 2131351028, %v1274
    %v1281 = vor.u32 %v1279, %v1280
    %v1282 = vshll.u32 2131351028, %v1273
    %v1283 = vshrl.u32 2102212464, %v1274
    %v1284 = vor.u32 %v1282, %v1283
    %v1285 = vshll.u32 2102212464, %v1273
    %v1286 = vshrl.u32 920167782, %v1274
    %v1287 = vor.u32 %v1285, %v1286
    %v1288 = vshll.u32 920167782, %v1273
    %v1289 = vshrl.u32 1326507024, %v1274
    %v1290 = vor.u32 %v1288, %v1289
    %vm1291 = vcmp.lt.s32.totalorder %v1272, 1
    %vm1292 = vcmp.lt.s32.totalorder %v1272, 2
    %vm1293 = vcmp.lt.s32.totalorder %v1272, 3
    %vm1294 = vcmp.lt.s32.totalorder %v1272, 4
    %v1295 = vsel %vm1291, %v1275, %v1278
    %v1296 = vsel %vm1294, %v1284, 2102212464
    %v1297 = vsel %vm1293, %v1281, %v1296
    %v1298 = vsel %vm1292, %v1295, %v1297
    %v1299 = vsel %vm1291, %v1278, %v1281
    %v1300 = vsel %vm1294, %v1287, 920167782
    %v1301 = vsel %vm1293, %v1284, %v1300
    %v1302 = vsel %vm1292, %v1299, %v1301
    %v1303 = vsel %vm1291, %v1281, %v1284
    %v1304 = vsel %vm1294, %v1290, 1326507024
    %v1305 = vsel %vm1293, %v1287, %v1304
    %v1306 = vsel %vm1292, %v1303, %v1305
    %v1307 = vshll.u32 %v1267, 8
    %v1308 = vmul.u32.u64.compose %v1307, %v1306
    %v1309 = vextract.low.u32 %v1308
    %v1310 = vextract.high.u32 %v1308
    %v1311 = vmul.u32.u64.compose %v1307, %v1302
    %v1312 = vextract.low.u32 %v1311
    %v1313 = vextract.high.u32 %v1311
    %v1314 = vmul.u32 %v1307, %v1298
    %v1315 = vadd.s32 %v1310, %v1312
    %vm1316 = vc.u32 %v1310, %v1312
    %v1317 = vadd.s32 %v1313, 1
    %v1318 = vsel %vm1316, %v1317, %v1313
    %v1319 = vadd.s32 %v1314, %v1318
    %v1320 = vadd.s32 %v1319, 536870912
    %v1321 = vshrl.u32 %v1320, 30
    %v1322 = vshll.u32 %v1321, 30
    %v1323 = vsub.s32 %v1319, %v1322
    %vm1324 = vcmp.lt.s32.totalorder %v1323, 0
    %v1325 = vsub.s32 0, %v1323
    %v1326 = vsel %vm1324, %v1325, %v1323
    %v1327 = vclz %v1326
    %v1328 = vsub.s32 %v1327, 2
    %vm1329 = vcmp.gt.s32.totalorder 0, %v1328
    %v1330 = vsel %vm1329, 0, %v1328
    %v1331 = vsub.s32 32, %v1330
    %v1332 = vshll.u32 %v1323, %v1330
    %v1333 = vshrl.u32 %v1315, %v1331
    %v1334 = vor.u32 %v1332, %v1333
    %v1335 = vsub.s32 4294967266, %v1330
    %v1336 = vadd.s32 %v1335, 127
    %v1337 = vshll.u32 %v1336, 23
    %v1338 = vor.u32 4788187, %v1337
    %v1339 = vand.u32 2147483647, %v1338
    %v1341 = vcvt.s32.f32 %v1334
    %v1342 = vmul.f32 %v1341, %v1339
    %v1343 = vxor.u32 %v1342, 2147483648
    %v1344 = vsel %vm1261, %v1343, %v1342
    %v1345 = vsub.s32 4, %v1321
    %v1346 = vsel %vm1261, %v1345, %v1321
    %v1347 = vsel %vm1260, %v110, %v1344
    %v1348 = vsel %vm1260, 0, %v1346
    %v1349 = vcosq.f32.pop %v1347
    %v1350 = vsinq.f32.pop %v1347
    %vm1351 = vweird.f32 %v110
    %v1352 = vadd.s32 %v1348, 3
    %v1353 = vand.u32 %v1352, 3
    %vm1354 = vcmp.lt.s32.totalorder %v1353, 2
    %vm1355 = vcmp.eq.s32.totalorder %v1353, 0
    %v1356 = vxor.u32 %v1350, 2147483648
    %v1357 = vsel %vm1355, %v1349, %v1356
    %vm1358 = vcmp.eq.s32.totalorder %v1353, 2
    %v1359 = vxor.u32 %v1349, 2147483648
    %v1360 = vsel %vm1358, %v1359, %v1350
    %v1361 = vsel %vm1354, %v1357, %v1360
    %v1362 = vsel %vm1351, nan, %v1361
    %v1363 = vand.u32 2147483647, %v111
    %vm1364 = vcmp.le.f32.partialorder %v1363, 0.7853982
    %vm1365 = vcmp.lt.s32.totalorder %v111, 0
    %v1366 = vand.u32 %v111, 2139095040
    %v1367 = vshrl.u32 %v1366, 23
    %v1368 = vsub.s32 %v1367, 127
    %v1369 = vand.u32 2147483647, %v111
    %v1370 = vand.u32 %v1369, 8388607
    %v1371 = vor.u32 %v1370, 8388608
    %v1372 = vsub.s32 0, %v1371
    %v1373 = vadd.s32 %v1368, 1
    %vm1374 = vcmp.gt.s32.totalorder %v1373, 0
    %v1375 = vsel %vm1374, %v1373, 0
    %v1376 = vshrl.u32 %v1375, 5
    %v1377 = vand.u32 %v1375, 31
    %v1378 = vsub.s32 32, %v1377
    %v1379 = vshrl.u32 683565275, %v1378
    %v1380 = vshll.u32 683565275, %v1377
    %v1381 = vshrl.u32 2475754826, %v1378
    %v1382 = vor.u32 %v1380, %v1381
    %v1383 = vshll.u32 2475754826, %v1377
    %v1384 = vshrl.u32 2131351028, %v1378
    %v1385 = vor.u32 %v1383, %v1384
    %v1386 = vshll.u32 2131351028, %v1377
    %v1387 = vshrl.u32 2102212464, %v1378
    %v1388 = vor.u32 %v1386, %v1387
    %v1389 = vshll.u32 2102212464, %v1377
    %v1390 = vshrl.u32 920167782, %v1378
    %v1391 = vor.u32 %v1389, %v1390
    %v1392 = vshll.u32 920167782, %v1377
    %v1393 = vshrl.u32 1326507024, %v1378
    %v1394 = vor.u32 %v1392, %v1393
    %vm1395 = vcmp.lt.s32.totalorder %v1376, 1
    %vm1396 = vcmp.lt.s32.totalorder %v1376, 2
    %vm1397 = vcmp.lt.s32.totalorder %v1376, 3
    %vm1398 = vcmp.lt.s32.totalorder %v1376, 4
    %v1399 = vsel %vm1395, %v1379, %v1382
    %v1400 = vsel %vm1398, %v1388, 2102212464
    %v1401 = vsel %vm1397, %v1385, %v1400
    %v1402 = vsel %vm1396, %v1399, %v1401
    %v1403 = vsel %vm1395, %v1382, %v1385
    %v1404 = vsel %vm1398, %v1391, 920167782
    %v1405 = vsel %vm1397, %v1388, %v1404
    %v1406 = vsel %vm1396, %v1403, %v1405
    %v1407 = vsel %vm1395, %v1385, %v1388
    %v1408 = vsel %vm1398, %v1394, 1326507024
    %v1409 = vsel %vm1397, %v1391, %v1408
    %v1410 = vsel %vm1396, %v1407, %v1409
    %v1411 = vshll.u32 %v1371, 8
    %v1412 = vmul.u32.u64.compose %v1411, %v1410
    %v1413 = vextract.low.u32 %v1412
    %v1414 = vextract.high.u32 %v1412
    %v1415 = vmul.u32.u64.compose %v1411, %v1406
    %v1416 = vextract.low.u32 %v1415
    %v1417 = vextract.high.u32 %v1415
    %v1418 = vmul.u32 %v1411, %v1402
    %v1419 = vadd.s32 %v1414, %v1416
    %vm1420 = vc.u32 %v1414, %v1416
    %v1421 = vadd.s32 %v1417, 1
    %v1422 = vsel %vm1420, %v1421, %v1417
    %v1423 = vadd.s32 %v1418, %v1422
    %v1424 = vadd.s32 %v1423, 536870912
    %v1425 = vshrl.u32 %v1424, 30
    %v1426 = vshll.u32 %v1425, 30
    %v1427 = vsub.s32 %v1423, %v1426
    %vm1428 = vcmp.lt.s32.totalorder %v1427, 0
    %v1429 = vsub.s32 0, %v1427
    %v1430 = vsel %vm1428, %v1429, %v1427
    %v1431 = vclz %v1430
    %v1432 = vsub.s32 %v1431, 2
    %vm1433 = vcmp.gt.s32.totalorder 0, %v1432
    %v1434 = vsel %vm1433, 0, %v1432
    %v1435 = vsub.s32 32, %v1434
    %v1436 = vshll.u32 %v1427, %v1434
    %v1437 = vshrl.u32 %v1419, %v1435
    %v1438 = vor.u32 %v1436, %v1437
    %v1439 = vsub.s32 4294967266, %v1434
    %v1440 = vadd.s32 %v1439, 127
    %v1441 = vshll.u32 %v1440, 23
    %v1442 = vor.u32 4788187, %v1441
    %v1443 = vand.u32 2147483647, %v1442
    %v1445 = vcvt.s32.f32 %v1438
    %v1446 = vmul.f32 %v1445, %v1443
    %v1447 = vxor.u32 %v1446, 2147483648
    %v1448 = vsel %vm1365, %v1447, %v1446
    %v1449 = vsub.s32 4, %v1425
    %v1450 = vsel %vm1365, %v1449, %v1425
    %v1451 = vsel %vm1364, %v111, %v1448
    %v1452 = vsel %vm1364, 0, %v1450
    %v1453 = vcosq.f32.pop %v1451
    %v1454 = vsinq.f32.pop %v1451
    %vm1455 = vweird.f32 %v111
    %v1456 = vadd.s32 %v1452, 3
    %v1457 = vand.u32 %v1456, 3
    %vm1458 = vcmp.lt.s32.totalorder %v1457, 2
    %vm1459 = vcmp.eq.s32.totalorder %v1457, 0
    %v1460 = vxor.u32 %v1454, 2147483648
    %v1461 = vsel %vm1459, %v1453, %v1460
    %vm1462 = vcmp.eq.s32.totalorder %v1457, 2
    %v1463 = vxor.u32 %v1453, 2147483648
    %v1464 = vsel %vm1462, %v1463, %v1454
    %v1465 = vsel %vm1458, %v1461, %v1464
    %v1466 = vsel %vm1455, nan, %v1465
    %v1467 = vand.u32 2147483647, %v112
    %vm1468 = vcmp.le.f32.partialorder %v1467, 0.7853982
    %vm1469 = vcmp.lt.s32.totalorder %v112, 0
    %v1470 = vand.u32 %v112, 2139095040
    %v1471 = vshrl.u32 %v1470, 23
    %v1472 = vsub.s32 %v1471, 127
    %v1473 = vand.u32 2147483647, %v112
    %v1474 = vand.u32 %v1473, 8388607
    %v1475 = vor.u32 %v1474, 8388608
    %v1476 = vsub.s32 0, %v1475
    %v1477 = vadd.s32 %v1472, 1
    %vm1478 = vcmp.gt.s32.totalorder %v1477, 0
    %v1479 = vsel %vm1478, %v1477, 0
    %v1480 = vshrl.u32 %v1479, 5
    %v1481 = vand.u32 %v1479, 31
    %v1482 = vsub.s32 32, %v1481
    %v1483 = vshrl.u32 683565275, %v1482
    %v1484 = vshll.u32 683565275, %v1481
    %v1485 = vshrl.u32 2475754826, %v1482
    %v1486 = vor.u32 %v1484, %v1485
    %v1487 = vshll.u32 2475754826, %v1481
    %v1488 = vshrl.u32 2131351028, %v1482
    %v1489 = vor.u32 %v1487, %v1488
    %v1490 = vshll.u32 2131351028, %v1481
    %v1491 = vshrl.u32 2102212464, %v1482
    %v1492 = vor.u32 %v1490, %v1491
    %v1493 = vshll.u32 2102212464, %v1481
    %v1494 = vshrl.u32 920167782, %v1482
    %v1495 = vor.u32 %v1493, %v1494
    %v1496 = vshll.u32 920167782, %v1481
    %v1497 = vshrl.u32 1326507024, %v1482
    %v1498 = vor.u32 %v1496, %v1497
    %vm1499 = vcmp.lt.s32.totalorder %v1480, 1
    %vm1500 = vcmp.lt.s32.totalorder %v1480, 2
    %vm1501 = vcmp.lt.s32.totalorder %v1480, 3
    %vm1502 = vcmp.lt.s32.totalorder %v1480, 4
    %v1503 = vsel %vm1499, %v1483, %v1486
    %v1504 = vsel %vm1502, %v1492, 2102212464
    %v1505 = vsel %vm1501, %v1489, %v1504
    %v1506 = vsel %vm1500, %v1503, %v1505
    %v1507 = vsel %vm1499, %v1486, %v1489
    %v1508 = vsel %vm1502, %v1495, 920167782
    %v1509 = vsel %vm1501, %v1492, %v1508
    %v1510 = vsel %vm1500, %v1507, %v1509
    %v1511 = vsel %vm1499, %v1489, %v1492
    %v1512 = vsel %vm1502, %v1498, 1326507024
    %v1513 = vsel %vm1501, %v1495, %v1512
    %v1514 = vsel %vm1500, %v1511, %v1513
    %v1515 = vshll.u32 %v1475, 8
    %v1516 = vmul.u32.u64.compose %v1515, %v1514
    %v1517 = vextract.low.u32 %v1516
    %v1518 = vextract.high.u32 %v1516
    %v1519 = vmul.u32.u64.compose %v1515, %v1510
    %v1520 = vextract.low.u32 %v1519
    %v1521 = vextract.high.u32 %v1519
    %v1522 = vmul.u32 %v1515, %v1506
    %v1523 = vadd.s32 %v1518, %v1520
    %vm1524 = vc.u32 %v1518, %v1520
    %v1525 = vadd.s32 %v1521, 1
    %v1526 = vsel %vm1524, %v1525, %v1521
    %v1527 = vadd.s32 %v1522, %v1526
    %v1528 = vadd.s32 %v1527, 536870912
    %v1529 = vshrl.u32 %v1528, 30
    %v1530 = vshll.u32 %v1529, 30
    %v1531 = vsub.s32 %v1527, %v1530
    %vm1532 = vcmp.lt.s32.totalorder %v1531, 0
    %v1533 = vsub.s32 0, %v1531
    %v1534 = vsel %vm1532, %v1533, %v1531
    %v1535 = vclz %v1534
    %v1536 = vsub.s32 %v1535, 2
    %vm1537 = vcmp.gt.s32.totalorder 0, %v1536
    %v1538 = vsel %vm1537, 0, %v1536
    %v1539 = vsub.s32 32, %v1538
    %v1540 = vshll.u32 %v1531, %v1538
    %v1541 = vshrl.u32 %v1523, %v1539
    %v1542 = vor.u32 %v1540, %v1541
    %v1543 = vsub.s32 4294967266, %v1538
    %v1544 = vadd.s32 %v1543, 127
    %v1545 = vshll.u32 %v1544, 23
    %v1546 = vor.u32 4788187, %v1545
    %v1547 = vand.u32 2147483647, %v1546
    %v1549 = vcvt.s32.f32 %v1542
    %v1550 = vmul.f32 %v1549, %v1547
    %v1551 = vxor.u32 %v1550, 2147483648
    %v1552 = vsel %vm1469, %v1551, %v1550
    %v1553 = vsub.s32 4, %v1529
    %v1554 = vsel %vm1469, %v1553, %v1529
    %v1555 = vsel %vm1468, %v112, %v1552
    %v1556 = vsel %vm1468, 0, %v1554
    %v1557 = vcosq.f32.pop %v1555
    %v1558 = vsinq.f32.pop %v1555
    %vm1559 = vweird.f32 %v112
    %v1560 = vadd.s32 %v1556, 3
    %v1561 = vand.u32 %v1560, 3
    %vm1562 = vcmp.lt.s32.totalorder %v1561, 2
    %vm1563 = vcmp.eq.s32.totalorder %v1561, 0
    %v1564 = vxor.u32 %v1558, 2147483648
    %v1565 = vsel %vm1563, %v1557, %v1564
    %vm1566 = vcmp.eq.s32.totalorder %v1561, 2
    %v1567 = vxor.u32 %v1557, 2147483648
    %v1568 = vsel %vm1566, %v1567, %v1558
    %v1569 = vsel %vm1562, %v1565, %v1568
    %v1570 = vsel %vm1559, nan, %v1569
    %v1571 = vand.u32 2147483647, %v113
    %vm1572 = vcmp.le.f32.partialorder %v1571, 0.7853982
    %vm1573 = vcmp.lt.s32.totalorder %v113, 0
    %v1574 = vand.u32 %v113, 2139095040
    %v1575 = vshrl.u32 %v1574, 23
    %v1576 = vsub.s32 %v1575, 127
    %v1577 = vand.u32 2147483647, %v113
    %v1578 = vand.u32 %v1577, 8388607
    %v1579 = vor.u32 %v1578, 8388608
    %v1580 = vsub.s32 0, %v1579
    %v1581 = vadd.s32 %v1576, 1
    %vm1582 = vcmp.gt.s32.totalorder %v1581, 0
    %v1583 = vsel %vm1582, %v1581, 0
    %v1584 = vshrl.u32 %v1583, 5
    %v1585 = vand.u32 %v1583, 31
    %v1586 = vsub.s32 32, %v1585
    %v1587 = vshrl.u32 683565275, %v1586
    %v1588 = vshll.u32 683565275, %v1585
    %v1589 = vshrl.u32 2475754826, %v1586
    %v1590 = vor.u32 %v1588, %v1589
    %v1591 = vshll.u32 2475754826, %v1585
    %v1592 = vshrl.u32 2131351028, %v1586
    %v1593 = vor.u32 %v1591, %v1592
    %v1594 = vshll.u32 2131351028, %v1585
    %v1595 = vshrl.u32 2102212464, %v1586
    %v1596 = vor.u32 %v1594, %v1595
    %v1597 = vshll.u32 2102212464, %v1585
    %v1598 = vshrl.u32 920167782, %v1586
    %v1599 = vor.u32 %v1597, %v1598
    %v1600 = vshll.u32 920167782, %v1585
    %v1601 = vshrl.u32 1326507024, %v1586
    %v1602 = vor.u32 %v1600, %v1601
    %vm1603 = vcmp.lt.s32.totalorder %v1584, 1
    %vm1604 = vcmp.lt.s32.totalorder %v1584, 2
    %vm1605 = vcmp.lt.s32.totalorder %v1584, 3
    %vm1606 = vcmp.lt.s32.totalorder %v1584, 4
    %v1607 = vsel %vm1603, %v1587, %v1590
    %v1608 = vsel %vm1606, %v1596, 2102212464
    %v1609 = vsel %vm1605, %v1593, %v1608
    %v1610 = vsel %vm1604, %v1607, %v1609
    %v1611 = vsel %vm1603, %v1590, %v1593
    %v1612 = vsel %vm1606, %v1599, 920167782
    %v1613 = vsel %vm1605, %v1596, %v1612
    %v1614 = vsel %vm1604, %v1611, %v1613
    %v1615 = vsel %vm1603, %v1593, %v1596
    %v1616 = vsel %vm1606, %v1602, 1326507024
    %v1617 = vsel %vm1605, %v1599, %v1616
    %v1618 = vsel %vm1604, %v1615, %v1617
    %v1619 = vshll.u32 %v1579, 8
    %v1620 = vmul.u32.u64.compose %v1619, %v1618
    %v1621 = vextract.low.u32 %v1620
    %v1622 = vextract.high.u32 %v1620
    %v1623 = vmul.u32.u64.compose %v1619, %v1614
    %v1624 = vextract.low.u32 %v1623
    %v1625 = vextract.high.u32 %v1623
    %v1626 = vmul.u32 %v1619, %v1610
    %v1627 = vadd.s32 %v1622, %v1624
    %vm1628 = vc.u32 %v1622, %v1624
    %v1629 = vadd.s32 %v1625, 1
    %v1630 = vsel %vm1628, %v1629, %v1625
    %v1631 = vadd.s32 %v1626, %v1630
    %v1632 = vadd.s32 %v1631, 536870912
    %v1633 = vshrl.u32 %v1632, 30
    %v1634 = vshll.u32 %v1633, 30
    %v1635 = vsub.s32 %v1631, %v1634
    %vm1636 = vcmp.lt.s32.totalorder %v1635, 0
    %v1637 = vsub.s32 0, %v1635
    %v1638 = vsel %vm1636, %v1637, %v1635
    %v1639 = vclz %v1638
    %v1640 = vsub.s32 %v1639, 2
    %vm1641 = vcmp.gt.s32.totalorder 0, %v1640
    %v1642 = vsel %vm1641, 0, %v1640
    %v1643 = vsub.s32 32, %v1642
    %v1644 = vshll.u32 %v1635, %v1642
    %v1645 = vshrl.u32 %v1627, %v1643
    %v1646 = vor.u32 %v1644, %v1645
    %v1647 = vsub.s32 4294967266, %v1642
    %v1648 = vadd.s32 %v1647, 127
    %v1649 = vshll.u32 %v1648, 23
    %v1650 = vor.u32 4788187, %v1649
    %v1651 = vand.u32 2147483647, %v1650
    %v1653 = vcvt.s32.f32 %v1646
    %v1654 = vmul.f32 %v1653, %v1651
    %v1655 = vxor.u32 %v1654, 2147483648
    %v1656 = vsel %vm1573, %v1655, %v1654
    %v1657 = vsub.s32 4, %v1633
    %v1658 = vsel %vm1573, %v1657, %v1633
    %v1659 = vsel %vm1572, %v113, %v1656
    %v1660 = vsel %vm1572, 0, %v1658
    %v1661 = vcosq.f32.pop %v1659
    %v1662 = vsinq.f32.pop %v1659
    %vm1663 = vweird.f32 %v113
    %v1664 = vadd.s32 %v1660, 3
    %v1665 = vand.u32 %v1664, 3
    %vm1666 = vcmp.lt.s32.totalorder %v1665, 2
    %vm1667 = vcmp.eq.s32.totalorder %v1665, 0
    %v1668 = vxor.u32 %v1662, 2147483648
    %v1669 = vsel %vm1667, %v1661, %v1668
    %vm1670 = vcmp.eq.s32.totalorder %v1665, 2
    %v1671 = vxor.u32 %v1661, 2147483648
    %v1672 = vsel %vm1670, %v1671, %v1662
    %v1673 = vsel %vm1666, %v1669, %v1672
    %v1674 = vsel %vm1663, nan, %v1673
    %v1675 = vand.u32 2147483647, %v114
    %vm1676 = vcmp.le.f32.partialorder %v1675, 0.7853982
    %vm1677 = vcmp.lt.s32.totalorder %v114, 0
    %v1678 = vand.u32 %v114, 2139095040
    %v1679 = vshrl.u32 %v1678, 23
    %v1680 = vsub.s32 %v1679, 127
    %v1681 = vand.u32 2147483647, %v114
    %v1682 = vand.u32 %v1681, 8388607
    %v1683 = vor.u32 %v1682, 8388608
    %v1684 = vsub.s32 0, %v1683
    %v1685 = vadd.s32 %v1680, 1
    %vm1686 = vcmp.gt.s32.totalorder %v1685, 0
    %v1687 = vsel %vm1686, %v1685, 0
    %v1688 = vshrl.u32 %v1687, 5
    %v1689 = vand.u32 %v1687, 31
    %v1690 = vsub.s32 32, %v1689
    %v1691 = vshrl.u32 683565275, %v1690
    %v1692 = vshll.u32 683565275, %v1689
    %v1693 = vshrl.u32 2475754826, %v1690
    %v1694 = vor.u32 %v1692, %v1693
    %v1695 = vshll.u32 2475754826, %v1689
    %v1696 = vshrl.u32 2131351028, %v1690
    %v1697 = vor.u32 %v1695, %v1696
    %v1698 = vshll.u32 2131351028, %v1689
    %v1699 = vshrl.u32 2102212464, %v1690
    %v1700 = vor.u32 %v1698, %v1699
    %v1701 = vshll.u32 2102212464, %v1689
    %v1702 = vshrl.u32 920167782, %v1690
    %v1703 = vor.u32 %v1701, %v1702
    %v1704 = vshll.u32 920167782, %v1689
    %v1705 = vshrl.u32 1326507024, %v1690
    %v1706 = vor.u32 %v1704, %v1705
    %vm1707 = vcmp.lt.s32.totalorder %v1688, 1
    %vm1708 = vcmp.lt.s32.totalorder %v1688, 2
    %vm1709 = vcmp.lt.s32.totalorder %v1688, 3
    %vm1710 = vcmp.lt.s32.totalorder %v1688, 4
    %v1711 = vsel %vm1707, %v1691, %v1694
    %v1712 = vsel %vm1710, %v1700, 2102212464
    %v1713 = vsel %vm1709, %v1697, %v1712
    %v1714 = vsel %vm1708, %v1711, %v1713
    %v1715 = vsel %vm1707, %v1694, %v1697
    %v1716 = vsel %vm1710, %v1703, 920167782
    %v1717 = vsel %vm1709, %v1700, %v1716
    %v1718 = vsel %vm1708, %v1715, %v1717
    %v1719 = vsel %vm1707, %v1697, %v1700
    %v1720 = vsel %vm1710, %v1706, 1326507024
    %v1721 = vsel %vm1709, %v1703, %v1720
    %v1722 = vsel %vm1708, %v1719, %v1721
    %v1723 = vshll.u32 %v1683, 8
    %v1724 = vmul.u32.u64.compose %v1723, %v1722
    %v1725 = vextract.low.u32 %v1724
    %v1726 = vextract.high.u32 %v1724
    %v1727 = vmul.u32.u64.compose %v1723, %v1718
    %v1728 = vextract.low.u32 %v1727
    %v1729 = vextract.high.u32 %v1727
    %v1730 = vmul.u32 %v1723, %v1714
    %v1731 = vadd.s32 %v1726, %v1728
    %vm1732 = vc.u32 %v1726, %v1728
    %v1733 = vadd.s32 %v1729, 1
    %v1734 = vsel %vm1732, %v1733, %v1729
    %v1735 = vadd.s32 %v1730, %v1734
    %v1736 = vadd.s32 %v1735, 536870912
    %v1737 = vshrl.u32 %v1736, 30
    %v1738 = vshll.u32 %v1737, 30
    %v1739 = vsub.s32 %v1735, %v1738
    %vm1740 = vcmp.lt.s32.totalorder %v1739, 0
    %v1741 = vsub.s32 0, %v1739
    %v1742 = vsel %vm1740, %v1741, %v1739
    %v1743 = vclz %v1742
    %v1744 = vsub.s32 %v1743, 2
    %vm1745 = vcmp.gt.s32.totalorder 0, %v1744
    %v1746 = vsel %vm1745, 0, %v1744
    %v1747 = vsub.s32 32, %v1746
    %v1748 = vshll.u32 %v1739, %v1746
    %v1749 = vshrl.u32 %v1731, %v1747
    %v1750 = vor.u32 %v1748, %v1749
    %v1751 = vsub.s32 4294967266, %v1746
    %v1752 = vadd.s32 %v1751, 127
    %v1753 = vshll.u32 %v1752, 23
    %v1754 = vor.u32 4788187, %v1753
    %v1755 = vand.u32 2147483647, %v1754
    %v1757 = vcvt.s32.f32 %v1750
    %v1758 = vmul.f32 %v1757, %v1755
    %v1759 = vxor.u32 %v1758, 2147483648
    %v1760 = vsel %vm1677, %v1759, %v1758
    %v1761 = vsub.s32 4, %v1737
    %v1762 = vsel %vm1677, %v1761, %v1737
    %v1763 = vsel %vm1676, %v114, %v1760
    %v1764 = vsel %vm1676, 0, %v1762
    %v1765 = vcosq.f32.pop %v1763
    %v1766 = vsinq.f32.pop %v1763
    %vm1767 = vweird.f32 %v114
    %v1768 = vadd.s32 %v1764, 3
    %v1769 = vand.u32 %v1768, 3
    %vm1770 = vcmp.lt.s32.totalorder %v1769, 2
    %vm1771 = vcmp.eq.s32.totalorder %v1769, 0
    %v1772 = vxor.u32 %v1766, 2147483648
    %v1773 = vsel %vm1771, %v1765, %v1772
    %vm1774 = vcmp.eq.s32.totalorder %v1769, 2
    %v1775 = vxor.u32 %v1765, 2147483648
    %v1776 = vsel %vm1774, %v1775, %v1766
    %v1777 = vsel %vm1770, %v1773, %v1776
    %v1778 = vsel %vm1767, nan, %v1777
    %v1779 = vpack.c.bf16 %v426, %v218
    %v1780 = vpack.c.bf16 %v530, %v322
    %v1781 = vpack.c.bf16 %v842, %v634
    %v1782 = vpack.c.bf16 %v946, %v738
    %v1783 = vpack.c.bf16 %v1258, %v1050
    %v1784 = vpack.c.bf16 %v1362, %v1154
    %v1785 = vpack.c.bf16 %v1674, %v1466
    %v1786 = vpack.c.bf16 %v1778, %v1570
    %v1787 = vand.u32 2147483647, %v99
    %vm1788 = vcmp.le.f32.partialorder %v1787, 0.7853982
    %vm1789 = vcmp.lt.s32.totalorder %v99, 0
    %v1790 = vand.u32 %v99, 2139095040
    %v1791 = vshrl.u32 %v1790, 23
    %v1792 = vsub.s32 %v1791, 127
    %v1793 = vand.u32 2147483647, %v99
    %v1794 = vand.u32 %v1793, 8388607
    %v1795 = vor.u32 %v1794, 8388608
    %v1796 = vsub.s32 0, %v1795
    %v1797 = vadd.s32 %v1792, 1
    %vm1798 = vcmp.gt.s32.totalorder %v1797, 0
    %v1799 = vsel %vm1798, %v1797, 0
    %v1800 = vshrl.u32 %v1799, 5
    %v1801 = vand.u32 %v1799, 31
    %v1802 = vsub.s32 32, %v1801
    %v1803 = vshrl.u32 683565275, %v1802
    %v1804 = vshll.u32 683565275, %v1801
    %v1805 = vshrl.u32 2475754826, %v1802
    %v1806 = vor.u32 %v1804, %v1805
    %v1807 = vshll.u32 2475754826, %v1801
    %v1808 = vshrl.u32 2131351028, %v1802
    %v1809 = vor.u32 %v1807, %v1808
    %v1810 = vshll.u32 2131351028, %v1801
    %v1811 = vshrl.u32 2102212464, %v1802
    %v1812 = vor.u32 %v1810, %v1811
    %v1813 = vshll.u32 2102212464, %v1801
    %v1814 = vshrl.u32 920167782, %v1802
    %v1815 = vor.u32 %v1813, %v1814
    %v1816 = vshll.u32 920167782, %v1801
    %v1817 = vshrl.u32 1326507024, %v1802
    %v1818 = vor.u32 %v1816, %v1817
    %vm1819 = vcmp.lt.s32.totalorder %v1800, 1
    %vm1820 = vcmp.lt.s32.totalorder %v1800, 2
    %vm1821 = vcmp.lt.s32.totalorder %v1800, 3
    %vm1822 = vcmp.lt.s32.totalorder %v1800, 4
    %v1823 = vsel %vm1819, %v1803, %v1806
    %v1824 = vsel %vm1822, %v1812, 2102212464
    %v1825 = vsel %vm1821, %v1809, %v1824
    %v1826 = vsel %vm1820, %v1823, %v1825
    %v1827 = vsel %vm1819, %v1806, %v1809
    %v1828 = vsel %vm1822, %v1815, 920167782
    %v1829 = vsel %vm1821, %v1812, %v1828
    %v1830 = vsel %vm1820, %v1827, %v1829
    %v1831 = vsel %vm1819, %v1809, %v1812
    %v1832 = vsel %vm1822, %v1818, 1326507024
    %v1833 = vsel %vm1821, %v1815, %v1832
    %v1834 = vsel %vm1820, %v1831, %v1833
    %v1835 = vshll.u32 %v1795, 8
    %v1836 = vmul.u32.u64.compose %v1835, %v1834
    %v1837 = vextract.low.u32 %v1836
    %v1838 = vextract.high.u32 %v1836
    %v1839 = vmul.u32.u64.compose %v1835, %v1830
    %v1840 = vextract.low.u32 %v1839
    %v1841 = vextract.high.u32 %v1839
    %v1842 = vmul.u32 %v1835, %v1826
    %v1843 = vadd.s32 %v1838, %v1840
    %vm1844 = vc.u32 %v1838, %v1840
    %v1845 = vadd.s32 %v1841, 1
    %v1846 = vsel %vm1844, %v1845, %v1841
    %v1847 = vadd.s32 %v1842, %v1846
    %v1848 = vadd.s32 %v1847, 536870912
    %v1849 = vshrl.u32 %v1848, 30
    %v1850 = vshll.u32 %v1849, 30
    %v1851 = vsub.s32 %v1847, %v1850
    %vm1852 = vcmp.lt.s32.totalorder %v1851, 0
    %v1853 = vsub.s32 0, %v1851
    %v1854 = vsel %vm1852, %v1853, %v1851
    %v1855 = vclz %v1854
    %v1856 = vsub.s32 %v1855, 2
    %vm1857 = vcmp.gt.s32.totalorder 0, %v1856
    %v1858 = vsel %vm1857, 0, %v1856
    %v1859 = vsub.s32 32, %v1858
    %v1860 = vshll.u32 %v1851, %v1858
    %v1861 = vshrl.u32 %v1843, %v1859
    %v1862 = vor.u32 %v1860, %v1861
    %v1863 = vsub.s32 4294967266, %v1858
    %v1864 = vadd.s32 %v1863, 127
    %v1865 = vshll.u32 %v1864, 23
    %v1866 = vor.u32 4788187, %v1865
    %v1867 = vand.u32 2147483647, %v1866
    %v1869 = vcvt.s32.f32 %v1862
    %v1870 = vmul.f32 %v1869, %v1867
    %v1871 = vxor.u32 %v1870, 2147483648
    %v1872 = vsel %vm1789, %v1871, %v1870
    %v1873 = vsub.s32 4, %v1849
    %v1874 = vsel %vm1789, %v1873, %v1849
    %v1875 = vsel %vm1788, %v99, %v1872
    %v1876 = vsel %vm1788, 0, %v1874
    %v1877 = vcosq.f32.pop %v1875
    %v1878 = vsinq.f32.pop %v1875
    %vm1879 = vweird.f32 %v99
    %v1880 = vand.u32 %v1876, 3
    %vm1881 = vcmp.lt.s32.totalorder %v1880, 2
    %vm1882 = vcmp.eq.s32.totalorder %v1880, 0
    %v1883 = vxor.u32 %v1878, 2147483648
    %v1884 = vsel %vm1882, %v1877, %v1883
    %vm1885 = vcmp.eq.s32.totalorder %v1880, 2
    %v1886 = vxor.u32 %v1877, 2147483648
    %v1887 = vsel %vm1885, %v1886, %v1878
    %v1888 = vsel %vm1881, %v1884, %v1887
    %v1889 = vsel %vm1879, nan, %v1888
    %v1890 = vand.u32 2147483647, %v100
    %vm1891 = vcmp.le.f32.partialorder %v1890, 0.7853982
    %vm1892 = vcmp.lt.s32.totalorder %v100, 0
    %v1893 = vand.u32 %v100, 2139095040
    %v1894 = vshrl.u32 %v1893, 23
    %v1895 = vsub.s32 %v1894, 127
    %v1896 = vand.u32 2147483647, %v100
    %v1897 = vand.u32 %v1896, 8388607
    %v1898 = vor.u32 %v1897, 8388608
    %v1899 = vsub.s32 0, %v1898
    %v1900 = vadd.s32 %v1895, 1
    %vm1901 = vcmp.gt.s32.totalorder %v1900, 0
    %v1902 = vsel %vm1901, %v1900, 0
    %v1903 = vshrl.u32 %v1902, 5
    %v1904 = vand.u32 %v1902, 31
    %v1905 = vsub.s32 32, %v1904
    %v1906 = vshrl.u32 683565275, %v1905
    %v1907 = vshll.u32 683565275, %v1904
    %v1908 = vshrl.u32 2475754826, %v1905
    %v1909 = vor.u32 %v1907, %v1908
    %v1910 = vshll.u32 2475754826, %v1904
    %v1911 = vshrl.u32 2131351028, %v1905
    %v1912 = vor.u32 %v1910, %v1911
    %v1913 = vshll.u32 2131351028, %v1904
    %v1914 = vshrl.u32 2102212464, %v1905
    %v1915 = vor.u32 %v1913, %v1914
    %v1916 = vshll.u32 2102212464, %v1904
    %v1917 = vshrl.u32 920167782, %v1905
    %v1918 = vor.u32 %v1916, %v1917
    %v1919 = vshll.u32 920167782, %v1904
    %v1920 = vshrl.u32 1326507024, %v1905
    %v1921 = vor.u32 %v1919, %v1920
    %vm1922 = vcmp.lt.s32.totalorder %v1903, 1
    %vm1923 = vcmp.lt.s32.totalorder %v1903, 2
    %vm1924 = vcmp.lt.s32.totalorder %v1903, 3
    %vm1925 = vcmp.lt.s32.totalorder %v1903, 4
    %v1926 = vsel %vm1922, %v1906, %v1909
    %v1927 = vsel %vm1925, %v1915, 2102212464
    %v1928 = vsel %vm1924, %v1912, %v1927
    %v1929 = vsel %vm1923, %v1926, %v1928
    %v1930 = vsel %vm1922, %v1909, %v1912
    %v1931 = vsel %vm1925, %v1918, 920167782
    %v1932 = vsel %vm1924, %v1915, %v1931
    %v1933 = vsel %vm1923, %v1930, %v1932
    %v1934 = vsel %vm1922, %v1912, %v1915
    %v1935 = vsel %vm1925, %v1921, 1326507024
    %v1936 = vsel %vm1924, %v1918, %v1935
    %v1937 = vsel %vm1923, %v1934, %v1936
    %v1938 = vshll.u32 %v1898, 8
    %v1939 = vmul.u32.u64.compose %v1938, %v1937
    %v1940 = vextract.low.u32 %v1939
    %v1941 = vextract.high.u32 %v1939
    %v1942 = vmul.u32.u64.compose %v1938, %v1933
    %v1943 = vextract.low.u32 %v1942
    %v1944 = vextract.high.u32 %v1942
    %v1945 = vmul.u32 %v1938, %v1929
    %v1946 = vadd.s32 %v1941, %v1943
    %vm1947 = vc.u32 %v1941, %v1943
    %v1948 = vadd.s32 %v1944, 1
    %v1949 = vsel %vm1947, %v1948, %v1944
    %v1950 = vadd.s32 %v1945, %v1949
    %v1951 = vadd.s32 %v1950, 536870912
    %v1952 = vshrl.u32 %v1951, 30
    %v1953 = vshll.u32 %v1952, 30
    %v1954 = vsub.s32 %v1950, %v1953
    %vm1955 = vcmp.lt.s32.totalorder %v1954, 0
    %v1956 = vsub.s32 0, %v1954
    %v1957 = vsel %vm1955, %v1956, %v1954
    %v1958 = vclz %v1957
    %v1959 = vsub.s32 %v1958, 2
    %vm1960 = vcmp.gt.s32.totalorder 0, %v1959
    %v1961 = vsel %vm1960, 0, %v1959
    %v1962 = vsub.s32 32, %v1961
    %v1963 = vshll.u32 %v1954, %v1961
    %v1964 = vshrl.u32 %v1946, %v1962
    %v1965 = vor.u32 %v1963, %v1964
    %v1966 = vsub.s32 4294967266, %v1961
    %v1967 = vadd.s32 %v1966, 127
    %v1968 = vshll.u32 %v1967, 23
    %v1969 = vor.u32 4788187, %v1968
    %v1970 = vand.u32 2147483647, %v1969
    %v1972 = vcvt.s32.f32 %v1965
    %v1973 = vmul.f32 %v1972, %v1970
    %v1974 = vxor.u32 %v1973, 2147483648
    %v1975 = vsel %vm1892, %v1974, %v1973
    %v1976 = vsub.s32 4, %v1952
    %v1977 = vsel %vm1892, %v1976, %v1952
    %v1978 = vsel %vm1891, %v100, %v1975
    %v1979 = vsel %vm1891, 0, %v1977
    %v1980 = vcosq.f32.pop %v1978
    %v1981 = vsinq.f32.pop %v1978
    %vm1982 = vweird.f32 %v100
    %v1983 = vand.u32 %v1979, 3
    %vm1984 = vcmp.lt.s32.totalorder %v1983, 2
    %vm1985 = vcmp.eq.s32.totalorder %v1983, 0
    %v1986 = vxor.u32 %v1981, 2147483648
    %v1987 = vsel %vm1985, %v1980, %v1986
    %vm1988 = vcmp.eq.s32.totalorder %v1983, 2
    %v1989 = vxor.u32 %v1980, 2147483648
    %v1990 = vsel %vm1988, %v1989, %v1981
    %v1991 = vsel %vm1984, %v1987, %v1990
    %v1992 = vsel %vm1982, nan, %v1991
    %v1993 = vand.u32 2147483647, %v101
    %vm1994 = vcmp.le.f32.partialorder %v1993, 0.7853982
    %vm1995 = vcmp.lt.s32.totalorder %v101, 0
    %v1996 = vand.u32 %v101, 2139095040
    %v1997 = vshrl.u32 %v1996, 23
    %v1998 = vsub.s32 %v1997, 127
    %v1999 = vand.u32 2147483647, %v101
    %v2000 = vand.u32 %v1999, 8388607
    %v2001 = vor.u32 %v2000, 8388608
    %v2002 = vsub.s32 0, %v2001
    %v2003 = vadd.s32 %v1998, 1
    %vm2004 = vcmp.gt.s32.totalorder %v2003, 0
    %v2005 = vsel %vm2004, %v2003, 0
    %v2006 = vshrl.u32 %v2005, 5
    %v2007 = vand.u32 %v2005, 31
    %v2008 = vsub.s32 32, %v2007
    %v2009 = vshrl.u32 683565275, %v2008
    %v2010 = vshll.u32 683565275, %v2007
    %v2011 = vshrl.u32 2475754826, %v2008
    %v2012 = vor.u32 %v2010, %v2011
    %v2013 = vshll.u32 2475754826, %v2007
    %v2014 = vshrl.u32 2131351028, %v2008
    %v2015 = vor.u32 %v2013, %v2014
    %v2016 = vshll.u32 2131351028, %v2007
    %v2017 = vshrl.u32 2102212464, %v2008
    %v2018 = vor.u32 %v2016, %v2017
    %v2019 = vshll.u32 2102212464, %v2007
    %v2020 = vshrl.u32 920167782, %v2008
    %v2021 = vor.u32 %v2019, %v2020
    %v2022 = vshll.u32 920167782, %v2007
    %v2023 = vshrl.u32 1326507024, %v2008
    %v2024 = vor.u32 %v2022, %v2023
    %vm2025 = vcmp.lt.s32.totalorder %v2006, 1
    %vm2026 = vcmp.lt.s32.totalorder %v2006, 2
    %vm2027 = vcmp.lt.s32.totalorder %v2006, 3
    %vm2028 = vcmp.lt.s32.totalorder %v2006, 4
    %v2029 = vsel %vm2025, %v2009, %v2012
    %v2030 = vsel %vm2028, %v2018, 2102212464
    %v2031 = vsel %vm2027, %v2015, %v2030
    %v2032 = vsel %vm2026, %v2029, %v2031
    %v2033 = vsel %vm2025, %v2012, %v2015
    %v2034 = vsel %vm2028, %v2021, 920167782
    %v2035 = vsel %vm2027, %v2018, %v2034
    %v2036 = vsel %vm2026, %v2033, %v2035
    %v2037 = vsel %vm2025, %v2015, %v2018
    %v2038 = vsel %vm2028, %v2024, 1326507024
    %v2039 = vsel %vm2027, %v2021, %v2038
    %v2040 = vsel %vm2026, %v2037, %v2039
    %v2041 = vshll.u32 %v2001, 8
    %v2042 = vmul.u32.u64.compose %v2041, %v2040
    %v2043 = vextract.low.u32 %v2042
    %v2044 = vextract.high.u32 %v2042
    %v2045 = vmul.u32.u64.compose %v2041, %v2036
    %v2046 = vextract.low.u32 %v2045
    %v2047 = vextract.high.u32 %v2045
    %v2048 = vmul.u32 %v2041, %v2032
    %v2049 = vadd.s32 %v2044, %v2046
    %vm2050 = vc.u32 %v2044, %v2046
    %v2051 = vadd.s32 %v2047, 1
    %v2052 = vsel %vm2050, %v2051, %v2047
    %v2053 = vadd.s32 %v2048, %v2052
    %v2054 = vadd.s32 %v2053, 536870912
    %v2055 = vshrl.u32 %v2054, 30
    %v2056 = vshll.u32 %v2055, 30
    %v2057 = vsub.s32 %v2053, %v2056
    %vm2058 = vcmp.lt.s32.totalorder %v2057, 0
    %v2059 = vsub.s32 0, %v2057
    %v2060 = vsel %vm2058, %v2059, %v2057
    %v2061 = vclz %v2060
    %v2062 = vsub.s32 %v2061, 2
    %vm2063 = vcmp.gt.s32.totalorder 0, %v2062
    %v2064 = vsel %vm2063, 0, %v2062
    %v2065 = vsub.s32 32, %v2064
    %v2066 = vshll.u32 %v2057, %v2064
    %v2067 = vshrl.u32 %v2049, %v2065
    %v2068 = vor.u32 %v2066, %v2067
    %v2069 = vsub.s32 4294967266, %v2064
    %v2070 = vadd.s32 %v2069, 127
    %v2071 = vshll.u32 %v2070, 23
    %v2072 = vor.u32 4788187, %v2071
    %v2073 = vand.u32 2147483647, %v2072
    %v2075 = vcvt.s32.f32 %v2068
    %v2076 = vmul.f32 %v2075, %v2073
    %v2077 = vxor.u32 %v2076, 2147483648
    %v2078 = vsel %vm1995, %v2077, %v2076
    %v2079 = vsub.s32 4, %v2055
    %v2080 = vsel %vm1995, %v2079, %v2055
    %v2081 = vsel %vm1994, %v101, %v2078
    %v2082 = vsel %vm1994, 0, %v2080
    %v2083 = vcosq.f32.pop %v2081
    %v2084 = vsinq.f32.pop %v2081
    %vm2085 = vweird.f32 %v101
    %v2086 = vand.u32 %v2082, 3
    %vm2087 = vcmp.lt.s32.totalorder %v2086, 2
    %vm2088 = vcmp.eq.s32.totalorder %v2086, 0
    %v2089 = vxor.u32 %v2084, 2147483648
    %v2090 = vsel %vm2088, %v2083, %v2089
    %vm2091 = vcmp.eq.s32.totalorder %v2086, 2
    %v2092 = vxor.u32 %v2083, 2147483648
    %v2093 = vsel %vm2091, %v2092, %v2084
    %v2094 = vsel %vm2087, %v2090, %v2093
    %v2095 = vsel %vm2085, nan, %v2094
    %v2096 = vand.u32 2147483647, %v102
    %vm2097 = vcmp.le.f32.partialorder %v2096, 0.7853982
    %vm2098 = vcmp.lt.s32.totalorder %v102, 0
    %v2099 = vand.u32 %v102, 2139095040
    %v2100 = vshrl.u32 %v2099, 23
    %v2101 = vsub.s32 %v2100, 127
    %v2102 = vand.u32 2147483647, %v102
    %v2103 = vand.u32 %v2102, 8388607
    %v2104 = vor.u32 %v2103, 8388608
    %v2105 = vsub.s32 0, %v2104
    %v2106 = vadd.s32 %v2101, 1
    %vm2107 = vcmp.gt.s32.totalorder %v2106, 0
    %v2108 = vsel %vm2107, %v2106, 0
    %v2109 = vshrl.u32 %v2108, 5
    %v2110 = vand.u32 %v2108, 31
    %v2111 = vsub.s32 32, %v2110
    %v2112 = vshrl.u32 683565275, %v2111
    %v2113 = vshll.u32 683565275, %v2110
    %v2114 = vshrl.u32 2475754826, %v2111
    %v2115 = vor.u32 %v2113, %v2114
    %v2116 = vshll.u32 2475754826, %v2110
    %v2117 = vshrl.u32 2131351028, %v2111
    %v2118 = vor.u32 %v2116, %v2117
    %v2119 = vshll.u32 2131351028, %v2110
    %v2120 = vshrl.u32 2102212464, %v2111
    %v2121 = vor.u32 %v2119, %v2120
    %v2122 = vshll.u32 2102212464, %v2110
    %v2123 = vshrl.u32 920167782, %v2111
    %v2124 = vor.u32 %v2122, %v2123
    %v2125 = vshll.u32 920167782, %v2110
    %v2126 = vshrl.u32 1326507024, %v2111
    %v2127 = vor.u32 %v2125, %v2126
    %vm2128 = vcmp.lt.s32.totalorder %v2109, 1
    %vm2129 = vcmp.lt.s32.totalorder %v2109, 2
    %vm2130 = vcmp.lt.s32.totalorder %v2109, 3
    %vm2131 = vcmp.lt.s32.totalorder %v2109, 4
    %v2132 = vsel %vm2128, %v2112, %v2115
    %v2133 = vsel %vm2131, %v2121, 2102212464
    %v2134 = vsel %vm2130, %v2118, %v2133
    %v2135 = vsel %vm2129, %v2132, %v2134
    %v2136 = vsel %vm2128, %v2115, %v2118
    %v2137 = vsel %vm2131, %v2124, 920167782
    %v2138 = vsel %vm2130, %v2121, %v2137
    %v2139 = vsel %vm2129, %v2136, %v2138
    %v2140 = vsel %vm2128, %v2118, %v2121
    %v2141 = vsel %vm2131, %v2127, 1326507024
    %v2142 = vsel %vm2130, %v2124, %v2141
    %v2143 = vsel %vm2129, %v2140, %v2142
    %v2144 = vshll.u32 %v2104, 8
    %v2145 = vmul.u32.u64.compose %v2144, %v2143
    %v2146 = vextract.low.u32 %v2145
    %v2147 = vextract.high.u32 %v2145
    %v2148 = vmul.u32.u64.compose %v2144, %v2139
    %v2149 = vextract.low.u32 %v2148
    %v2150 = vextract.high.u32 %v2148
    %v2151 = vmul.u32 %v2144, %v2135
    %v2152 = vadd.s32 %v2147, %v2149
    %vm2153 = vc.u32 %v2147, %v2149
    %v2154 = vadd.s32 %v2150, 1
    %v2155 = vsel %vm2153, %v2154, %v2150
    %v2156 = vadd.s32 %v2151, %v2155
    %v2157 = vadd.s32 %v2156, 536870912
    %v2158 = vshrl.u32 %v2157, 30
    %v2159 = vshll.u32 %v2158, 30
    %v2160 = vsub.s32 %v2156, %v2159
    %vm2161 = vcmp.lt.s32.totalorder %v2160, 0
    %v2162 = vsub.s32 0, %v2160
    %v2163 = vsel %vm2161, %v2162, %v2160
    %v2164 = vclz %v2163
    %v2165 = vsub.s32 %v2164, 2
    %vm2166 = vcmp.gt.s32.totalorder 0, %v2165
    %v2167 = vsel %vm2166, 0, %v2165
    %v2168 = vsub.s32 32, %v2167
    %v2169 = vshll.u32 %v2160, %v2167
    %v2170 = vshrl.u32 %v2152, %v2168
    %v2171 = vor.u32 %v2169, %v2170
    %v2172 = vsub.s32 4294967266, %v2167
    %v2173 = vadd.s32 %v2172, 127
    %v2174 = vshll.u32 %v2173, 23
    %v2175 = vor.u32 4788187, %v2174
    %v2176 = vand.u32 2147483647, %v2175
    %v2178 = vcvt.s32.f32 %v2171
    %v2179 = vmul.f32 %v2178, %v2176
    %v2180 = vxor.u32 %v2179, 2147483648
    %v2181 = vsel %vm2098, %v2180, %v2179
    %v2182 = vsub.s32 4, %v2158
    %v2183 = vsel %vm2098, %v2182, %v2158
    %v2184 = vsel %vm2097, %v102, %v2181
    %v2185 = vsel %vm2097, 0, %v2183
    %v2186 = vcosq.f32.pop %v2184
    %v2187 = vsinq.f32.pop %v2184
    %vm2188 = vweird.f32 %v102
    %v2189 = vand.u32 %v2185, 3
    %vm2190 = vcmp.lt.s32.totalorder %v2189, 2
    %vm2191 = vcmp.eq.s32.totalorder %v2189, 0
    %v2192 = vxor.u32 %v2187, 2147483648
    %v2193 = vsel %vm2191, %v2186, %v2192
    %vm2194 = vcmp.eq.s32.totalorder %v2189, 2
    %v2195 = vxor.u32 %v2186, 2147483648
    %v2196 = vsel %vm2194, %v2195, %v2187
    %v2197 = vsel %vm2190, %v2193, %v2196
    %v2198 = vsel %vm2188, nan, %v2197
    %v2199 = vand.u32 2147483647, %v103
    %vm2200 = vcmp.le.f32.partialorder %v2199, 0.7853982
    %vm2201 = vcmp.lt.s32.totalorder %v103, 0
    %v2202 = vand.u32 %v103, 2139095040
    %v2203 = vshrl.u32 %v2202, 23
    %v2204 = vsub.s32 %v2203, 127
    %v2205 = vand.u32 2147483647, %v103
    %v2206 = vand.u32 %v2205, 8388607
    %v2207 = vor.u32 %v2206, 8388608
    %v2208 = vsub.s32 0, %v2207
    %v2209 = vadd.s32 %v2204, 1
    %vm2210 = vcmp.gt.s32.totalorder %v2209, 0
    %v2211 = vsel %vm2210, %v2209, 0
    %v2212 = vshrl.u32 %v2211, 5
    %v2213 = vand.u32 %v2211, 31
    %v2214 = vsub.s32 32, %v2213
    %v2215 = vshrl.u32 683565275, %v2214
    %v2216 = vshll.u32 683565275, %v2213
    %v2217 = vshrl.u32 2475754826, %v2214
    %v2218 = vor.u32 %v2216, %v2217
    %v2219 = vshll.u32 2475754826, %v2213
    %v2220 = vshrl.u32 2131351028, %v2214
    %v2221 = vor.u32 %v2219, %v2220
    %v2222 = vshll.u32 2131351028, %v2213
    %v2223 = vshrl.u32 2102212464, %v2214
    %v2224 = vor.u32 %v2222, %v2223
    %v2225 = vshll.u32 2102212464, %v2213
    %v2226 = vshrl.u32 920167782, %v2214
    %v2227 = vor.u32 %v2225, %v2226
    %v2228 = vshll.u32 920167782, %v2213
    %v2229 = vshrl.u32 1326507024, %v2214
    %v2230 = vor.u32 %v2228, %v2229
    %vm2231 = vcmp.lt.s32.totalorder %v2212, 1
    %vm2232 = vcmp.lt.s32.totalorder %v2212, 2
    %vm2233 = vcmp.lt.s32.totalorder %v2212, 3
    %vm2234 = vcmp.lt.s32.totalorder %v2212, 4
    %v2235 = vsel %vm2231, %v2215, %v2218
    %v2236 = vsel %vm2234, %v2224, 2102212464
    %v2237 = vsel %vm2233, %v2221, %v2236
    %v2238 = vsel %vm2232, %v2235, %v2237
    %v2239 = vsel %vm2231, %v2218, %v2221
    %v2240 = vsel %vm2234, %v2227, 920167782
    %v2241 = vsel %vm2233, %v2224, %v2240
    %v2242 = vsel %vm2232, %v2239, %v2241
    %v2243 = vsel %vm2231, %v2221, %v2224
    %v2244 = vsel %vm2234, %v2230, 1326507024
    %v2245 = vsel %vm2233, %v2227, %v2244
    %v2246 = vsel %vm2232, %v2243, %v2245
    %v2247 = vshll.u32 %v2207, 8
    %v2248 = vmul.u32.u64.compose %v2247, %v2246
    %v2249 = vextract.low.u32 %v2248
    %v2250 = vextract.high.u32 %v2248
    %v2251 = vmul.u32.u64.compose %v2247, %v2242
    %v2252 = vextract.low.u32 %v2251
    %v2253 = vextract.high.u32 %v2251
    %v2254 = vmul.u32 %v2247, %v2238
    %v2255 = vadd.s32 %v2250, %v2252
    %vm2256 = vc.u32 %v2250, %v2252
    %v2257 = vadd.s32 %v2253, 1
    %v2258 = vsel %vm2256, %v2257, %v2253
    %v2259 = vadd.s32 %v2254, %v2258
    %v2260 = vadd.s32 %v2259, 536870912
    %v2261 = vshrl.u32 %v2260, 30
    %v2262 = vshll.u32 %v2261, 30
    %v2263 = vsub.s32 %v2259, %v2262
    %vm2264 = vcmp.lt.s32.totalorder %v2263, 0
    %v2265 = vsub.s32 0, %v2263
    %v2266 = vsel %vm2264, %v2265, %v2263
    %v2267 = vclz %v2266
    %v2268 = vsub.s32 %v2267, 2
    %vm2269 = vcmp.gt.s32.totalorder 0, %v2268
    %v2270 = vsel %vm2269, 0, %v2268
    %v2271 = vsub.s32 32, %v2270
    %v2272 = vshll.u32 %v2263, %v2270
    %v2273 = vshrl.u32 %v2255, %v2271
    %v2274 = vor.u32 %v2272, %v2273
    %v2275 = vsub.s32 4294967266, %v2270
    %v2276 = vadd.s32 %v2275, 127
    %v2277 = vshll.u32 %v2276, 23
    %v2278 = vor.u32 4788187, %v2277
    %v2279 = vand.u32 2147483647, %v2278
    %v2281 = vcvt.s32.f32 %v2274
    %v2282 = vmul.f32 %v2281, %v2279
    %v2283 = vxor.u32 %v2282, 2147483648
    %v2284 = vsel %vm2201, %v2283, %v2282
    %v2285 = vsub.s32 4, %v2261
    %v2286 = vsel %vm2201, %v2285, %v2261
    %v2287 = vsel %vm2200, %v103, %v2284
    %v2288 = vsel %vm2200, 0, %v2286
    %v2289 = vcosq.f32.pop %v2287
    %v2290 = vsinq.f32.pop %v2287
    %vm2291 = vweird.f32 %v103
    %v2292 = vand.u32 %v2288, 3
    %vm2293 = vcmp.lt.s32.totalorder %v2292, 2
    %vm2294 = vcmp.eq.s32.totalorder %v2292, 0
    %v2295 = vxor.u32 %v2290, 2147483648
    %v2296 = vsel %vm2294, %v2289, %v2295
    %vm2297 = vcmp.eq.s32.totalorder %v2292, 2
    %v2298 = vxor.u32 %v2289, 2147483648
    %v2299 = vsel %vm2297, %v2298, %v2290
    %v2300 = vsel %vm2293, %v2296, %v2299
    %v2301 = vsel %vm2291, nan, %v2300
    %v2302 = vand.u32 2147483647, %v104
    %vm2303 = vcmp.le.f32.partialorder %v2302, 0.7853982
    %vm2304 = vcmp.lt.s32.totalorder %v104, 0
    %v2305 = vand.u32 %v104, 2139095040
    %v2306 = vshrl.u32 %v2305, 23
    %v2307 = vsub.s32 %v2306, 127
    %v2308 = vand.u32 2147483647, %v104
    %v2309 = vand.u32 %v2308, 8388607
    %v2310 = vor.u32 %v2309, 8388608
    %v2311 = vsub.s32 0, %v2310
    %v2312 = vadd.s32 %v2307, 1
    %vm2313 = vcmp.gt.s32.totalorder %v2312, 0
    %v2314 = vsel %vm2313, %v2312, 0
    %v2315 = vshrl.u32 %v2314, 5
    %v2316 = vand.u32 %v2314, 31
    %v2317 = vsub.s32 32, %v2316
    %v2318 = vshrl.u32 683565275, %v2317
    %v2319 = vshll.u32 683565275, %v2316
    %v2320 = vshrl.u32 2475754826, %v2317
    %v2321 = vor.u32 %v2319, %v2320
    %v2322 = vshll.u32 2475754826, %v2316
    %v2323 = vshrl.u32 2131351028, %v2317
    %v2324 = vor.u32 %v2322, %v2323
    %v2325 = vshll.u32 2131351028, %v2316
    %v2326 = vshrl.u32 2102212464, %v2317
    %v2327 = vor.u32 %v2325, %v2326
    %v2328 = vshll.u32 2102212464, %v2316
    %v2329 = vshrl.u32 920167782, %v2317
    %v2330 = vor.u32 %v2328, %v2329
    %v2331 = vshll.u32 920167782, %v2316
    %v2332 = vshrl.u32 1326507024, %v2317
    %v2333 = vor.u32 %v2331, %v2332
    %vm2334 = vcmp.lt.s32.totalorder %v2315, 1
    %vm2335 = vcmp.lt.s32.totalorder %v2315, 2
    %vm2336 = vcmp.lt.s32.totalorder %v2315, 3
    %vm2337 = vcmp.lt.s32.totalorder %v2315, 4
    %v2338 = vsel %vm2334, %v2318, %v2321
    %v2339 = vsel %vm2337, %v2327, 2102212464
    %v2340 = vsel %vm2336, %v2324, %v2339
    %v2341 = vsel %vm2335, %v2338, %v2340
    %v2342 = vsel %vm2334, %v2321, %v2324
    %v2343 = vsel %vm2337, %v2330, 920167782
    %v2344 = vsel %vm2336, %v2327, %v2343
    %v2345 = vsel %vm2335, %v2342, %v2344
    %v2346 = vsel %vm2334, %v2324, %v2327
    %v2347 = vsel %vm2337, %v2333, 1326507024
    %v2348 = vsel %vm2336, %v2330, %v2347
    %v2349 = vsel %vm2335, %v2346, %v2348
    %v2350 = vshll.u32 %v2310, 8
    %v2351 = vmul.u32.u64.compose %v2350, %v2349
    %v2352 = vextract.low.u32 %v2351
    %v2353 = vextract.high.u32 %v2351
    %v2354 = vmul.u32.u64.compose %v2350, %v2345
    %v2355 = vextract.low.u32 %v2354
    %v2356 = vextract.high.u32 %v2354
    %v2357 = vmul.u32 %v2350, %v2341
    %v2358 = vadd.s32 %v2353, %v2355
    %vm2359 = vc.u32 %v2353, %v2355
    %v2360 = vadd.s32 %v2356, 1
    %v2361 = vsel %vm2359, %v2360, %v2356
    %v2362 = vadd.s32 %v2357, %v2361
    %v2363 = vadd.s32 %v2362, 536870912
    %v2364 = vshrl.u32 %v2363, 30
    %v2365 = vshll.u32 %v2364, 30
    %v2366 = vsub.s32 %v2362, %v2365
    %vm2367 = vcmp.lt.s32.totalorder %v2366, 0
    %v2368 = vsub.s32 0, %v2366
    %v2369 = vsel %vm2367, %v2368, %v2366
    %v2370 = vclz %v2369
    %v2371 = vsub.s32 %v2370, 2
    %vm2372 = vcmp.gt.s32.totalorder 0, %v2371
    %v2373 = vsel %vm2372, 0, %v2371
    %v2374 = vsub.s32 32, %v2373
    %v2375 = vshll.u32 %v2366, %v2373
    %v2376 = vshrl.u32 %v2358, %v2374
    %v2377 = vor.u32 %v2375, %v2376
    %v2378 = vsub.s32 4294967266, %v2373
    %v2379 = vadd.s32 %v2378, 127
    %v2380 = vshll.u32 %v2379, 23
    %v2381 = vor.u32 4788187, %v2380
    %v2382 = vand.u32 2147483647, %v2381
    %v2384 = vcvt.s32.f32 %v2377
    %v2385 = vmul.f32 %v2384, %v2382
    %v2386 = vxor.u32 %v2385, 2147483648
    %v2387 = vsel %vm2304, %v2386, %v2385
    %v2388 = vsub.s32 4, %v2364
    %v2389 = vsel %vm2304, %v2388, %v2364
    %v2390 = vsel %vm2303, %v104, %v2387
    %v2391 = vsel %vm2303, 0, %v2389
    %v2392 = vcosq.f32.pop %v2390
    %v2393 = vsinq.f32.pop %v2390
    %vm2394 = vweird.f32 %v104
    %v2395 = vand.u32 %v2391, 3
    %vm2396 = vcmp.lt.s32.totalorder %v2395, 2
    %vm2397 = vcmp.eq.s32.totalorder %v2395, 0
    %v2398 = vxor.u32 %v2393, 2147483648
    %v2399 = vsel %vm2397, %v2392, %v2398
    %vm2400 = vcmp.eq.s32.totalorder %v2395, 2
    %v2401 = vxor.u32 %v2392, 2147483648
    %v2402 = vsel %vm2400, %v2401, %v2393
    %v2403 = vsel %vm2396, %v2399, %v2402
    %v2404 = vsel %vm2394, nan, %v2403
    %v2405 = vand.u32 2147483647, %v105
    %vm2406 = vcmp.le.f32.partialorder %v2405, 0.7853982
    %vm2407 = vcmp.lt.s32.totalorder %v105, 0
    %v2408 = vand.u32 %v105, 2139095040
    %v2409 = vshrl.u32 %v2408, 23
    %v2410 = vsub.s32 %v2409, 127
    %v2411 = vand.u32 2147483647, %v105
    %v2412 = vand.u32 %v2411, 8388607
    %v2413 = vor.u32 %v2412, 8388608
    %v2414 = vsub.s32 0, %v2413
    %v2415 = vadd.s32 %v2410, 1
    %vm2416 = vcmp.gt.s32.totalorder %v2415, 0
    %v2417 = vsel %vm2416, %v2415, 0
    %v2418 = vshrl.u32 %v2417, 5
    %v2419 = vand.u32 %v2417, 31
    %v2420 = vsub.s32 32, %v2419
    %v2421 = vshrl.u32 683565275, %v2420
    %v2422 = vshll.u32 683565275, %v2419
    %v2423 = vshrl.u32 2475754826, %v2420
    %v2424 = vor.u32 %v2422, %v2423
    %v2425 = vshll.u32 2475754826, %v2419
    %v2426 = vshrl.u32 2131351028, %v2420
    %v2427 = vor.u32 %v2425, %v2426
    %v2428 = vshll.u32 2131351028, %v2419
    %v2429 = vshrl.u32 2102212464, %v2420
    %v2430 = vor.u32 %v2428, %v2429
    %v2431 = vshll.u32 2102212464, %v2419
    %v2432 = vshrl.u32 920167782, %v2420
    %v2433 = vor.u32 %v2431, %v2432
    %v2434 = vshll.u32 920167782, %v2419
    %v2435 = vshrl.u32 1326507024, %v2420
    %v2436 = vor.u32 %v2434, %v2435
    %vm2437 = vcmp.lt.s32.totalorder %v2418, 1
    %vm2438 = vcmp.lt.s32.totalorder %v2418, 2
    %vm2439 = vcmp.lt.s32.totalorder %v2418, 3
    %vm2440 = vcmp.lt.s32.totalorder %v2418, 4
    %v2441 = vsel %vm2437, %v2421, %v2424
    %v2442 = vsel %vm2440, %v2430, 2102212464
    %v2443 = vsel %vm2439, %v2427, %v2442
    %v2444 = vsel %vm2438, %v2441, %v2443
    %v2445 = vsel %vm2437, %v2424, %v2427
    %v2446 = vsel %vm2440, %v2433, 920167782
    %v2447 = vsel %vm2439, %v2430, %v2446
    %v2448 = vsel %vm2438, %v2445, %v2447
    %v2449 = vsel %vm2437, %v2427, %v2430
    %v2450 = vsel %vm2440, %v2436, 1326507024
    %v2451 = vsel %vm2439, %v2433, %v2450
    %v2452 = vsel %vm2438, %v2449, %v2451
    %v2453 = vshll.u32 %v2413, 8
    %v2454 = vmul.u32.u64.compose %v2453, %v2452
    %v2455 = vextract.low.u32 %v2454
    %v2456 = vextract.high.u32 %v2454
    %v2457 = vmul.u32.u64.compose %v2453, %v2448
    %v2458 = vextract.low.u32 %v2457
    %v2459 = vextract.high.u32 %v2457
    %v2460 = vmul.u32 %v2453, %v2444
    %v2461 = vadd.s32 %v2456, %v2458
    %vm2462 = vc.u32 %v2456, %v2458
    %v2463 = vadd.s32 %v2459, 1
    %v2464 = vsel %vm2462, %v2463, %v2459
    %v2465 = vadd.s32 %v2460, %v2464
    %v2466 = vadd.s32 %v2465, 536870912
    %v2467 = vshrl.u32 %v2466, 30
    %v2468 = vshll.u32 %v2467, 30
    %v2469 = vsub.s32 %v2465, %v2468
    %vm2470 = vcmp.lt.s32.totalorder %v2469, 0
    %v2471 = vsub.s32 0, %v2469
    %v2472 = vsel %vm2470, %v2471, %v2469
    %v2473 = vclz %v2472
    %v2474 = vsub.s32 %v2473, 2
    %vm2475 = vcmp.gt.s32.totalorder 0, %v2474
    %v2476 = vsel %vm2475, 0, %v2474
    %v2477 = vsub.s32 32, %v2476
    %v2478 = vshll.u32 %v2469, %v2476
    %v2479 = vshrl.u32 %v2461, %v2477
    %v2480 = vor.u32 %v2478, %v2479
    %v2481 = vsub.s32 4294967266, %v2476
    %v2482 = vadd.s32 %v2481, 127
    %v2483 = vshll.u32 %v2482, 23
    %v2484 = vor.u32 4788187, %v2483
    %v2485 = vand.u32 2147483647, %v2484
    %v2487 = vcvt.s32.f32 %v2480
    %v2488 = vmul.f32 %v2487, %v2485
    %v2489 = vxor.u32 %v2488, 2147483648
    %v2490 = vsel %vm2407, %v2489, %v2488
    %v2491 = vsub.s32 4, %v2467
    %v2492 = vsel %vm2407, %v2491, %v2467
    %v2493 = vsel %vm2406, %v105, %v2490
    %v2494 = vsel %vm2406, 0, %v2492
    %v2495 = vcosq.f32.pop %v2493
    %v2496 = vsinq.f32.pop %v2493
    %vm2497 = vweird.f32 %v105
    %v2498 = vand.u32 %v2494, 3
    %vm2499 = vcmp.lt.s32.totalorder %v2498, 2
    %vm2500 = vcmp.eq.s32.totalorder %v2498, 0
    %v2501 = vxor.u32 %v2496, 2147483648
    %v2502 = vsel %vm2500, %v2495, %v2501
    %vm2503 = vcmp.eq.s32.totalorder %v2498, 2
    %v2504 = vxor.u32 %v2495, 2147483648
    %v2505 = vsel %vm2503, %v2504, %v2496
    %v2506 = vsel %vm2499, %v2502, %v2505
    %v2507 = vsel %vm2497, nan, %v2506
    %v2508 = vand.u32 2147483647, %v106
    %vm2509 = vcmp.le.f32.partialorder %v2508, 0.7853982
    %vm2510 = vcmp.lt.s32.totalorder %v106, 0
    %v2511 = vand.u32 %v106, 2139095040
    %v2512 = vshrl.u32 %v2511, 23
    %v2513 = vsub.s32 %v2512, 127
    %v2514 = vand.u32 2147483647, %v106
    %v2515 = vand.u32 %v2514, 8388607
    %v2516 = vor.u32 %v2515, 8388608
    %v2517 = vsub.s32 0, %v2516
    %v2518 = vadd.s32 %v2513, 1
    %vm2519 = vcmp.gt.s32.totalorder %v2518, 0
    %v2520 = vsel %vm2519, %v2518, 0
    %v2521 = vshrl.u32 %v2520, 5
    %v2522 = vand.u32 %v2520, 31
    %v2523 = vsub.s32 32, %v2522
    %v2524 = vshrl.u32 683565275, %v2523
    %v2525 = vshll.u32 683565275, %v2522
    %v2526 = vshrl.u32 2475754826, %v2523
    %v2527 = vor.u32 %v2525, %v2526
    %v2528 = vshll.u32 2475754826, %v2522
    %v2529 = vshrl.u32 2131351028, %v2523
    %v2530 = vor.u32 %v2528, %v2529
    %v2531 = vshll.u32 2131351028, %v2522
    %v2532 = vshrl.u32 2102212464, %v2523
    %v2533 = vor.u32 %v2531, %v2532
    %v2534 = vshll.u32 2102212464, %v2522
    %v2535 = vshrl.u32 920167782, %v2523
    %v2536 = vor.u32 %v2534, %v2535
    %v2537 = vshll.u32 920167782, %v2522
    %v2538 = vshrl.u32 1326507024, %v2523
    %v2539 = vor.u32 %v2537, %v2538
    %vm2540 = vcmp.lt.s32.totalorder %v2521, 1
    %vm2541 = vcmp.lt.s32.totalorder %v2521, 2
    %vm2542 = vcmp.lt.s32.totalorder %v2521, 3
    %vm2543 = vcmp.lt.s32.totalorder %v2521, 4
    %v2544 = vsel %vm2540, %v2524, %v2527
    %v2545 = vsel %vm2543, %v2533, 2102212464
    %v2546 = vsel %vm2542, %v2530, %v2545
    %v2547 = vsel %vm2541, %v2544, %v2546
    %v2548 = vsel %vm2540, %v2527, %v2530
    %v2549 = vsel %vm2543, %v2536, 920167782
    %v2550 = vsel %vm2542, %v2533, %v2549
    %v2551 = vsel %vm2541, %v2548, %v2550
    %v2552 = vsel %vm2540, %v2530, %v2533
    %v2553 = vsel %vm2543, %v2539, 1326507024
    %v2554 = vsel %vm2542, %v2536, %v2553
    %v2555 = vsel %vm2541, %v2552, %v2554
    %v2556 = vshll.u32 %v2516, 8
    %v2557 = vmul.u32.u64.compose %v2556, %v2555
    %v2558 = vextract.low.u32 %v2557
    %v2559 = vextract.high.u32 %v2557
    %v2560 = vmul.u32.u64.compose %v2556, %v2551
    %v2561 = vextract.low.u32 %v2560
    %v2562 = vextract.high.u32 %v2560
    %v2563 = vmul.u32 %v2556, %v2547
    %v2564 = vadd.s32 %v2559, %v2561
    %vm2565 = vc.u32 %v2559, %v2561
    %v2566 = vadd.s32 %v2562, 1
    %v2567 = vsel %vm2565, %v2566, %v2562
    %v2568 = vadd.s32 %v2563, %v2567
    %v2569 = vadd.s32 %v2568, 536870912
    %v2570 = vshrl.u32 %v2569, 30
    %v2571 = vshll.u32 %v2570, 30
    %v2572 = vsub.s32 %v2568, %v2571
    %vm2573 = vcmp.lt.s32.totalorder %v2572, 0
    %v2574 = vsub.s32 0, %v2572
    %v2575 = vsel %vm2573, %v2574, %v2572
    %v2576 = vclz %v2575
    %v2577 = vsub.s32 %v2576, 2
    %vm2578 = vcmp.gt.s32.totalorder 0, %v2577
    %v2579 = vsel %vm2578, 0, %v2577
    %v2580 = vsub.s32 32, %v2579
    %v2581 = vshll.u32 %v2572, %v2579
    %v2582 = vshrl.u32 %v2564, %v2580
    %v2583 = vor.u32 %v2581, %v2582
    %v2584 = vsub.s32 4294967266, %v2579
    %v2585 = vadd.s32 %v2584, 127
    %v2586 = vshll.u32 %v2585, 23
    %v2587 = vor.u32 4788187, %v2586
    %v2588 = vand.u32 2147483647, %v2587
    %v2590 = vcvt.s32.f32 %v2583
    %v2591 = vmul.f32 %v2590, %v2588
    %v2592 = vxor.u32 %v2591, 2147483648
    %v2593 = vsel %vm2510, %v2592, %v2591
    %v2594 = vsub.s32 4, %v2570
    %v2595 = vsel %vm2510, %v2594, %v2570
    %v2596 = vsel %vm2509, %v106, %v2593
    %v2597 = vsel %vm2509, 0, %v2595
    %v2598 = vcosq.f32.pop %v2596
    %v2599 = vsinq.f32.pop %v2596
    %vm2600 = vweird.f32 %v106
    %v2601 = vand.u32 %v2597, 3
    %vm2602 = vcmp.lt.s32.totalorder %v2601, 2
    %vm2603 = vcmp.eq.s32.totalorder %v2601, 0
    %v2604 = vxor.u32 %v2599, 2147483648
    %v2605 = vsel %vm2603, %v2598, %v2604
    %vm2606 = vcmp.eq.s32.totalorder %v2601, 2
    %v2607 = vxor.u32 %v2598, 2147483648
    %v2608 = vsel %vm2606, %v2607, %v2599
    %v2609 = vsel %vm2602, %v2605, %v2608
    %v2610 = vsel %vm2600, nan, %v2609
    %v2611 = vand.u32 2147483647, %v107
    %vm2612 = vcmp.le.f32.partialorder %v2611, 0.7853982
    %vm2613 = vcmp.lt.s32.totalorder %v107, 0
    %v2614 = vand.u32 %v107, 2139095040
    %v2615 = vshrl.u32 %v2614, 23
    %v2616 = vsub.s32 %v2615, 127
    %v2617 = vand.u32 2147483647, %v107
    %v2618 = vand.u32 %v2617, 8388607
    %v2619 = vor.u32 %v2618, 8388608
    %v2620 = vsub.s32 0, %v2619
    %v2621 = vadd.s32 %v2616, 1
    %vm2622 = vcmp.gt.s32.totalorder %v2621, 0
    %v2623 = vsel %vm2622, %v2621, 0
    %v2624 = vshrl.u32 %v2623, 5
    %v2625 = vand.u32 %v2623, 31
    %v2626 = vsub.s32 32, %v2625
    %v2627 = vshrl.u32 683565275, %v2626
    %v2628 = vshll.u32 683565275, %v2625
    %v2629 = vshrl.u32 2475754826, %v2626
    %v2630 = vor.u32 %v2628, %v2629
    %v2631 = vshll.u32 2475754826, %v2625
    %v2632 = vshrl.u32 2131351028, %v2626
    %v2633 = vor.u32 %v2631, %v2632
    %v2634 = vshll.u32 2131351028, %v2625
    %v2635 = vshrl.u32 2102212464, %v2626
    %v2636 = vor.u32 %v2634, %v2635
    %v2637 = vshll.u32 2102212464, %v2625
    %v2638 = vshrl.u32 920167782, %v2626
    %v2639 = vor.u32 %v2637, %v2638
    %v2640 = vshll.u32 920167782, %v2625
    %v2641 = vshrl.u32 1326507024, %v2626
    %v2642 = vor.u32 %v2640, %v2641
    %vm2643 = vcmp.lt.s32.totalorder %v2624, 1
    %vm2644 = vcmp.lt.s32.totalorder %v2624, 2
    %vm2645 = vcmp.lt.s32.totalorder %v2624, 3
    %vm2646 = vcmp.lt.s32.totalorder %v2624, 4
    %v2647 = vsel %vm2643, %v2627, %v2630
    %v2648 = vsel %vm2646, %v2636, 2102212464
    %v2649 = vsel %vm2645, %v2633, %v2648
    %v2650 = vsel %vm2644, %v2647, %v2649
    %v2651 = vsel %vm2643, %v2630, %v2633
    %v2652 = vsel %vm2646, %v2639, 920167782
    %v2653 = vsel %vm2645, %v2636, %v2652
    %v2654 = vsel %vm2644, %v2651, %v2653
    %v2655 = vsel %vm2643, %v2633, %v2636
    %v2656 = vsel %vm2646, %v2642, 1326507024
    %v2657 = vsel %vm2645, %v2639, %v2656
    %v2658 = vsel %vm2644, %v2655, %v2657
    %v2659 = vshll.u32 %v2619, 8
    %v2660 = vmul.u32.u64.compose %v2659, %v2658
    %v2661 = vextract.low.u32 %v2660
    %v2662 = vextract.high.u32 %v2660
    %v2663 = vmul.u32.u64.compose %v2659, %v2654
    %v2664 = vextract.low.u32 %v2663
    %v2665 = vextract.high.u32 %v2663
    %v2666 = vmul.u32 %v2659, %v2650
    %v2667 = vadd.s32 %v2662, %v2664
    %vm2668 = vc.u32 %v2662, %v2664
    %v2669 = vadd.s32 %v2665, 1
    %v2670 = vsel %vm2668, %v2669, %v2665
    %v2671 = vadd.s32 %v2666, %v2670
    %v2672 = vadd.s32 %v2671, 536870912
    %v2673 = vshrl.u32 %v2672, 30
    %v2674 = vshll.u32 %v2673, 30
    %v2675 = vsub.s32 %v2671, %v2674
    %vm2676 = vcmp.lt.s32.totalorder %v2675, 0
    %v2677 = vsub.s32 0, %v2675
    %v2678 = vsel %vm2676, %v2677, %v2675
    %v2679 = vclz %v2678
    %v2680 = vsub.s32 %v2679, 2
    %vm2681 = vcmp.gt.s32.totalorder 0, %v2680
    %v2682 = vsel %vm2681, 0, %v2680
    %v2683 = vsub.s32 32, %v2682
    %v2684 = vshll.u32 %v2675, %v2682
    %v2685 = vshrl.u32 %v2667, %v2683
    %v2686 = vor.u32 %v2684, %v2685
    %v2687 = vsub.s32 4294967266, %v2682
    %v2688 = vadd.s32 %v2687, 127
    %v2689 = vshll.u32 %v2688, 23
    %v2690 = vor.u32 4788187, %v2689
    %v2691 = vand.u32 2147483647, %v2690
    %v2693 = vcvt.s32.f32 %v2686
    %v2694 = vmul.f32 %v2693, %v2691
    %v2695 = vxor.u32 %v2694, 2147483648
    %v2696 = vsel %vm2613, %v2695, %v2694
    %v2697 = vsub.s32 4, %v2673
    %v2698 = vsel %vm2613, %v2697, %v2673
    %v2699 = vsel %vm2612, %v107, %v2696
    %v2700 = vsel %vm2612, 0, %v2698
    %v2701 = vcosq.f32.pop %v2699
    %v2702 = vsinq.f32.pop %v2699
    %vm2703 = vweird.f32 %v107
    %v2704 = vand.u32 %v2700, 3
    %vm2705 = vcmp.lt.s32.totalorder %v2704, 2
    %vm2706 = vcmp.eq.s32.totalorder %v2704, 0
    %v2707 = vxor.u32 %v2702, 2147483648
    %v2708 = vsel %vm2706, %v2701, %v2707
    %vm2709 = vcmp.eq.s32.totalorder %v2704, 2
    %v2710 = vxor.u32 %v2701, 2147483648
    %v2711 = vsel %vm2709, %v2710, %v2702
    %v2712 = vsel %vm2705, %v2708, %v2711
    %v2713 = vsel %vm2703, nan, %v2712
    %v2714 = vand.u32 2147483647, %v108
    %vm2715 = vcmp.le.f32.partialorder %v2714, 0.7853982
    %vm2716 = vcmp.lt.s32.totalorder %v108, 0
    %v2717 = vand.u32 %v108, 2139095040
    %v2718 = vshrl.u32 %v2717, 23
    %v2719 = vsub.s32 %v2718, 127
    %v2720 = vand.u32 2147483647, %v108
    %v2721 = vand.u32 %v2720, 8388607
    %v2722 = vor.u32 %v2721, 8388608
    %v2723 = vsub.s32 0, %v2722
    %v2724 = vadd.s32 %v2719, 1
    %vm2725 = vcmp.gt.s32.totalorder %v2724, 0
    %v2726 = vsel %vm2725, %v2724, 0
    %v2727 = vshrl.u32 %v2726, 5
    %v2728 = vand.u32 %v2726, 31
    %v2729 = vsub.s32 32, %v2728
    %v2730 = vshrl.u32 683565275, %v2729
    %v2731 = vshll.u32 683565275, %v2728
    %v2732 = vshrl.u32 2475754826, %v2729
    %v2733 = vor.u32 %v2731, %v2732
    %v2734 = vshll.u32 2475754826, %v2728
    %v2735 = vshrl.u32 2131351028, %v2729
    %v2736 = vor.u32 %v2734, %v2735
    %v2737 = vshll.u32 2131351028, %v2728
    %v2738 = vshrl.u32 2102212464, %v2729
    %v2739 = vor.u32 %v2737, %v2738
    %v2740 = vshll.u32 2102212464, %v2728
    %v2741 = vshrl.u32 920167782, %v2729
    %v2742 = vor.u32 %v2740, %v2741
    %v2743 = vshll.u32 920167782, %v2728
    %v2744 = vshrl.u32 1326507024, %v2729
    %v2745 = vor.u32 %v2743, %v2744
    %vm2746 = vcmp.lt.s32.totalorder %v2727, 1
    %vm2747 = vcmp.lt.s32.totalorder %v2727, 2
    %vm2748 = vcmp.lt.s32.totalorder %v2727, 3
    %vm2749 = vcmp.lt.s32.totalorder %v2727, 4
    %v2750 = vsel %vm2746, %v2730, %v2733
    %v2751 = vsel %vm2749, %v2739, 2102212464
    %v2752 = vsel %vm2748, %v2736, %v2751
    %v2753 = vsel %vm2747, %v2750, %v2752
    %v2754 = vsel %vm2746, %v2733, %v2736
    %v2755 = vsel %vm2749, %v2742, 920167782
    %v2756 = vsel %vm2748, %v2739, %v2755
    %v2757 = vsel %vm2747, %v2754, %v2756
    %v2758 = vsel %vm2746, %v2736, %v2739
    %v2759 = vsel %vm2749, %v2745, 1326507024
    %v2760 = vsel %vm2748, %v2742, %v2759
    %v2761 = vsel %vm2747, %v2758, %v2760
    %v2762 = vshll.u32 %v2722, 8
    %v2763 = vmul.u32.u64.compose %v2762, %v2761
    %v2764 = vextract.low.u32 %v2763
    %v2765 = vextract.high.u32 %v2763
    %v2766 = vmul.u32.u64.compose %v2762, %v2757
    %v2767 = vextract.low.u32 %v2766
    %v2768 = vextract.high.u32 %v2766
    %v2769 = vmul.u32 %v2762, %v2753
    %v2770 = vadd.s32 %v2765, %v2767
    %vm2771 = vc.u32 %v2765, %v2767
    %v2772 = vadd.s32 %v2768, 1
    %v2773 = vsel %vm2771, %v2772, %v2768
    %v2774 = vadd.s32 %v2769, %v2773
    %v2775 = vadd.s32 %v2774, 536870912
    %v2776 = vshrl.u32 %v2775, 30
    %v2777 = vshll.u32 %v2776, 30
    %v2778 = vsub.s32 %v2774, %v2777
    %vm2779 = vcmp.lt.s32.totalorder %v2778, 0
    %v2780 = vsub.s32 0, %v2778
    %v2781 = vsel %vm2779, %v2780, %v2778
    %v2782 = vclz %v2781
    %v2783 = vsub.s32 %v2782, 2
    %vm2784 = vcmp.gt.s32.totalorder 0, %v2783
    %v2785 = vsel %vm2784, 0, %v2783
    %v2786 = vsub.s32 32, %v2785
    %v2787 = vshll.u32 %v2778, %v2785
    %v2788 = vshrl.u32 %v2770, %v2786
    %v2789 = vor.u32 %v2787, %v2788
    %v2790 = vsub.s32 4294967266, %v2785
    %v2791 = vadd.s32 %v2790, 127
    %v2792 = vshll.u32 %v2791, 23
    %v2793 = vor.u32 4788187, %v2792
    %v2794 = vand.u32 2147483647, %v2793
    %v2796 = vcvt.s32.f32 %v2789
    %v2797 = vmul.f32 %v2796, %v2794
    %v2798 = vxor.u32 %v2797, 2147483648
    %v2799 = vsel %vm2716, %v2798, %v2797
    %v2800 = vsub.s32 4, %v2776
    %v2801 = vsel %vm2716, %v2800, %v2776
    %v2802 = vsel %vm2715, %v108, %v2799
    %v2803 = vsel %vm2715, 0, %v2801
    %v2804 = vcosq.f32.pop %v2802
    %v2805 = vsinq.f32.pop %v2802
    %vm2806 = vweird.f32 %v108
    %v2807 = vand.u32 %v2803, 3
    %vm2808 = vcmp.lt.s32.totalorder %v2807, 2
    %vm2809 = vcmp.eq.s32.totalorder %v2807, 0
    %v2810 = vxor.u32 %v2805, 2147483648
    %v2811 = vsel %vm2809, %v2804, %v2810
    %vm2812 = vcmp.eq.s32.totalorder %v2807, 2
    %v2813 = vxor.u32 %v2804, 2147483648
    %v2814 = vsel %vm2812, %v2813, %v2805
    %v2815 = vsel %vm2808, %v2811, %v2814
    %v2816 = vsel %vm2806, nan, %v2815
    %v2817 = vand.u32 2147483647, %v109
    %vm2818 = vcmp.le.f32.partialorder %v2817, 0.7853982
    %vm2819 = vcmp.lt.s32.totalorder %v109, 0
    %v2820 = vand.u32 %v109, 2139095040
    %v2821 = vshrl.u32 %v2820, 23
    %v2822 = vsub.s32 %v2821, 127
    %v2823 = vand.u32 2147483647, %v109
    %v2824 = vand.u32 %v2823, 8388607
    %v2825 = vor.u32 %v2824, 8388608
    %v2826 = vsub.s32 0, %v2825
    %v2827 = vadd.s32 %v2822, 1
    %vm2828 = vcmp.gt.s32.totalorder %v2827, 0
    %v2829 = vsel %vm2828, %v2827, 0
    %v2830 = vshrl.u32 %v2829, 5
    %v2831 = vand.u32 %v2829, 31
    %v2832 = vsub.s32 32, %v2831
    %v2833 = vshrl.u32 683565275, %v2832
    %v2834 = vshll.u32 683565275, %v2831
    %v2835 = vshrl.u32 2475754826, %v2832
    %v2836 = vor.u32 %v2834, %v2835
    %v2837 = vshll.u32 2475754826, %v2831
    %v2838 = vshrl.u32 2131351028, %v2832
    %v2839 = vor.u32 %v2837, %v2838
    %v2840 = vshll.u32 2131351028, %v2831
    %v2841 = vshrl.u32 2102212464, %v2832
    %v2842 = vor.u32 %v2840, %v2841
    %v2843 = vshll.u32 2102212464, %v2831
    %v2844 = vshrl.u32 920167782, %v2832
    %v2845 = vor.u32 %v2843, %v2844
    %v2846 = vshll.u32 920167782, %v2831
    %v2847 = vshrl.u32 1326507024, %v2832
    %v2848 = vor.u32 %v2846, %v2847
    %vm2849 = vcmp.lt.s32.totalorder %v2830, 1
    %vm2850 = vcmp.lt.s32.totalorder %v2830, 2
    %vm2851 = vcmp.lt.s32.totalorder %v2830, 3
    %vm2852 = vcmp.lt.s32.totalorder %v2830, 4
    %v2853 = vsel %vm2849, %v2833, %v2836
    %v2854 = vsel %vm2852, %v2842, 2102212464
    %v2855 = vsel %vm2851, %v2839, %v2854
    %v2856 = vsel %vm2850, %v2853, %v2855
    %v2857 = vsel %vm2849, %v2836, %v2839
    %v2858 = vsel %vm2852, %v2845, 920167782
    %v2859 = vsel %vm2851, %v2842, %v2858
    %v2860 = vsel %vm2850, %v2857, %v2859
    %v2861 = vsel %vm2849, %v2839, %v2842
    %v2862 = vsel %vm2852, %v2848, 1326507024
    %v2863 = vsel %vm2851, %v2845, %v2862
    %v2864 = vsel %vm2850, %v2861, %v2863
    %v2865 = vshll.u32 %v2825, 8
    %v2866 = vmul.u32.u64.compose %v2865, %v2864
    %v2867 = vextract.low.u32 %v2866
    %v2868 = vextract.high.u32 %v2866
    %v2869 = vmul.u32.u64.compose %v2865, %v2860
    %v2870 = vextract.low.u32 %v2869
    %v2871 = vextract.high.u32 %v2869
    %v2872 = vmul.u32 %v2865, %v2856
    %v2873 = vadd.s32 %v2868, %v2870
    %vm2874 = vc.u32 %v2868, %v2870
    %v2875 = vadd.s32 %v2871, 1
    %v2876 = vsel %vm2874, %v2875, %v2871
    %v2877 = vadd.s32 %v2872, %v2876
    %v2878 = vadd.s32 %v2877, 536870912
    %v2879 = vshrl.u32 %v2878, 30
    %v2880 = vshll.u32 %v2879, 30
    %v2881 = vsub.s32 %v2877, %v2880
    %vm2882 = vcmp.lt.s32.totalorder %v2881, 0
    %v2883 = vsub.s32 0, %v2881
    %v2884 = vsel %vm2882, %v2883, %v2881
    %v2885 = vclz %v2884
    %v2886 = vsub.s32 %v2885, 2
    %vm2887 = vcmp.gt.s32.totalorder 0, %v2886
    %v2888 = vsel %vm2887, 0, %v2886
    %v2889 = vsub.s32 32, %v2888
    %v2890 = vshll.u32 %v2881, %v2888
    %v2891 = vshrl.u32 %v2873, %v2889
    %v2892 = vor.u32 %v2890, %v2891
    %v2893 = vsub.s32 4294967266, %v2888
    %v2894 = vadd.s32 %v2893, 127
    %v2895 = vshll.u32 %v2894, 23
    %v2896 = vor.u32 4788187, %v2895
    %v2897 = vand.u32 2147483647, %v2896
    %v2899 = vcvt.s32.f32 %v2892
    %v2900 = vmul.f32 %v2899, %v2897
    %v2901 = vxor.u32 %v2900, 2147483648
    %v2902 = vsel %vm2819, %v2901, %v2900
    %v2903 = vsub.s32 4, %v2879
    %v2904 = vsel %vm2819, %v2903, %v2879
    %v2905 = vsel %vm2818, %v109, %v2902
    %v2906 = vsel %vm2818, 0, %v2904
    %v2907 = vcosq.f32.pop %v2905
    %v2908 = vsinq.f32.pop %v2905
    %vm2909 = vweird.f32 %v109
    %v2910 = vand.u32 %v2906, 3
    %vm2911 = vcmp.lt.s32.totalorder %v2910, 2
    %vm2912 = vcmp.eq.s32.totalorder %v2910, 0
    %v2913 = vxor.u32 %v2908, 2147483648
    %v2914 = vsel %vm2912, %v2907, %v2913
    %vm2915 = vcmp.eq.s32.totalorder %v2910, 2
    %v2916 = vxor.u32 %v2907, 2147483648
    %v2917 = vsel %vm2915, %v2916, %v2908
    %v2918 = vsel %vm2911, %v2914, %v2917
    %v2919 = vsel %vm2909, nan, %v2918
    %v2920 = vand.u32 2147483647, %v110
    %vm2921 = vcmp.le.f32.partialorder %v2920, 0.7853982
    %vm2922 = vcmp.lt.s32.totalorder %v110, 0
    %v2923 = vand.u32 %v110, 2139095040
    %v2924 = vshrl.u32 %v2923, 23
    %v2925 = vsub.s32 %v2924, 127
    %v2926 = vand.u32 2147483647, %v110
    %v2927 = vand.u32 %v2926, 8388607
    %v2928 = vor.u32 %v2927, 8388608
    %v2929 = vsub.s32 0, %v2928
    %v2930 = vadd.s32 %v2925, 1
    %vm2931 = vcmp.gt.s32.totalorder %v2930, 0
    %v2932 = vsel %vm2931, %v2930, 0
    %v2933 = vshrl.u32 %v2932, 5
    %v2934 = vand.u32 %v2932, 31
    %v2935 = vsub.s32 32, %v2934
    %v2936 = vshrl.u32 683565275, %v2935
    %v2937 = vshll.u32 683565275, %v2934
    %v2938 = vshrl.u32 2475754826, %v2935
    %v2939 = vor.u32 %v2937, %v2938
    %v2940 = vshll.u32 2475754826, %v2934
    %v2941 = vshrl.u32 2131351028, %v2935
    %v2942 = vor.u32 %v2940, %v2941
    %v2943 = vshll.u32 2131351028, %v2934
    %v2944 = vshrl.u32 2102212464, %v2935
    %v2945 = vor.u32 %v2943, %v2944
    %v2946 = vshll.u32 2102212464, %v2934
    %v2947 = vshrl.u32 920167782, %v2935
    %v2948 = vor.u32 %v2946, %v2947
    %v2949 = vshll.u32 920167782, %v2934
    %v2950 = vshrl.u32 1326507024, %v2935
    %v2951 = vor.u32 %v2949, %v2950
    %vm2952 = vcmp.lt.s32.totalorder %v2933, 1
    %vm2953 = vcmp.lt.s32.totalorder %v2933, 2
    %vm2954 = vcmp.lt.s32.totalorder %v2933, 3
    %vm2955 = vcmp.lt.s32.totalorder %v2933, 4
    %v2956 = vsel %vm2952, %v2936, %v2939
    %v2957 = vsel %vm2955, %v2945, 2102212464
    %v2958 = vsel %vm2954, %v2942, %v2957
    %v2959 = vsel %vm2953, %v2956, %v2958
    %v2960 = vsel %vm2952, %v2939, %v2942
    %v2961 = vsel %vm2955, %v2948, 920167782
    %v2962 = vsel %vm2954, %v2945, %v2961
    %v2963 = vsel %vm2953, %v2960, %v2962
    %v2964 = vsel %vm2952, %v2942, %v2945
    %v2965 = vsel %vm2955, %v2951, 1326507024
    %v2966 = vsel %vm2954, %v2948, %v2965
    %v2967 = vsel %vm2953, %v2964, %v2966
    %v2968 = vshll.u32 %v2928, 8
    %v2969 = vmul.u32.u64.compose %v2968, %v2967
    %v2970 = vextract.low.u32 %v2969
    %v2971 = vextract.high.u32 %v2969
    %v2972 = vmul.u32.u64.compose %v2968, %v2963
    %v2973 = vextract.low.u32 %v2972
    %v2974 = vextract.high.u32 %v2972
    %v2975 = vmul.u32 %v2968, %v2959
    %v2976 = vadd.s32 %v2971, %v2973
    %vm2977 = vc.u32 %v2971, %v2973
    %v2978 = vadd.s32 %v2974, 1
    %v2979 = vsel %vm2977, %v2978, %v2974
    %v2980 = vadd.s32 %v2975, %v2979
    %v2981 = vadd.s32 %v2980, 536870912
    %v2982 = vshrl.u32 %v2981, 30
    %v2983 = vshll.u32 %v2982, 30
    %v2984 = vsub.s32 %v2980, %v2983
    %vm2985 = vcmp.lt.s32.totalorder %v2984, 0
    %v2986 = vsub.s32 0, %v2984
    %v2987 = vsel %vm2985, %v2986, %v2984
    %v2988 = vclz %v2987
    %v2989 = vsub.s32 %v2988, 2
    %vm2990 = vcmp.gt.s32.totalorder 0, %v2989
    %v2991 = vsel %vm2990, 0, %v2989
    %v2992 = vsub.s32 32, %v2991
    %v2993 = vshll.u32 %v2984, %v2991
    %v2994 = vshrl.u32 %v2976, %v2992
    %v2995 = vor.u32 %v2993, %v2994
    %v2996 = vsub.s32 4294967266, %v2991
    %v2997 = vadd.s32 %v2996, 127
    %v2998 = vshll.u32 %v2997, 23
    %v2999 = vor.u32 4788187, %v2998
    %v3000 = vand.u32 2147483647, %v2999
    %v3002 = vcvt.s32.f32 %v2995
    %v3003 = vmul.f32 %v3002, %v3000
    %v3004 = vxor.u32 %v3003, 2147483648
    %v3005 = vsel %vm2922, %v3004, %v3003
    %v3006 = vsub.s32 4, %v2982
    %v3007 = vsel %vm2922, %v3006, %v2982
    %v3008 = vsel %vm2921, %v110, %v3005
    %v3009 = vsel %vm2921, 0, %v3007
    %v3010 = vcosq.f32.pop %v3008
    %v3011 = vsinq.f32.pop %v3008
    %vm3012 = vweird.f32 %v110
    %v3013 = vand.u32 %v3009, 3
    %vm3014 = vcmp.lt.s32.totalorder %v3013, 2
    %vm3015 = vcmp.eq.s32.totalorder %v3013, 0
    %v3016 = vxor.u32 %v3011, 2147483648
    %v3017 = vsel %vm3015, %v3010, %v3016
    %vm3018 = vcmp.eq.s32.totalorder %v3013, 2
    %v3019 = vxor.u32 %v3010, 2147483648
    %v3020 = vsel %vm3018, %v3019, %v3011
    %v3021 = vsel %vm3014, %v3017, %v3020
    %v3022 = vsel %vm3012, nan, %v3021
    %v3023 = vand.u32 2147483647, %v111
    %vm3024 = vcmp.le.f32.partialorder %v3023, 0.7853982
    %vm3025 = vcmp.lt.s32.totalorder %v111, 0
    %v3026 = vand.u32 %v111, 2139095040
    %v3027 = vshrl.u32 %v3026, 23
    %v3028 = vsub.s32 %v3027, 127
    %v3029 = vand.u32 2147483647, %v111
    %v3030 = vand.u32 %v3029, 8388607
    %v3031 = vor.u32 %v3030, 8388608
    %v3032 = vsub.s32 0, %v3031
    %v3033 = vadd.s32 %v3028, 1
    %vm3034 = vcmp.gt.s32.totalorder %v3033, 0
    %v3035 = vsel %vm3034, %v3033, 0
    %v3036 = vshrl.u32 %v3035, 5
    %v3037 = vand.u32 %v3035, 31
    %v3038 = vsub.s32 32, %v3037
    %v3039 = vshrl.u32 683565275, %v3038
    %v3040 = vshll.u32 683565275, %v3037
    %v3041 = vshrl.u32 2475754826, %v3038
    %v3042 = vor.u32 %v3040, %v3041
    %v3043 = vshll.u32 2475754826, %v3037
    %v3044 = vshrl.u32 2131351028, %v3038
    %v3045 = vor.u32 %v3043, %v3044
    %v3046 = vshll.u32 2131351028, %v3037
    %v3047 = vshrl.u32 2102212464, %v3038
    %v3048 = vor.u32 %v3046, %v3047
    %v3049 = vshll.u32 2102212464, %v3037
    %v3050 = vshrl.u32 920167782, %v3038
    %v3051 = vor.u32 %v3049, %v3050
    %v3052 = vshll.u32 920167782, %v3037
    %v3053 = vshrl.u32 1326507024, %v3038
    %v3054 = vor.u32 %v3052, %v3053
    %vm3055 = vcmp.lt.s32.totalorder %v3036, 1
    %vm3056 = vcmp.lt.s32.totalorder %v3036, 2
    %vm3057 = vcmp.lt.s32.totalorder %v3036, 3
    %vm3058 = vcmp.lt.s32.totalorder %v3036, 4
    %v3059 = vsel %vm3055, %v3039, %v3042
    %v3060 = vsel %vm3058, %v3048, 2102212464
    %v3061 = vsel %vm3057, %v3045, %v3060
    %v3062 = vsel %vm3056, %v3059, %v3061
    %v3063 = vsel %vm3055, %v3042, %v3045
    %v3064 = vsel %vm3058, %v3051, 920167782
    %v3065 = vsel %vm3057, %v3048, %v3064
    %v3066 = vsel %vm3056, %v3063, %v3065
    %v3067 = vsel %vm3055, %v3045, %v3048
    %v3068 = vsel %vm3058, %v3054, 1326507024
    %v3069 = vsel %vm3057, %v3051, %v3068
    %v3070 = vsel %vm3056, %v3067, %v3069
    %v3071 = vshll.u32 %v3031, 8
    %v3072 = vmul.u32.u64.compose %v3071, %v3070
    %v3073 = vextract.low.u32 %v3072
    %v3074 = vextract.high.u32 %v3072
    %v3075 = vmul.u32.u64.compose %v3071, %v3066
    %v3076 = vextract.low.u32 %v3075
    %v3077 = vextract.high.u32 %v3075
    %v3078 = vmul.u32 %v3071, %v3062
    %v3079 = vadd.s32 %v3074, %v3076
    %vm3080 = vc.u32 %v3074, %v3076
    %v3081 = vadd.s32 %v3077, 1
    %v3082 = vsel %vm3080, %v3081, %v3077
    %v3083 = vadd.s32 %v3078, %v3082
    %v3084 = vadd.s32 %v3083, 536870912
    %v3085 = vshrl.u32 %v3084, 30
    %v3086 = vshll.u32 %v3085, 30
    %v3087 = vsub.s32 %v3083, %v3086
    %vm3088 = vcmp.lt.s32.totalorder %v3087, 0
    %v3089 = vsub.s32 0, %v3087
    %v3090 = vsel %vm3088, %v3089, %v3087
    %v3091 = vclz %v3090
    %v3092 = vsub.s32 %v3091, 2
    %vm3093 = vcmp.gt.s32.totalorder 0, %v3092
    %v3094 = vsel %vm3093, 0, %v3092
    %v3095 = vsub.s32 32, %v3094
    %v3096 = vshll.u32 %v3087, %v3094
    %v3097 = vshrl.u32 %v3079, %v3095
    %v3098 = vor.u32 %v3096, %v3097
    %v3099 = vsub.s32 4294967266, %v3094
    %v3100 = vadd.s32 %v3099, 127
    %v3101 = vshll.u32 %v3100, 23
    %v3102 = vor.u32 4788187, %v3101
    %v3103 = vand.u32 2147483647, %v3102
    %v3105 = vcvt.s32.f32 %v3098
    %v3106 = vmul.f32 %v3105, %v3103
    %v3107 = vxor.u32 %v3106, 2147483648
    %v3108 = vsel %vm3025, %v3107, %v3106
    %v3109 = vsub.s32 4, %v3085
    %v3110 = vsel %vm3025, %v3109, %v3085
    %v3111 = vsel %vm3024, %v111, %v3108
    %v3112 = vsel %vm3024, 0, %v3110
    %v3113 = vcosq.f32.pop %v3111
    %v3114 = vsinq.f32.pop %v3111
    %vm3115 = vweird.f32 %v111
    %v3116 = vand.u32 %v3112, 3
    %vm3117 = vcmp.lt.s32.totalorder %v3116, 2
    %vm3118 = vcmp.eq.s32.totalorder %v3116, 0
    %v3119 = vxor.u32 %v3114, 2147483648
    %v3120 = vsel %vm3118, %v3113, %v3119
    %vm3121 = vcmp.eq.s32.totalorder %v3116, 2
    %v3122 = vxor.u32 %v3113, 2147483648
    %v3123 = vsel %vm3121, %v3122, %v3114
    %v3124 = vsel %vm3117, %v3120, %v3123
    %v3125 = vsel %vm3115, nan, %v3124
    %v3126 = vand.u32 2147483647, %v112
    %vm3127 = vcmp.le.f32.partialorder %v3126, 0.7853982
    %vm3128 = vcmp.lt.s32.totalorder %v112, 0
    %v3129 = vand.u32 %v112, 2139095040
    %v3130 = vshrl.u32 %v3129, 23
    %v3131 = vsub.s32 %v3130, 127
    %v3132 = vand.u32 2147483647, %v112
    %v3133 = vand.u32 %v3132, 8388607
    %v3134 = vor.u32 %v3133, 8388608
    %v3135 = vsub.s32 0, %v3134
    %v3136 = vadd.s32 %v3131, 1
    %vm3137 = vcmp.gt.s32.totalorder %v3136, 0
    %v3138 = vsel %vm3137, %v3136, 0
    %v3139 = vshrl.u32 %v3138, 5
    %v3140 = vand.u32 %v3138, 31
    %v3141 = vsub.s32 32, %v3140
    %v3142 = vshrl.u32 683565275, %v3141
    %v3143 = vshll.u32 683565275, %v3140
    %v3144 = vshrl.u32 2475754826, %v3141
    %v3145 = vor.u32 %v3143, %v3144
    %v3146 = vshll.u32 2475754826, %v3140
    %v3147 = vshrl.u32 2131351028, %v3141
    %v3148 = vor.u32 %v3146, %v3147
    %v3149 = vshll.u32 2131351028, %v3140
    %v3150 = vshrl.u32 2102212464, %v3141
    %v3151 = vor.u32 %v3149, %v3150
    %v3152 = vshll.u32 2102212464, %v3140
    %v3153 = vshrl.u32 920167782, %v3141
    %v3154 = vor.u32 %v3152, %v3153
    %v3155 = vshll.u32 920167782, %v3140
    %v3156 = vshrl.u32 1326507024, %v3141
    %v3157 = vor.u32 %v3155, %v3156
    %vm3158 = vcmp.lt.s32.totalorder %v3139, 1
    %vm3159 = vcmp.lt.s32.totalorder %v3139, 2
    %vm3160 = vcmp.lt.s32.totalorder %v3139, 3
    %vm3161 = vcmp.lt.s32.totalorder %v3139, 4
    %v3162 = vsel %vm3158, %v3142, %v3145
    %v3163 = vsel %vm3161, %v3151, 2102212464
    %v3164 = vsel %vm3160, %v3148, %v3163
    %v3165 = vsel %vm3159, %v3162, %v3164
    %v3166 = vsel %vm3158, %v3145, %v3148
    %v3167 = vsel %vm3161, %v3154, 920167782
    %v3168 = vsel %vm3160, %v3151, %v3167
    %v3169 = vsel %vm3159, %v3166, %v3168
    %v3170 = vsel %vm3158, %v3148, %v3151
    %v3171 = vsel %vm3161, %v3157, 1326507024
    %v3172 = vsel %vm3160, %v3154, %v3171
    %v3173 = vsel %vm3159, %v3170, %v3172
    %v3174 = vshll.u32 %v3134, 8
    %v3175 = vmul.u32.u64.compose %v3174, %v3173
    %v3176 = vextract.low.u32 %v3175
    %v3177 = vextract.high.u32 %v3175
    %v3178 = vmul.u32.u64.compose %v3174, %v3169
    %v3179 = vextract.low.u32 %v3178
    %v3180 = vextract.high.u32 %v3178
    %v3181 = vmul.u32 %v3174, %v3165
    %v3182 = vadd.s32 %v3177, %v3179
    %vm3183 = vc.u32 %v3177, %v3179
    %v3184 = vadd.s32 %v3180, 1
    %v3185 = vsel %vm3183, %v3184, %v3180
    %v3186 = vadd.s32 %v3181, %v3185
    %v3187 = vadd.s32 %v3186, 536870912
    %v3188 = vshrl.u32 %v3187, 30
    %v3189 = vshll.u32 %v3188, 30
    %v3190 = vsub.s32 %v3186, %v3189
    %vm3191 = vcmp.lt.s32.totalorder %v3190, 0
    %v3192 = vsub.s32 0, %v3190
    %v3193 = vsel %vm3191, %v3192, %v3190
    %v3194 = vclz %v3193
    %v3195 = vsub.s32 %v3194, 2
    %vm3196 = vcmp.gt.s32.totalorder 0, %v3195
    %v3197 = vsel %vm3196, 0, %v3195
    %v3198 = vsub.s32 32, %v3197
    %v3199 = vshll.u32 %v3190, %v3197
    %v3200 = vshrl.u32 %v3182, %v3198
    %v3201 = vor.u32 %v3199, %v3200
    %v3202 = vsub.s32 4294967266, %v3197
    %v3203 = vadd.s32 %v3202, 127
    %v3204 = vshll.u32 %v3203, 23
    %v3205 = vor.u32 4788187, %v3204
    %v3206 = vand.u32 2147483647, %v3205
    %v3208 = vcvt.s32.f32 %v3201
    %v3209 = vmul.f32 %v3208, %v3206
    %v3210 = vxor.u32 %v3209, 2147483648
    %v3211 = vsel %vm3128, %v3210, %v3209
    %v3212 = vsub.s32 4, %v3188
    %v3213 = vsel %vm3128, %v3212, %v3188
    %v3214 = vsel %vm3127, %v112, %v3211
    %v3215 = vsel %vm3127, 0, %v3213
    %v3216 = vcosq.f32.pop %v3214
    %v3217 = vsinq.f32.pop %v3214
    %vm3218 = vweird.f32 %v112
    %v3219 = vand.u32 %v3215, 3
    %vm3220 = vcmp.lt.s32.totalorder %v3219, 2
    %vm3221 = vcmp.eq.s32.totalorder %v3219, 0
    %v3222 = vxor.u32 %v3217, 2147483648
    %v3223 = vsel %vm3221, %v3216, %v3222
    %vm3224 = vcmp.eq.s32.totalorder %v3219, 2
    %v3225 = vxor.u32 %v3216, 2147483648
    %v3226 = vsel %vm3224, %v3225, %v3217
    %v3227 = vsel %vm3220, %v3223, %v3226
    %v3228 = vsel %vm3218, nan, %v3227
    %v3229 = vand.u32 2147483647, %v113
    %vm3230 = vcmp.le.f32.partialorder %v3229, 0.7853982
    %vm3231 = vcmp.lt.s32.totalorder %v113, 0
    %v3232 = vand.u32 %v113, 2139095040
    %v3233 = vshrl.u32 %v3232, 23
    %v3234 = vsub.s32 %v3233, 127
    %v3235 = vand.u32 2147483647, %v113
    %v3236 = vand.u32 %v3235, 8388607
    %v3237 = vor.u32 %v3236, 8388608
    %v3238 = vsub.s32 0, %v3237
    %v3239 = vadd.s32 %v3234, 1
    %vm3240 = vcmp.gt.s32.totalorder %v3239, 0
    %v3241 = vsel %vm3240, %v3239, 0
    %v3242 = vshrl.u32 %v3241, 5
    %v3243 = vand.u32 %v3241, 31
    %v3244 = vsub.s32 32, %v3243
    %v3245 = vshrl.u32 683565275, %v3244
    %v3246 = vshll.u32 683565275, %v3243
    %v3247 = vshrl.u32 2475754826, %v3244
    %v3248 = vor.u32 %v3246, %v3247
    %v3249 = vshll.u32 2475754826, %v3243
    %v3250 = vshrl.u32 2131351028, %v3244
    %v3251 = vor.u32 %v3249, %v3250
    %v3252 = vshll.u32 2131351028, %v3243
    %v3253 = vshrl.u32 2102212464, %v3244
    %v3254 = vor.u32 %v3252, %v3253
    %v3255 = vshll.u32 2102212464, %v3243
    %v3256 = vshrl.u32 920167782, %v3244
    %v3257 = vor.u32 %v3255, %v3256
    %v3258 = vshll.u32 920167782, %v3243
    %v3259 = vshrl.u32 1326507024, %v3244
    %v3260 = vor.u32 %v3258, %v3259
    %vm3261 = vcmp.lt.s32.totalorder %v3242, 1
    %vm3262 = vcmp.lt.s32.totalorder %v3242, 2
    %vm3263 = vcmp.lt.s32.totalorder %v3242, 3
    %vm3264 = vcmp.lt.s32.totalorder %v3242, 4
    %v3265 = vsel %vm3261, %v3245, %v3248
    %v3266 = vsel %vm3264, %v3254, 2102212464
    %v3267 = vsel %vm3263, %v3251, %v3266
    %v3268 = vsel %vm3262, %v3265, %v3267
    %v3269 = vsel %vm3261, %v3248, %v3251
    %v3270 = vsel %vm3264, %v3257, 920167782
    %v3271 = vsel %vm3263, %v3254, %v3270
    %v3272 = vsel %vm3262, %v3269, %v3271
    %v3273 = vsel %vm3261, %v3251, %v3254
    %v3274 = vsel %vm3264, %v3260, 1326507024
    %v3275 = vsel %vm3263, %v3257, %v3274
    %v3276 = vsel %vm3262, %v3273, %v3275
    %v3277 = vshll.u32 %v3237, 8
    %v3278 = vmul.u32.u64.compose %v3277, %v3276
    %v3279 = vextract.low.u32 %v3278
    %v3280 = vextract.high.u32 %v3278
    %v3281 = vmul.u32.u64.compose %v3277, %v3272
    %v3282 = vextract.low.u32 %v3281
    %v3283 = vextract.high.u32 %v3281
    %v3284 = vmul.u32 %v3277, %v3268
    %v3285 = vadd.s32 %v3280, %v3282
    %vm3286 = vc.u32 %v3280, %v3282
    %v3287 = vadd.s32 %v3283, 1
    %v3288 = vsel %vm3286, %v3287, %v3283
    %v3289 = vadd.s32 %v3284, %v3288
    %v3290 = vadd.s32 %v3289, 536870912
    %v3291 = vshrl.u32 %v3290, 30
    %v3292 = vshll.u32 %v3291, 30
    %v3293 = vsub.s32 %v3289, %v3292
    %vm3294 = vcmp.lt.s32.totalorder %v3293, 0
    %v3295 = vsub.s32 0, %v3293
    %v3296 = vsel %vm3294, %v3295, %v3293
    %v3297 = vclz %v3296
    %v3298 = vsub.s32 %v3297, 2
    %vm3299 = vcmp.gt.s32.totalorder 0, %v3298
    %v3300 = vsel %vm3299, 0, %v3298
    %v3301 = vsub.s32 32, %v3300
    %v3302 = vshll.u32 %v3293, %v3300
    %v3303 = vshrl.u32 %v3285, %v3301
    %v3304 = vor.u32 %v3302, %v3303
    %v3305 = vsub.s32 4294967266, %v3300
    %v3306 = vadd.s32 %v3305, 127
    %v3307 = vshll.u32 %v3306, 23
    %v3308 = vor.u32 4788187, %v3307
    %v3309 = vand.u32 2147483647, %v3308
    %v3311 = vcvt.s32.f32 %v3304
    %v3312 = vmul.f32 %v3311, %v3309
    %v3313 = vxor.u32 %v3312, 2147483648
    %v3314 = vsel %vm3231, %v3313, %v3312
    %v3315 = vsub.s32 4, %v3291
    %v3316 = vsel %vm3231, %v3315, %v3291
    %v3317 = vsel %vm3230, %v113, %v3314
    %v3318 = vsel %vm3230, 0, %v3316
    %v3319 = vcosq.f32.pop %v3317
    %v3320 = vsinq.f32.pop %v3317
    %vm3321 = vweird.f32 %v113
    %v3322 = vand.u32 %v3318, 3
    %vm3323 = vcmp.lt.s32.totalorder %v3322, 2
    %vm3324 = vcmp.eq.s32.totalorder %v3322, 0
    %v3325 = vxor.u32 %v3320, 2147483648
    %v3326 = vsel %vm3324, %v3319, %v3325
    %vm3327 = vcmp.eq.s32.totalorder %v3322, 2
    %v3328 = vxor.u32 %v3319, 2147483648
    %v3329 = vsel %vm3327, %v3328, %v3320
    %v3330 = vsel %vm3323, %v3326, %v3329
    %v3331 = vsel %vm3321, nan, %v3330
    %v3332 = vand.u32 2147483647, %v114
    %vm3333 = vcmp.le.f32.partialorder %v3332, 0.7853982
    %vm3334 = vcmp.lt.s32.totalorder %v114, 0
    %v3335 = vand.u32 %v114, 2139095040
    %v3336 = vshrl.u32 %v3335, 23
    %v3337 = vsub.s32 %v3336, 127
    %v3338 = vand.u32 2147483647, %v114
    %v3339 = vand.u32 %v3338, 8388607
    %v3340 = vor.u32 %v3339, 8388608
    %v3341 = vsub.s32 0, %v3340
    %v3342 = vadd.s32 %v3337, 1
    %vm3343 = vcmp.gt.s32.totalorder %v3342, 0
    %v3344 = vsel %vm3343, %v3342, 0
    %v3345 = vshrl.u32 %v3344, 5
    %v3346 = vand.u32 %v3344, 31
    %v3347 = vsub.s32 32, %v3346
    %v3348 = vshrl.u32 683565275, %v3347
    %v3349 = vshll.u32 683565275, %v3346
    %v3350 = vshrl.u32 2475754826, %v3347
    %v3351 = vor.u32 %v3349, %v3350
    %v3352 = vshll.u32 2475754826, %v3346
    %v3353 = vshrl.u32 2131351028, %v3347
    %v3354 = vor.u32 %v3352, %v3353
    %v3355 = vshll.u32 2131351028, %v3346
    %v3356 = vshrl.u32 2102212464, %v3347
    %v3357 = vor.u32 %v3355, %v3356
    %v3358 = vshll.u32 2102212464, %v3346
    %v3359 = vshrl.u32 920167782, %v3347
    %v3360 = vor.u32 %v3358, %v3359
    %v3361 = vshll.u32 920167782, %v3346
    %v3362 = vshrl.u32 1326507024, %v3347
    %v3363 = vor.u32 %v3361, %v3362
    %vm3364 = vcmp.lt.s32.totalorder %v3345, 1
    %vm3365 = vcmp.lt.s32.totalorder %v3345, 2
    %vm3366 = vcmp.lt.s32.totalorder %v3345, 3
    %vm3367 = vcmp.lt.s32.totalorder %v3345, 4
    %v3368 = vsel %vm3364, %v3348, %v3351
    %v3369 = vsel %vm3367, %v3357, 2102212464
    %v3370 = vsel %vm3366, %v3354, %v3369
    %v3371 = vsel %vm3365, %v3368, %v3370
    %v3372 = vsel %vm3364, %v3351, %v3354
    %v3373 = vsel %vm3367, %v3360, 920167782
    %v3374 = vsel %vm3366, %v3357, %v3373
    %v3375 = vsel %vm3365, %v3372, %v3374
    %v3376 = vsel %vm3364, %v3354, %v3357
    %v3377 = vsel %vm3367, %v3363, 1326507024
    %v3378 = vsel %vm3366, %v3360, %v3377
    %v3379 = vsel %vm3365, %v3376, %v3378
    %v3380 = vshll.u32 %v3340, 8
    %v3381 = vmul.u32.u64.compose %v3380, %v3379
    %v3382 = vextract.low.u32 %v3381
    %v3383 = vextract.high.u32 %v3381
    %v3384 = vmul.u32.u64.compose %v3380, %v3375
    %v3385 = vextract.low.u32 %v3384
    %v3386 = vextract.high.u32 %v3384
    %v3387 = vmul.u32 %v3380, %v3371
    %v3388 = vadd.s32 %v3383, %v3385
    %vm3389 = vc.u32 %v3383, %v3385
    %v3390 = vadd.s32 %v3386, 1
    %v3391 = vsel %vm3389, %v3390, %v3386
    %v3392 = vadd.s32 %v3387, %v3391
    %v3393 = vadd.s32 %v3392, 536870912
    %v3394 = vshrl.u32 %v3393, 30
    %v3395 = vshll.u32 %v3394, 30
    %v3396 = vsub.s32 %v3392, %v3395
    %vm3397 = vcmp.lt.s32.totalorder %v3396, 0
    %v3398 = vsub.s32 0, %v3396
    %v3399 = vsel %vm3397, %v3398, %v3396
    %v3400 = vclz %v3399
    %v3401 = vsub.s32 %v3400, 2
    %vm3402 = vcmp.gt.s32.totalorder 0, %v3401
    %v3403 = vsel %vm3402, 0, %v3401
    %v3404 = vsub.s32 32, %v3403
    %v3405 = vshll.u32 %v3396, %v3403
    %v3406 = vshrl.u32 %v3388, %v3404
    %v3407 = vor.u32 %v3405, %v3406
    %v3408 = vsub.s32 4294967266, %v3403
    %v3409 = vadd.s32 %v3408, 127
    %v3410 = vshll.u32 %v3409, 23
    %v3411 = vor.u32 4788187, %v3410
    %v3412 = vand.u32 2147483647, %v3411
    %v3414 = vcvt.s32.f32 %v3407
    %v3415 = vmul.f32 %v3414, %v3412
    %v3416 = vxor.u32 %v3415, 2147483648
    %v3417 = vsel %vm3334, %v3416, %v3415
    %v3418 = vsub.s32 4, %v3394
    %v3419 = vsel %vm3334, %v3418, %v3394
    %v3420 = vsel %vm3333, %v114, %v3417
    %v3421 = vsel %vm3333, 0, %v3419
    %v3422 = vcosq.f32.pop %v3420
    %v3423 = vsinq.f32.pop %v3420
    %vm3424 = vweird.f32 %v114
    %v3425 = vand.u32 %v3421, 3
    %vm3426 = vcmp.lt.s32.totalorder %v3425, 2
    %vm3427 = vcmp.eq.s32.totalorder %v3425, 0
    %v3428 = vxor.u32 %v3423, 2147483648
    %v3429 = vsel %vm3427, %v3422, %v3428
    %vm3430 = vcmp.eq.s32.totalorder %v3425, 2
    %v3431 = vxor.u32 %v3422, 2147483648
    %v3432 = vsel %vm3430, %v3431, %v3423
    %v3433 = vsel %vm3426, %v3429, %v3432
    %v3434 = vsel %vm3424, nan, %v3433
    %v3435 = vpack.c.bf16 %v2095, %v1889
    %v3436 = vpack.c.bf16 %v2198, %v1992
    %v3437 = vpack.c.bf16 %v2507, %v2301
    %v3438 = vpack.c.bf16 %v2610, %v2404
    %v3439 = vpack.c.bf16 %v2919, %v2713
    %v3440 = vpack.c.bf16 %v3022, %v2816
    %v3441 = vpack.c.bf16 %v3331, %v3125
    %v3442 = vpack.c.bf16 %v3434, %v3228
    %v3443 = vld [vmem:[#allocation7] sm:$0xf]
    %v3444 = vld [vmem:[#allocation7 + $0x4] sm:$0xf]
    %v3445 = vld [vmem:[#allocation7 + $0x8] sm:$0xf]
    %v3446 = vld [vmem:[#allocation7 + $0xc] sm:$0xf]
    %v3447 = vld [vmem:[#allocation7 + $0x10] sm:$0xf]
    %v3448 = vld [vmem:[#allocation7 + $0x14] sm:$0xf]
    %v3449 = vld [vmem:[#allocation7 + $0x18] sm:$0xf]
    %v3450 = vld [vmem:[#allocation7 + $0x1c] sm:$0xf]
    %v3451 = vld [vmem:[#allocation7 + $0x20] sm:$0xf]
    %v3452 = vld [vmem:[#allocation7 + $0x24] sm:$0xf]
    %v3453 = vld [vmem:[#allocation7 + $0x28] sm:$0xf]
    %v3454 = vld [vmem:[#allocation7 + $0x2c] sm:$0xf]
    %v3455 = vld [vmem:[#allocation7 + $0x30] sm:$0xf]
    %v3456 = vld [vmem:[#allocation7 + $0x34] sm:$0xf]
    %v3457 = vld [vmem:[#allocation7 + $0x38] sm:$0xf]
    %v3458 = vld [vmem:[#allocation7 + $0x3c] sm:$0xf]
    %v3459 = vld [vmem:[#allocation7 + $0x40] sm:$0xf]
    %v3460 = vld [vmem:[#allocation7 + $0x44] sm:$0xf]
    %v3461 = vld [vmem:[#allocation7 + $0x48] sm:$0xf]
    %v3462 = vld [vmem:[#allocation7 + $0x4c] sm:$0xf]
    %v3463 = vld [vmem:[#allocation7 + $0x50] sm:$0xf]
    %v3464 = vld [vmem:[#allocation7 + $0x54] sm:$0xf]
    %v3465 = vld [vmem:[#allocation7 + $0x58] sm:$0xf]
    %v3466 = vld [vmem:[#allocation7 + $0x5c] sm:$0xf]
    %v3467 = vld [vmem:[#allocation7 + $0x60] sm:$0xf]
    %v3468 = vld [vmem:[#allocation7 + $0x64] sm:$0xf]
    %v3469 = vld [vmem:[#allocation7 + $0x68] sm:$0xf]
    %v3470 = vld [vmem:[#allocation7 + $0x6c] sm:$0xf]
    %v3471 = vld [vmem:[#allocation7 + $0x70] sm:$0xf]
    %v3472 = vld [vmem:[#allocation7 + $0x74] sm:$0xf]
    %v3473 = vld [vmem:[#allocation7 + $0x78] sm:$0xf]
    %v3474 = vld [vmem:[#allocation7 + $0x7c] sm:$0xf]
    %v3475 = vld [vmem:[#allocation8] sm:$0xf]
    %v3476 = vld [vmem:[#allocation8 + $0x4] sm:$0xf]
    %v3477 = vld [vmem:[#allocation8 + $0x8] sm:$0xf]
    %v3478 = vld [vmem:[#allocation8 + $0xc] sm:$0xf]
    %v3479 = vld [vmem:[#allocation8 + $0x10] sm:$0xf]
    %v3480 = vld [vmem:[#allocation8 + $0x14] sm:$0xf]
    %v3481 = vld [vmem:[#allocation8 + $0x18] sm:$0xf]
    %v3482 = vld [vmem:[#allocation8 + $0x1c] sm:$0xf]
    %v3483 = vld [vmem:[#allocation8 + $0x20] sm:$0xf]
    %v3484 = vld [vmem:[#allocation8 + $0x24] sm:$0xf]
    %v3485 = vld [vmem:[#allocation8 + $0x28] sm:$0xf]
    %v3486 = vld [vmem:[#allocation8 + $0x2c] sm:$0xf]
    %v3487 = vld [vmem:[#allocation8 + $0x30] sm:$0xf]
    %v3488 = vld [vmem:[#allocation8 + $0x34] sm:$0xf]
    %v3489 = vld [vmem:[#allocation8 + $0x38] sm:$0xf]
    %v3490 = vld [vmem:[#allocation8 + $0x3c] sm:$0xf]
    %v3491 = vld [vmem:[#allocation8 + $0x40] sm:$0xf]
    %v3492 = vld [vmem:[#allocation8 + $0x44] sm:$0xf]
    %v3493 = vld [vmem:[#allocation8 + $0x48] sm:$0xf]
    %v3494 = vld [vmem:[#allocation8 + $0x4c] sm:$0xf]
    %v3495 = vld [vmem:[#allocation8 + $0x50] sm:$0xf]
    %v3496 = vld [vmem:[#allocation8 + $0x54] sm:$0xf]
    %v3497 = vld [vmem:[#allocation8 + $0x58] sm:$0xf]
    %v3498 = vld [vmem:[#allocation8 + $0x5c] sm:$0xf]
    %v3499 = vld [vmem:[#allocation8 + $0x60] sm:$0xf]
    %v3500 = vld [vmem:[#allocation8 + $0x64] sm:$0xf]
    %v3501 = vld [vmem:[#allocation8 + $0x68] sm:$0xf]
    %v3502 = vld [vmem:[#allocation8 + $0x6c] sm:$0xf]
    %v3503 = vld [vmem:[#allocation8 + $0x70] sm:$0xf]
    %v3504 = vld [vmem:[#allocation8 + $0x74] sm:$0xf]
    %v3505 = vld [vmem:[#allocation8 + $0x78] sm:$0xf]
    %v3506 = vld [vmem:[#allocation8 + $0x7c] sm:$0xf]
    %v3539 = vunpack.c.l.b16 %v3475
    %v3540 = vunpack.c.l.b16 %v3476
    %v3541 = vunpack.c.l.b16 %v3477
    %v3542 = vunpack.c.l.b16 %v3478
    %v3543 = vunpack.c.l.b16 %v3479
    %v3544 = vunpack.c.l.b16 %v3480
    %v3545 = vunpack.c.l.b16 %v3481
    %v3546 = vunpack.c.l.b16 %v3482
    %v3547 = vunpack.c.l.b16 %v3483
    %v3548 = vunpack.c.l.b16 %v3484
    %v3549 = vunpack.c.l.b16 %v3485
    %v3550 = vunpack.c.l.b16 %v3486
    %v3551 = vunpack.c.l.b16 %v3487
    %v3552 = vunpack.c.l.b16 %v3488
    %v3553 = vunpack.c.l.b16 %v3489
    %v3554 = vunpack.c.l.b16 %v3490
    %v3555 = vunpack.c.l.b16 %v3491
    %v3556 = vunpack.c.l.b16 %v3492
    %v3557 = vunpack.c.l.b16 %v3493
    %v3558 = vunpack.c.l.b16 %v3494
    %v3559 = vunpack.c.l.b16 %v3495
    %v3560 = vunpack.c.l.b16 %v3496
    %v3561 = vunpack.c.l.b16 %v3497
    %v3562 = vunpack.c.l.b16 %v3498
    %v3563 = vunpack.c.l.b16 %v3499
    %v3564 = vunpack.c.l.b16 %v3500
    %v3565 = vunpack.c.l.b16 %v3501
    %v3566 = vunpack.c.l.b16 %v3502
    %v3567 = vunpack.c.l.b16 %v3503
    %v3568 = vunpack.c.l.b16 %v3504
    %v3569 = vunpack.c.l.b16 %v3505
    %v3570 = vunpack.c.l.b16 %v3506
    %v3571 = vpack.c.b16 %v3540, %v3539
    %v3572 = vpack.c.b16 %v3542, %v3541
    %v3573 = vpack.c.b16 %v3544, %v3543
    %v3574 = vpack.c.b16 %v3546, %v3545
    %v3575 = vpack.c.b16 %v3548, %v3547
    %v3576 = vpack.c.b16 %v3550, %v3549
    %v3577 = vpack.c.b16 %v3552, %v3551
    %v3578 = vpack.c.b16 %v3554, %v3553
    %v3579 = vpack.c.b16 %v3556, %v3555
    %v3580 = vpack.c.b16 %v3558, %v3557
    %v3581 = vpack.c.b16 %v3560, %v3559
    %v3582 = vpack.c.b16 %v3562, %v3561
    %v3583 = vpack.c.b16 %v3564, %v3563
    %v3584 = vpack.c.b16 %v3566, %v3565
    %v3585 = vpack.c.b16 %v3568, %v3567
    %v3586 = vpack.c.b16 %v3570, %v3569
    %3603 = vmatprep.subr.bf16.mxu0 0
    %3604 = vmatpush1.bf16.msra.mxu0 %v3571
    %3605 = vmatprep.subr.bf16.mxu0 0
    %3606 = vmatpush1.bf16.msra.mxu0 %v3572
    %3607 = vmatprep.subr.bf16.mxu0 0
    %3608 = vmatpush1.bf16.msra.mxu0 %v3573
    %3609 = vmatprep.subr.bf16.mxu0 0
    %3610 = vmatpush1.bf16.msra.mxu0 %v3574
    %3611 = vmatprep.subr.bf16.mxu0 0
    %3612 = vmatpush1.bf16.msra.mxu0 %v3575
    %3613 = vmatprep.subr.bf16.mxu0 0
    %3614 = vmatpush1.bf16.msra.mxu0 %v3576
    %3615 = vmatprep.subr.bf16.mxu0 0
    %3616 = vmatpush1.bf16.msra.mxu0 %v3577
    %3617 = vmatprep.subr.bf16.mxu0 0
    %3618 = vmatpush1.bf16.msra.mxu0 %v3578
    %3619 = vmatprep.subr.bf16.mxu0 0
    %3620 = vmatpush1.bf16.msra.mxu0 %v3579
    %3621 = vmatprep.subr.bf16.mxu0 0
    %3622 = vmatpush1.bf16.msra.mxu0 %v3580
    %3623 = vmatprep.subr.bf16.mxu0 0
    %3624 = vmatpush1.bf16.msra.mxu0 %v3581
    %3625 = vmatprep.subr.bf16.mxu0 0
    %3626 = vmatpush1.bf16.msra.mxu0 %v3582
    %3627 = vmatprep.subr.bf16.mxu0 0
    %3628 = vmatpush1.bf16.msra.mxu0 %v3583
    %3629 = vmatprep.subr.bf16.mxu0 0
    %3630 = vmatpush1.bf16.msra.mxu0 %v3584
    %3631 = vmatprep.subr.bf16.mxu0 0
    %3632 = vmatpush1.bf16.msra.mxu0 %v3585
    %3633 = vmatprep.subr.bf16.mxu0 0
    %3634 = vmatpush1.bf16.msra.mxu0 %v3586
    %3635 = vmatprep.mubr.bf16.mxu0 %v3436
    %3636 = vmatmul.mubr.bf16.gmra.mrb[0].mxu0 %v3435
    %v3637 = vpop.f32.mrb[0].mxu0
    %v3638 = vadd.f32 0.0, %v3637
    %v3639 = vpop.f32.mrb[0].mxu0
    %v3640 = vpop.f32.mrb[0].mxu0
    %v3641 = vadd.f32 0.0, %v3640
    %v3642 = vpop.f32.mrb[0].mxu0
    %3643 = vmatprep.mubr.bf16.mxu0 %v3438
    %3644 = vmatmul.mubr.bf16.gmra.mrb[0].mxu0 %v3437
    %v3645 = vpop.f32.mrb[0].mxu0
    %v3646 = vadd.f32 0.0, %v3645
    %v3647 = vpop.f32.mrb[0].mxu0
    %v3648 = vpop.f32.mrb[0].mxu0
    %v3649 = vadd.f32 0.0, %v3648
    %v3650 = vpop.f32.mrb[0].mxu0
    %3651 = vmatprep.mubr.bf16.mxu0 %v3440
    %3652 = vmatmul.mubr.bf16.gmra.mrb[0].mxu0 %v3439
    %v3653 = vpop.f32.mrb[0].mxu0
    %v3654 = vadd.f32 0.0, %v3653
    %v3655 = vpop.f32.mrb[0].mxu0
    %v3656 = vpop.f32.mrb[0].mxu0
    %v3657 = vadd.f32 0.0, %v3656
    %v3658 = vpop.f32.mrb[0].mxu0
    %3659 = vmatprep.mubr.bf16.mxu0 %v3442
    %3660 = vmatmul.mubr.bf16.gmra.mrb[0].mxu0 %v3441
    %v3661 = vpop.f32.mrb[0].mxu0
    %v3662 = vadd.f32 0.0, %v3661
    %v3663 = vpop.f32.mrb[0].mxu0
    %v3664 = vpop.f32.mrb[0].mxu0
    %v3665 = vadd.f32 0.0, %v3664
    %v3666 = vpop.f32.mrb[0].mxu0
    %3667 = vdwg.mxu0
    %v3700 = vunpack.c.l.b16 %v3443
    %v3701 = vunpack.c.l.b16 %v3444
    %v3702 = vunpack.c.l.b16 %v3445
    %v3703 = vunpack.c.l.b16 %v3446
    %v3704 = vunpack.c.l.b16 %v3447
    %v3705 = vunpack.c.l.b16 %v3448
    %v3706 = vunpack.c.l.b16 %v3449
    %v3707 = vunpack.c.l.b16 %v3450
    %v3708 = vunpack.c.l.b16 %v3451
    %v3709 = vunpack.c.l.b16 %v3452
    %v3710 = vunpack.c.l.b16 %v3453
    %v3711 = vunpack.c.l.b16 %v3454
    %v3712 = vunpack.c.l.b16 %v3455
    %v3713 = vunpack.c.l.b16 %v3456
    %v3714 = vunpack.c.l.b16 %v3457
    %v3715 = vunpack.c.l.b16 %v3458
    %v3716 = vunpack.c.l.b16 %v3459
    %v3717 = vunpack.c.l.b16 %v3460
    %v3718 = vunpack.c.l.b16 %v3461
    %v3719 = vunpack.c.l.b16 %v3462
    %v3720 = vunpack.c.l.b16 %v3463
    %v3721 = vunpack.c.l.b16 %v3464
    %v3722 = vunpack.c.l.b16 %v3465
    %v3723 = vunpack.c.l.b16 %v3466
    %v3724 = vunpack.c.l.b16 %v3467
    %v3725 = vunpack.c.l.b16 %v3468
    %v3726 = vunpack.c.l.b16 %v3469
    %v3727 = vunpack.c.l.b16 %v3470
    %v3728 = vunpack.c.l.b16 %v3471
    %v3729 = vunpack.c.l.b16 %v3472
    %v3730 = vunpack.c.l.b16 %v3473
    %v3731 = vunpack.c.l.b16 %v3474
    %v3732 = vpack.c.b16 %v3701, %v3700
    %v3733 = vpack.c.b16 %v3703, %v3702
    %v3734 = vpack.c.b16 %v3705, %v3704
    %v3735 = vpack.c.b16 %v3707, %v3706
    %v3736 = vpack.c.b16 %v3709, %v3708
    %v3737 = vpack.c.b16 %v3711, %v3710
    %v3738 = vpack.c.b16 %v3713, %v3712
    %v3739 = vpack.c.b16 %v3715, %v3714
    %v3740 = vpack.c.b16 %v3717, %v3716
    %v3741 = vpack.c.b16 %v3719, %v3718
    %v3742 = vpack.c.b16 %v3721, %v3720
    %v3743 = vpack.c.b16 %v3723, %v3722
    %v3744 = vpack.c.b16 %v3725, %v3724
    %v3745 = vpack.c.b16 %v3727, %v3726
    %v3746 = vpack.c.b16 %v3729, %v3728
    %v3747 = vpack.c.b16 %v3731, %v3730
    %3764 = vmatprep.subr.bf16.mxu0 0
    %3765 = vmatpush1.bf16.msra.mxu0 %v3732
    %3766 = vmatprep.subr.bf16.mxu0 0
    %3767 = vmatpush1.bf16.msra.mxu0 %v3733
    %3768 = vmatprep.subr.bf16.mxu0 0
    %3769 = vmatpush1.bf16.msra.mxu0 %v3734
    %3770 = vmatprep.subr.bf16.mxu0 0
    %3771 = vmatpush1.bf16.msra.mxu0 %v3735
    %3772 = vmatprep.subr.bf16.mxu0 0
    %3773 = vmatpush1.bf16.msra.mxu0 %v3736
    %3774 = vmatprep.subr.bf16.mxu0 0
    %3775 = vmatpush1.bf16.msra.mxu0 %v3737
    %3776 = vmatprep.subr.bf16.mxu0 0
    %3777 = vmatpush1.bf16.msra.mxu0 %v3738
    %3778 = vmatprep.subr.bf16.mxu0 0
    %3779 = vmatpush1.bf16.msra.mxu0 %v3739
    %3780 = vmatprep.subr.bf16.mxu0 0
    %3781 = vmatpush1.bf16.msra.mxu0 %v3740
    %3782 = vmatprep.subr.bf16.mxu0 0
    %3783 = vmatpush1.bf16.msra.mxu0 %v3741
    %3784 = vmatprep.subr.bf16.mxu0 0
    %3785 = vmatpush1.bf16.msra.mxu0 %v3742
    %3786 = vmatprep.subr.bf16.mxu0 0
    %3787 = vmatpush1.bf16.msra.mxu0 %v3743
    %3788 = vmatprep.subr.bf16.mxu0 0
    %3789 = vmatpush1.bf16.msra.mxu0 %v3744
    %3790 = vmatprep.subr.bf16.mxu0 0
    %3791 = vmatpush1.bf16.msra.mxu0 %v3745
    %3792 = vmatprep.subr.bf16.mxu0 0
    %3793 = vmatpush1.bf16.msra.mxu0 %v3746
    %3794 = vmatprep.subr.bf16.mxu0 0
    %3795 = vmatpush1.bf16.msra.mxu0 %v3747
    %3796 = vmatprep.mubr.bf16.mxu0 %v1780
    %3797 = vmatmul.mubr.bf16.gmra.mrb[0].mxu0 %v1779
    %v3798 = vpop.f32.mrb[0].mxu0
    %v3799 = vadd.f32 %v3638, %v3798
    %v3800 = vpop.f32.mrb[0].mxu0
    %v3801 = vpop.f32.mrb[0].mxu0
    %v3802 = vadd.f32 %v3641, %v3801
    %v3803 = vpop.f32.mrb[0].mxu0
    %3804 = vmatprep.mubr.bf16.mxu0 %v1782
    %3805 = vmatmul.mubr.bf16.gmra.mrb[0].mxu0 %v1781
    %v3806 = vpop.f32.mrb[0].mxu0
    %v3807 = vadd.f32 %v3646, %v3806
    %v3808 = vpop.f32.mrb[0].mxu0
    %v3809 = vpop.f32.mrb[0].mxu0
    %v3810 = vadd.f32 %v3649, %v3809
    %v3811 = vpop.f32.mrb[0].mxu0
    %3812 = vmatprep.mubr.bf16.mxu0 %v1784
    %3813 = vmatmul.mubr.bf16.gmra.mrb[0].mxu0 %v1783
    %v3814 = vpop.f32.mrb[0].mxu0
    %v3815 = vadd.f32 %v3654, %v3814
    %v3816 = vpop.f32.mrb[0].mxu0
    %v3817 = vpop.f32.mrb[0].mxu0
    %v3818 = vadd.f32 %v3657, %v3817
    %v3819 = vpop.f32.mrb[0].mxu0
    %3820 = vmatprep.mubr.bf16.mxu0 %v1786
    %3821 = vmatmul.mubr.bf16.gmra.mrb[0].mxu0 %v1785
    %v3822 = vpop.f32.mrb[0].mxu0
    %v3823 = vadd.f32 %v3662, %v3822
    %v3824 = vpop.f32.mrb[0].mxu0
    %v3825 = vpop.f32.mrb[0].mxu0
    %v3826 = vadd.f32 %v3665, %v3825
    %v3827 = vpop.f32.mrb[0].mxu0
    %3828 = vdwg.mxu0
    %s3829 = sld [smem:[#allocation2]]
    %v3830 = vstv %s3829
    %v3831 = vmul.f32 %v3799, %v3830
    %s3832 = sld [smem:[#allocation5]]
    %v3833 = vstv %s3832
    %v3834 = vadd.f32 %v3831, %v3833
    %v3835 = vmul.f32 %v3834, 0.5
    %v3836 = vtanh.pop %v3835
    %v3837 = vmul.f32 %v3836, 0.5
    %v3838 = vadd.f32 %v3837, 0.5
    %v3839 = vpack.c.bf16 %v3838, %v3838
    %v3840 = vld [vmem:[%s5] sm:$0xf]
    %v3841 = vld [vmem:[%s5 + $0x4] sm:$0xf]
    %v3842 = vld [vmem:[%s5 + $0x8] sm:$0xf]
    %v3843 = vld [vmem:[%s5 + $0xc] sm:$0xf]
    %v3844 = vld [vmem:[%s5 + $0x10] sm:$0xf]
    %v3845 = vld [vmem:[%s5 + $0x14] sm:$0xf]
    %v3846 = vld [vmem:[%s5 + $0x18] sm:$0xf]
    %v3847 = vld [vmem:[%s5 + $0x1c] sm:$0xf]
    %v3848 = vld [vmem:[%s5 + $0x20] sm:$0xf]
    %v3849 = vld [vmem:[%s5 + $0x24] sm:$0xf]
    %v3850 = vld [vmem:[%s5 + $0x28] sm:$0xf]
    %v3851 = vld [vmem:[%s5 + $0x2c] sm:$0xf]
    %v3852 = vld [vmem:[%s5 + $0x30] sm:$0xf]
    %v3853 = vld [vmem:[%s5 + $0x34] sm:$0xf]
    %v3854 = vld [vmem:[%s5 + $0x38] sm:$0xf]
    %v3855 = vld [vmem:[%s5 + $0x3c] sm:$0xf]
    %s3856 = sld [smem:[#allocation2 + $0x1]]
    %v3857 = vstv %s3856
    %v3858 = vmul.f32 %v3802, %v3857
    %s3859 = sld [smem:[#allocation5 + $0x1]]
    %v3860 = vstv %s3859
    %v3861 = vadd.f32 %v3858, %v3860
    %v3862 = vmul.f32 %v3861, 0.5
    %v3863 = vtanh.pop %v3862
    %v3864 = vmul.f32 %v3863, 0.5
    %v3865 = vadd.f32 %v3864, 0.5
    %v3866 = vpack.c.bf16 %v3865, %v3865
    %s3867 = scalar_lea.vmem %s5, 64
    %v3868 = vld [vmem:[%s3867] sm:$0xf]
    %v3869 = vld [vmem:[%s3867 + $0x4] sm:$0xf]
    %v3870 = vld [vmem:[%s3867 + $0x8] sm:$0xf]
    %v3871 = vld [vmem:[%s3867 + $0xc] sm:$0xf]
    %v3872 = vld [vmem:[%s3867 + $0x10] sm:$0xf]
    %v3873 = vld [vmem:[%s3867 + $0x14] sm:$0xf]
    %v3874 = vld [vmem:[%s3867 + $0x18] sm:$0xf]
    %v3875 = vld [vmem:[%s3867 + $0x1c] sm:$0xf]
    %v3876 = vld [vmem:[%s3867 + $0x20] sm:$0xf]
    %v3877 = vld [vmem:[%s3867 + $0x24] sm:$0xf]
    %v3878 = vld [vmem:[%s3867 + $0x28] sm:$0xf]
    %v3879 = vld [vmem:[%s3867 + $0x2c] sm:$0xf]
    %v3880 = vld [vmem:[%s3867 + $0x30] sm:$0xf]
    %v3881 = vld [vmem:[%s3867 + $0x34] sm:$0xf]
    %v3882 = vld [vmem:[%s3867 + $0x38] sm:$0xf]
    %v3883 = vld [vmem:[%s3867 + $0x3c] sm:$0xf]
    %v3900 = vunpack.c.l.b16 %v3868
    %v3901 = vunpack.c.l.b16 %v3869
    %v3902 = vunpack.c.l.b16 %v3870
    %v3903 = vunpack.c.l.b16 %v3871
    %v3904 = vunpack.c.l.b16 %v3872
    %v3905 = vunpack.c.l.b16 %v3873
    %v3906 = vunpack.c.l.b16 %v3874
    %v3907 = vunpack.c.l.b16 %v3875
    %v3908 = vunpack.c.l.b16 %v3876
    %v3909 = vunpack.c.l.b16 %v3877
    %v3910 = vunpack.c.l.b16 %v3878
    %v3911 = vunpack.c.l.b16 %v3879
    %v3912 = vunpack.c.l.b16 %v3880
    %v3913 = vunpack.c.l.b16 %v3881
    %v3914 = vunpack.c.l.b16 %v3882
    %v3915 = vunpack.c.l.b16 %v3883
    %v3916 = vpack.c.b16 %v3901, %v3900
    %v3917 = vpack.c.b16 %v3903, %v3902
    %v3918 = vpack.c.b16 %v3905, %v3904
    %v3919 = vpack.c.b16 %v3907, %v3906
    %v3920 = vpack.c.b16 %v3909, %v3908
    %v3921 = vpack.c.b16 %v3911, %v3910
    %v3922 = vpack.c.b16 %v3913, %v3912
    %v3923 = vpack.c.b16 %v3915, %v3914
    %3932 = vmatprep.subr.bf16.mxu0 0
    %3933 = vmatpush1.bf16.msra.mxu0 %v3916
    %3934 = vmatprep.subr.bf16.mxu0 0
    %3935 = vmatpush1.bf16.msra.mxu0 %v3917
    %3936 = vmatprep.subr.bf16.mxu0 0
    %3937 = vmatpush1.bf16.msra.mxu0 %v3918
    %3938 = vmatprep.subr.bf16.mxu0 0
    %3939 = vmatpush1.bf16.msra.mxu0 %v3919
    %3940 = vmatprep.subr.bf16.mxu0 0
    %3941 = vmatpush1.bf16.msra.mxu0 %v3920
    %3942 = vmatprep.subr.bf16.mxu0 0
    %3943 = vmatpush1.bf16.msra.mxu0 %v3921
    %3944 = vmatprep.subr.bf16.mxu0 0
    %3945 = vmatpush1.bf16.msra.mxu0 %v3922
    %3946 = vmatprep.subr.bf16.mxu0 0
    %3947 = vmatpush1.bf16.msra.mxu0 %v3923
    %3948 = vmatprep.subr.bf16.mxu0 0
    %3949 = vmatpush1.bf16.msra.mxu0 0
    %3950 = vmatprep.subr.bf16.mxu0 0
    %3951 = vmatpush1.bf16.msra.mxu0 0
    %3952 = vmatprep.subr.bf16.mxu0 0
    %3953 = vmatpush1.bf16.msra.mxu0 0
    %3954 = vmatprep.subr.bf16.mxu0 0
    %3955 = vmatpush1.bf16.msra.mxu0 0
    %3956 = vmatprep.subr.bf16.mxu0 0
    %3957 = vmatpush1.bf16.msra.mxu0 0
    %3958 = vmatprep.subr.bf16.mxu0 0
    %3959 = vmatpush1.bf16.msra.mxu0 0
    %3960 = vmatprep.subr.bf16.mxu0 0
    %3961 = vmatpush1.bf16.msra.mxu0 0
    %3962 = vmatprep.subr.bf16.mxu0 0
    %3963 = vmatpush1.bf16.msra.mxu0 0
    %3964 = vmatprep.mubr.bf16.mxu0 0
    %3965 = vmatmul.mubr.bf16.gmra.mrb[0].mxu0 %v3866
    %v3966 = vpop.f32.mrb[0].mxu0
    %v3967 = vadd.f32 0.0, %v3966
    %v3968 = vpop.f32.mrb[0].mxu0
    %v3969 = vpop.f32.mrb[0].mxu0
    %v3970 = vpop.f32.mrb[0].mxu0
    %3971 = vdwg.mxu0
    %v3988 = vunpack.c.l.b16 %v3840
    %v3989 = vunpack.c.l.b16 %v3841
    %v3990 = vunpack.c.l.b16 %v3842
    %v3991 = vunpack.c.l.b16 %v3843
    %v3992 = vunpack.c.l.b16 %v3844
    %v3993 = vunpack.c.l.b16 %v3845
    %v3994 = vunpack.c.l.b16 %v3846
    %v3995 = vunpack.c.l.b16 %v3847
    %v3996 = vunpack.c.l.b16 %v3848
    %v3997 = vunpack.c.l.b16 %v3849
    %v3998 = vunpack.c.l.b16 %v3850
    %v3999 = vunpack.c.l.b16 %v3851
    %v4000 = vunpack.c.l.b16 %v3852
    %v4001 = vunpack.c.l.b16 %v3853
    %v4002 = vunpack.c.l.b16 %v3854
    %v4003 = vunpack.c.l.b16 %v3855
    %v4004 = vpack.c.b16 %v3989, %v3988
    %v4005 = vpack.c.b16 %v3991, %v3990
    %v4006 = vpack.c.b16 %v3993, %v3992
    %v4007 = vpack.c.b16 %v3995, %v3994
    %v4008 = vpack.c.b16 %v3997, %v3996
    %v4009 = vpack.c.b16 %v3999, %v3998
    %v4010 = vpack.c.b16 %v4001, %v4000
    %v4011 = vpack.c.b16 %v4003, %v4002
    %4020 = vmatprep.subr.bf16.mxu0 0
    %4021 = vmatpush1.bf16.msra.mxu0 %v4004
    %4022 = vmatprep.subr.bf16.mxu0 0
    %4023 = vmatpush1.bf16.msra.mxu0 %v4005
    %4024 = vmatprep.subr.bf16.mxu0 0
    %4025 = vmatpush1.bf16.msra.mxu0 %v4006
    %4026 = vmatprep.subr.bf16.mxu0 0
    %4027 = vmatpush1.bf16.msra.mxu0 %v4007
    %4028 = vmatprep.subr.bf16.mxu0 0
    %4029 = vmatpush1.bf16.msra.mxu0 %v4008
    %4030 = vmatprep.subr.bf16.mxu0 0
    %4031 = vmatpush1.bf16.msra.mxu0 %v4009
    %4032 = vmatprep.subr.bf16.mxu0 0
    %4033 = vmatpush1.bf16.msra.mxu0 %v4010
    %4034 = vmatprep.subr.bf16.mxu0 0
    %4035 = vmatpush1.bf16.msra.mxu0 %v4011
    %4036 = vmatprep.subr.bf16.mxu0 0
    %4037 = vmatpush1.bf16.msra.mxu0 0
    %4038 = vmatprep.subr.bf16.mxu0 0
    %4039 = vmatpush1.bf16.msra.mxu0 0
    %4040 = vmatprep.subr.bf16.mxu0 0
    %4041 = vmatpush1.bf16.msra.mxu0 0
    %4042 = vmatprep.subr.bf16.mxu0 0
    %4043 = vmatpush1.bf16.msra.mxu0 0
    %4044 = vmatprep.subr.bf16.mxu0 0
    %4045 = vmatpush1.bf16.msra.mxu0 0
    %4046 = vmatprep.subr.bf16.mxu0 0
    %4047 = vmatpush1.bf16.msra.mxu0 0
    %4048 = vmatprep.subr.bf16.mxu0 0
    %4049 = vmatpush1.bf16.msra.mxu0 0
    %4050 = vmatprep.subr.bf16.mxu0 0
    %4051 = vmatpush1.bf16.msra.mxu0 0
    %4052 = vmatprep.mubr.bf16.mxu0 0
    %4053 = vmatmul.mubr.bf16.gmra.mrb[0].mxu0 %v3839
    %v4054 = vpop.f32.mrb[0].mxu0
    %v4055 = vadd.f32 %v3967, %v4054
    %v4056 = vpop.f32.mrb[0].mxu0
    %v4057 = vpop.f32.mrb[0].mxu0
    %v4058 = vpop.f32.mrb[0].mxu0
    %4059 = vdwg.mxu0
    %s4060 = sld [smem:[#allocation2 + $0x2]]
    %v4061 = vstv %s4060
    %v4062 = vmul.f32 %v3807, %v4061
    %s4063 = sld [smem:[#allocation5 + $0x2]]
    %v4064 = vstv %s4063
    %v4065 = vadd.f32 %v4062, %v4064
    %v4066 = vmul.f32 %v4065, 0.5
    %v4067 = vtanh.pop %v4066
    %v4068 = vmul.f32 %v4067, 0.5
    %v4069 = vadd.f32 %v4068, 0.5
    %v4070 = vpack.c.bf16 %v4069, %v4069
    %s4071 = scalar_lea.vmem %s5, 128
    %v4072 = vld [vmem:[%s4071] sm:$0xf]
    %v4073 = vld [vmem:[%s4071 + $0x4] sm:$0xf]
    %v4074 = vld [vmem:[%s4071 + $0x8] sm:$0xf]
    %v4075 = vld [vmem:[%s4071 + $0xc] sm:$0xf]
    %v4076 = vld [vmem:[%s4071 + $0x10] sm:$0xf]
    %v4077 = vld [vmem:[%s4071 + $0x14] sm:$0xf]
    %v4078 = vld [vmem:[%s4071 + $0x18] sm:$0xf]
    %v4079 = vld [vmem:[%s4071 + $0x1c] sm:$0xf]
    %v4080 = vld [vmem:[%s4071 + $0x20] sm:$0xf]
    %v4081 = vld [vmem:[%s4071 + $0x24] sm:$0xf]
    %v4082 = vld [vmem:[%s4071 + $0x28] sm:$0xf]
    %v4083 = vld [vmem:[%s4071 + $0x2c] sm:$0xf]
    %v4084 = vld [vmem:[%s4071 + $0x30] sm:$0xf]
    %v4085 = vld [vmem:[%s4071 + $0x34] sm:$0xf]
    %v4086 = vld [vmem:[%s4071 + $0x38] sm:$0xf]
    %v4087 = vld [vmem:[%s4071 + $0x3c] sm:$0xf]
    %v4104 = vunpack.c.l.b16 %v4072
    %v4105 = vunpack.c.l.b16 %v4073
    %v4106 = vunpack.c.l.b16 %v4074
    %v4107 = vunpack.c.l.b16 %v4075
    %v4108 = vunpack.c.l.b16 %v4076
    %v4109 = vunpack.c.l.b16 %v4077
    %v4110 = vunpack.c.l.b16 %v4078
    %v4111 = vunpack.c.l.b16 %v4079
    %v4112 = vunpack.c.l.b16 %v4080
    %v4113 = vunpack.c.l.b16 %v4081
    %v4114 = vunpack.c.l.b16 %v4082
    %v4115 = vunpack.c.l.b16 %v4083
    %v4116 = vunpack.c.l.b16 %v4084
    %v4117 = vunpack.c.l.b16 %v4085
    %v4118 = vunpack.c.l.b16 %v4086
    %v4119 = vunpack.c.l.b16 %v4087
    %v4120 = vpack.c.b16 %v4105, %v4104
    %v4121 = vpack.c.b16 %v4107, %v4106
    %v4122 = vpack.c.b16 %v4109, %v4108
    %v4123 = vpack.c.b16 %v4111, %v4110
    %v4124 = vpack.c.b16 %v4113, %v4112
    %v4125 = vpack.c.b16 %v4115, %v4114
    %v4126 = vpack.c.b16 %v4117, %v4116
    %v4127 = vpack.c.b16 %v4119, %v4118
    %4136 = vmatprep.subr.bf16.mxu0 0
    %4137 = vmatpush1.bf16.msra.mxu0 %v4120
    %4138 = vmatprep.subr.bf16.mxu0 0
    %4139 = vmatpush1.bf16.msra.mxu0 %v4121
    %4140 = vmatprep.subr.bf16.mxu0 0
    %4141 = vmatpush1.bf16.msra.mxu0 %v4122
    %4142 = vmatprep.subr.bf16.mxu0 0
    %4143 = vmatpush1.bf16.msra.mxu0 %v4123
    %4144 = vmatprep.subr.bf16.mxu0 0
    %4145 = vmatpush1.bf16.msra.mxu0 %v4124
    %4146 = vmatprep.subr.bf16.mxu0 0
    %4147 = vmatpush1.bf16.msra.mxu0 %v4125
    %4148 = vmatprep.subr.bf16.mxu0 0
    %4149 = vmatpush1.bf16.msra.mxu0 %v4126
    %4150 = vmatprep.subr.bf16.mxu0 0
    %4151 = vmatpush1.bf16.msra.mxu0 %v4127
    %4152 = vmatprep.subr.bf16.mxu0 0
    %4153 = vmatpush1.bf16.msra.mxu0 0
    %4154 = vmatprep.subr.bf16.mxu0 0
    %4155 = vmatpush1.bf16.msra.mxu0 0
    %4156 = vmatprep.subr.bf16.mxu0 0
    %4157 = vmatpush1.bf16.msra.mxu0 0
    %4158 = vmatprep.subr.bf16.mxu0 0
    %4159 = vmatpush1.bf16.msra.mxu0 0
    %4160 = vmatprep.subr.bf16.mxu0 0
    %4161 = vmatpush1.bf16.msra.mxu0 0
    %4162 = vmatprep.subr.bf16.mxu0 0
    %4163 = vmatpush1.bf16.msra.mxu0 0
    %4164 = vmatprep.subr.bf16.mxu0 0
    %4165 = vmatpush1.bf16.msra.mxu0 0
    %4166 = vmatprep.subr.bf16.mxu0 0
    %4167 = vmatpush1.bf16.msra.mxu0 0
    %4168 = vmatprep.mubr.bf16.mxu0 0
    %4169 = vmatmul.mubr.bf16.gmra.mrb[0].mxu0 %v4070
    %v4170 = vpop.f32.mrb[0].mxu0
    %v4171 = vadd.f32 0.0, %v4170
    %v4172 = vpop.f32.mrb[0].mxu0
    %v4173 = vpop.f32.mrb[0].mxu0
    %v4174 = vpop.f32.mrb[0].mxu0
    %4175 = vdwg.mxu0
    %v4176 = vadd.f32 %v4055, %v4171
    %s4177 = sld [smem:[#allocation2 + $0x3]]
    %v4178 = vstv %s4177
    %v4179 = vmul.f32 %v3810, %v4178
    %s4180 = sld [smem:[#allocation5 + $0x3]]
    %v4181 = vstv %s4180
    %v4182 = vadd.f32 %v4179, %v4181
    %v4183 = vmul.f32 %v4182, 0.5
    %v4184 = vtanh.pop %v4183
    %v4185 = vmul.f32 %v4184, 0.5
    %v4186 = vadd.f32 %v4185, 0.5
    %v4187 = vpack.c.bf16 %v4186, %v4186
    %s4188 = scalar_lea.vmem %s5, 192
    %v4189 = vld [vmem:[%s4188] sm:$0xf]
    %v4190 = vld [vmem:[%s4188 + $0x4] sm:$0xf]
    %v4191 = vld [vmem:[%s4188 + $0x8] sm:$0xf]
    %v4192 = vld [vmem:[%s4188 + $0xc] sm:$0xf]
    %v4193 = vld [vmem:[%s4188 + $0x10] sm:$0xf]
    %v4194 = vld [vmem:[%s4188 + $0x14] sm:$0xf]
    %v4195 = vld [vmem:[%s4188 + $0x18] sm:$0xf]
    %v4196 = vld [vmem:[%s4188 + $0x1c] sm:$0xf]
    %v4197 = vld [vmem:[%s4188 + $0x20] sm:$0xf]
    %v4198 = vld [vmem:[%s4188 + $0x24] sm:$0xf]
    %v4199 = vld [vmem:[%s4188 + $0x28] sm:$0xf]
    %v4200 = vld [vmem:[%s4188 + $0x2c] sm:$0xf]
    %v4201 = vld [vmem:[%s4188 + $0x30] sm:$0xf]
    %v4202 = vld [vmem:[%s4188 + $0x34] sm:$0xf]
    %v4203 = vld [vmem:[%s4188 + $0x38] sm:$0xf]
    %v4204 = vld [vmem:[%s4188 + $0x3c] sm:$0xf]
    %v4221 = vunpack.c.l.b16 %v4189
    %v4222 = vunpack.c.l.b16 %v4190
    %v4223 = vunpack.c.l.b16 %v4191
    %v4224 = vunpack.c.l.b16 %v4192
    %v4225 = vunpack.c.l.b16 %v4193
    %v4226 = vunpack.c.l.b16 %v4194
    %v4227 = vunpack.c.l.b16 %v4195
    %v4228 = vunpack.c.l.b16 %v4196
    %v4229 = vunpack.c.l.b16 %v4197
    %v4230 = vunpack.c.l.b16 %v4198
    %v4231 = vunpack.c.l.b16 %v4199
    %v4232 = vunpack.c.l.b16 %v4200
    %v4233 = vunpack.c.l.b16 %v4201
    %v4234 = vunpack.c.l.b16 %v4202
    %v4235 = vunpack.c.l.b16 %v4203
    %v4236 = vunpack.c.l.b16 %v4204
    %v4237 = vpack.c.b16 %v4222, %v4221
    %v4238 = vpack.c.b16 %v4224, %v4223
    %v4239 = vpack.c.b16 %v4226, %v4225
    %v4240 = vpack.c.b16 %v4228, %v4227
    %v4241 = vpack.c.b16 %v4230, %v4229
    %v4242 = vpack.c.b16 %v4232, %v4231
    %v4243 = vpack.c.b16 %v4234, %v4233
    %v4244 = vpack.c.b16 %v4236, %v4235
    %4253 = vmatprep.subr.bf16.mxu0 0
    %4254 = vmatpush1.bf16.msra.mxu0 %v4237
    %4255 = vmatprep.subr.bf16.mxu0 0
    %4256 = vmatpush1.bf16.msra.mxu0 %v4238
    %4257 = vmatprep.subr.bf16.mxu0 0
    %4258 = vmatpush1.bf16.msra.mxu0 %v4239
    %4259 = vmatprep.subr.bf16.mxu0 0
    %4260 = vmatpush1.bf16.msra.mxu0 %v4240
    %4261 = vmatprep.subr.bf16.mxu0 0
    %4262 = vmatpush1.bf16.msra.mxu0 %v4241
    %4263 = vmatprep.subr.bf16.mxu0 0
    %4264 = vmatpush1.bf16.msra.mxu0 %v4242
    %4265 = vmatprep.subr.bf16.mxu0 0
    %4266 = vmatpush1.bf16.msra.mxu0 %v4243
    %4267 = vmatprep.subr.bf16.mxu0 0
    %4268 = vmatpush1.bf16.msra.mxu0 %v4244
    %4269 = vmatprep.subr.bf16.mxu0 0
    %4270 = vmatpush1.bf16.msra.mxu0 0
    %4271 = vmatprep.subr.bf16.mxu0 0
    %4272 = vmatpush1.bf16.msra.mxu0 0
    %4273 = vmatprep.subr.bf16.mxu0 0
    %4274 = vmatpush1.bf16.msra.mxu0 0
    %4275 = vmatprep.subr.bf16.mxu0 0
    %4276 = vmatpush1.bf16.msra.mxu0 0
    %4277 = vmatprep.subr.bf16.mxu0 0
    %4278 = vmatpush1.bf16.msra.mxu0 0
    %4279 = vmatprep.subr.bf16.mxu0 0
    %4280 = vmatpush1.bf16.msra.mxu0 0
    %4281 = vmatprep.subr.bf16.mxu0 0
    %4282 = vmatpush1.bf16.msra.mxu0 0
    %4283 = vmatprep.subr.bf16.mxu0 0
    %4284 = vmatpush1.bf16.msra.mxu0 0
    %4285 = vmatprep.mubr.bf16.mxu0 0
    %4286 = vmatmul.mubr.bf16.gmra.mrb[0].mxu0 %v4187
    %v4287 = vpop.f32.mrb[0].mxu0
    %v4288 = vadd.f32 0.0, %v4287
    %v4289 = vpop.f32.mrb[0].mxu0
    %v4290 = vpop.f32.mrb[0].mxu0
    %v4291 = vpop.f32.mrb[0].mxu0
    %4292 = vdwg.mxu0
    %v4293 = vadd.f32 %v4176, %v4288
    %s4294 = sld [smem:[#allocation2 + $0x4]]
    %v4295 = vstv %s4294
    %v4296 = vmul.f32 %v3815, %v4295
    %s4297 = sld [smem:[#allocation5 + $0x4]]
    %v4298 = vstv %s4297
    %v4299 = vadd.f32 %v4296, %v4298
    %v4300 = vmul.f32 %v4299, 0.5
    %v4301 = vtanh.pop %v4300
    %v4302 = vmul.f32 %v4301, 0.5
    %v4303 = vadd.f32 %v4302, 0.5
    %v4304 = vpack.c.bf16 %v4303, %v4303
    %s4305 = scalar_lea.vmem %s5, 256
    %v4306 = vld [vmem:[%s4305] sm:$0xf]
    %v4307 = vld [vmem:[%s4305 + $0x4] sm:$0xf]
    %v4308 = vld [vmem:[%s4305 + $0x8] sm:$0xf]
    %v4309 = vld [vmem:[%s4305 + $0xc] sm:$0xf]
    %v4310 = vld [vmem:[%s4305 + $0x10] sm:$0xf]
    %v4311 = vld [vmem:[%s4305 + $0x14] sm:$0xf]
    %v4312 = vld [vmem:[%s4305 + $0x18] sm:$0xf]
    %v4313 = vld [vmem:[%s4305 + $0x1c] sm:$0xf]
    %v4314 = vld [vmem:[%s4305 + $0x20] sm:$0xf]
    %v4315 = vld [vmem:[%s4305 + $0x24] sm:$0xf]
    %v4316 = vld [vmem:[%s4305 + $0x28] sm:$0xf]
    %v4317 = vld [vmem:[%s4305 + $0x2c] sm:$0xf]
    %v4318 = vld [vmem:[%s4305 + $0x30] sm:$0xf]
    %v4319 = vld [vmem:[%s4305 + $0x34] sm:$0xf]
    %v4320 = vld [vmem:[%s4305 + $0x38] sm:$0xf]
    %v4321 = vld [vmem:[%s4305 + $0x3c] sm:$0xf]
    %v4338 = vunpack.c.l.b16 %v4306
    %v4339 = vunpack.c.l.b16 %v4307
    %v4340 = vunpack.c.l.b16 %v4308
    %v4341 = vunpack.c.l.b16 %v4309
    %v4342 = vunpack.c.l.b16 %v4310
    %v4343 = vunpack.c.l.b16 %v4311
    %v4344 = vunpack.c.l.b16 %v4312
    %v4345 = vunpack.c.l.b16 %v4313
    %v4346 = vunpack.c.l.b16 %v4314
    %v4347 = vunpack.c.l.b16 %v4315
    %v4348 = vunpack.c.l.b16 %v4316
    %v4349 = vunpack.c.l.b16 %v4317
    %v4350 = vunpack.c.l.b16 %v4318
    %v4351 = vunpack.c.l.b16 %v4319
    %v4352 = vunpack.c.l.b16 %v4320
    %v4353 = vunpack.c.l.b16 %v4321
    %v4354 = vpack.c.b16 %v4339, %v4338
    %v4355 = vpack.c.b16 %v4341, %v4340
    %v4356 = vpack.c.b16 %v4343, %v4342
    %v4357 = vpack.c.b16 %v4345, %v4344
    %v4358 = vpack.c.b16 %v4347, %v4346
    %v4359 = vpack.c.b16 %v4349, %v4348
    %v4360 = vpack.c.b16 %v4351, %v4350
    %v4361 = vpack.c.b16 %v4353, %v4352
    %4370 = vmatprep.subr.bf16.mxu0 0
    %4371 = vmatpush1.bf16.msra.mxu0 %v4354
    %4372 = vmatprep.subr.bf16.mxu0 0
    %4373 = vmatpush1.bf16.msra.mxu0 %v4355
    %4374 = vmatprep.subr.bf16.mxu0 0
    %4375 = vmatpush1.bf16.msra.mxu0 %v4356
    %4376 = vmatprep.subr.bf16.mxu0 0
    %4377 = vmatpush1.bf16.msra.mxu0 %v4357
    %4378 = vmatprep.subr.bf16.mxu0 0
    %4379 = vmatpush1.bf16.msra.mxu0 %v4358
    %4380 = vmatprep.subr.bf16.mxu0 0
    %4381 = vmatpush1.bf16.msra.mxu0 %v4359
    %4382 = vmatprep.subr.bf16.mxu0 0
    %4383 = vmatpush1.bf16.msra.mxu0 %v4360
    %4384 = vmatprep.subr.bf16.mxu0 0
    %4385 = vmatpush1.bf16.msra.mxu0 %v4361
    %4386 = vmatprep.subr.bf16.mxu0 0
    %4387 = vmatpush1.bf16.msra.mxu0 0
    %4388 = vmatprep.subr.bf16.mxu0 0
    %4389 = vmatpush1.bf16.msra.mxu0 0
    %4390 = vmatprep.subr.bf16.mxu0 0
    %4391 = vmatpush1.bf16.msra.mxu0 0
    %4392 = vmatprep.subr.bf16.mxu0 0
    %4393 = vmatpush1.bf16.msra.mxu0 0
    %4394 = vmatprep.subr.bf16.mxu0 0
    %4395 = vmatpush1.bf16.msra.mxu0 0
    %4396 = vmatprep.subr.bf16.mxu0 0
    %4397 = vmatpush1.bf16.msra.mxu0 0
    %4398 = vmatprep.subr.bf16.mxu0 0
    %4399 = vmatpush1.bf16.msra.mxu0 0
    %4400 = vmatprep.subr.bf16.mxu0 0
    %4401 = vmatpush1.bf16.msra.mxu0 0
    %4402 = vmatprep.mubr.bf16.mxu0 0
    %4403 = vmatmul.mubr.bf16.gmra.mrb[0].mxu0 %v4304
    %v4404 = vpop.f32.mrb[0].mxu0
    %v4405 = vadd.f32 0.0, %v4404
    %v4406 = vpop.f32.mrb[0].mxu0
    %v4407 = vpop.f32.mrb[0].mxu0
    %v4408 = vpop.f32.mrb[0].mxu0
    %4409 = vdwg.mxu0
    %v4410 = vadd.f32 %v4293, %v4405
    %s4411 = sld [smem:[#allocation2 + $0x5]]
    %v4412 = vstv %s4411
    %v4413 = vmul.f32 %v3818, %v4412
    %s4414 = sld [smem:[#allocation5 + $0x5]]
    %v4415 = vstv %s4414
    %v4416 = vadd.f32 %v4413, %v4415
    %v4417 = vmul.f32 %v4416, 0.5
    %v4418 = vtanh.pop %v4417
    %v4419 = vmul.f32 %v4418, 0.5
    %v4420 = vadd.f32 %v4419, 0.5
    %v4421 = vpack.c.bf16 %v4420, %v4420
    %s4422 = scalar_lea.vmem %s5, 320
    %v4423 = vld [vmem:[%s4422] sm:$0xf]
    %v4424 = vld [vmem:[%s4422 + $0x4] sm:$0xf]
    %v4425 = vld [vmem:[%s4422 + $0x8] sm:$0xf]
    %v4426 = vld [vmem:[%s4422 + $0xc] sm:$0xf]
    %v4427 = vld [vmem:[%s4422 + $0x10] sm:$0xf]
    %v4428 = vld [vmem:[%s4422 + $0x14] sm:$0xf]
    %v4429 = vld [vmem:[%s4422 + $0x18] sm:$0xf]
    %v4430 = vld [vmem:[%s4422 + $0x1c] sm:$0xf]
    %v4431 = vld [vmem:[%s4422 + $0x20] sm:$0xf]
    %v4432 = vld [vmem:[%s4422 + $0x24] sm:$0xf]
    %v4433 = vld [vmem:[%s4422 + $0x28] sm:$0xf]
    %v4434 = vld [vmem:[%s4422 + $0x2c] sm:$0xf]
    %v4435 = vld [vmem:[%s4422 + $0x30] sm:$0xf]
    %v4436 = vld [vmem:[%s4422 + $0x34] sm:$0xf]
    %v4437 = vld [vmem:[%s4422 + $0x38] sm:$0xf]
    %v4438 = vld [vmem:[%s4422 + $0x3c] sm:$0xf]
    %v4455 = vunpack.c.l.b16 %v4423
    %v4456 = vunpack.c.l.b16 %v4424
    %v4457 = vunpack.c.l.b16 %v4425
    %v4458 = vunpack.c.l.b16 %v4426
    %v4459 = vunpack.c.l.b16 %v4427
    %v4460 = vunpack.c.l.b16 %v4428
    %v4461 = vunpack.c.l.b16 %v4429
    %v4462 = vunpack.c.l.b16 %v4430
    %v4463 = vunpack.c.l.b16 %v4431
    %v4464 = vunpack.c.l.b16 %v4432
    %v4465 = vunpack.c.l.b16 %v4433
    %v4466 = vunpack.c.l.b16 %v4434
    %v4467 = vunpack.c.l.b16 %v4435
    %v4468 = vunpack.c.l.b16 %v4436
    %v4469 = vunpack.c.l.b16 %v4437
    %v4470 = vunpack.c.l.b16 %v4438
    %v4471 = vpack.c.b16 %v4456, %v4455
    %v4472 = vpack.c.b16 %v4458, %v4457
    %v4473 = vpack.c.b16 %v4460, %v4459
    %v4474 = vpack.c.b16 %v4462, %v4461
    %v4475 = vpack.c.b16 %v4464, %v4463
    %v4476 = vpack.c.b16 %v4466, %v4465
    %v4477 = vpack.c.b16 %v4468, %v4467
    %v4478 = vpack.c.b16 %v4470, %v4469
    %4487 = vmatprep.subr.bf16.mxu0 0
    %4488 = vmatpush1.bf16.msra.mxu0 %v4471
    %4489 = vmatprep.subr.bf16.mxu0 0
    %4490 = vmatpush1.bf16.msra.mxu0 %v4472
    %4491 = vmatprep.subr.bf16.mxu0 0
    %4492 = vmatpush1.bf16.msra.mxu0 %v4473
    %4493 = vmatprep.subr.bf16.mxu0 0
    %4494 = vmatpush1.bf16.msra.mxu0 %v4474
    %4495 = vmatprep.subr.bf16.mxu0 0
    %4496 = vmatpush1.bf16.msra.mxu0 %v4475
    %4497 = vmatprep.subr.bf16.mxu0 0
    %4498 = vmatpush1.bf16.msra.mxu0 %v4476
    %4499 = vmatprep.subr.bf16.mxu0 0
    %4500 = vmatpush1.bf16.msra.mxu0 %v4477
    %4501 = vmatprep.subr.bf16.mxu0 0
    %4502 = vmatpush1.bf16.msra.mxu0 %v4478
    %4503 = vmatprep.subr.bf16.mxu0 0
    %4504 = vmatpush1.bf16.msra.mxu0 0
    %4505 = vmatprep.subr.bf16.mxu0 0
    %4506 = vmatpush1.bf16.msra.mxu0 0
    %4507 = vmatprep.subr.bf16.mxu0 0
    %4508 = vmatpush1.bf16.msra.mxu0 0
    %4509 = vmatprep.subr.bf16.mxu0 0
    %4510 = vmatpush1.bf16.msra.mxu0 0
    %4511 = vmatprep.subr.bf16.mxu0 0
    %4512 = vmatpush1.bf16.msra.mxu0 0
    %4513 = vmatprep.subr.bf16.mxu0 0
    %4514 = vmatpush1.bf16.msra.mxu0 0
    %4515 = vmatprep.subr.bf16.mxu0 0
    %4516 = vmatpush1.bf16.msra.mxu0 0
    %4517 = vmatprep.subr.bf16.mxu0 0
    %4518 = vmatpush1.bf16.msra.mxu0 0
    %4519 = vmatprep.mubr.bf16.mxu0 0
    %4520 = vmatmul.mubr.bf16.gmra.mrb[0].mxu0 %v4421
    %v4521 = vpop.f32.mrb[0].mxu0
    %v4522 = vadd.f32 0.0, %v4521
    %v4523 = vpop.f32.mrb[0].mxu0
    %v4524 = vpop.f32.mrb[0].mxu0
    %v4525 = vpop.f32.mrb[0].mxu0
    %4526 = vdwg.mxu0
    %v4527 = vadd.f32 %v4410, %v4522
    %s4528 = sld [smem:[#allocation2 + $0x6]]
    %v4529 = vstv %s4528
    %v4530 = vmul.f32 %v3823, %v4529
    %s4531 = sld [smem:[#allocation5 + $0x6]]
    %v4532 = vstv %s4531
    %v4533 = vadd.f32 %v4530, %v4532
    %v4534 = vmul.f32 %v4533, 0.5
    %v4535 = vtanh.pop %v4534
    %v4536 = vmul.f32 %v4535, 0.5
    %v4537 = vadd.f32 %v4536, 0.5
    %v4538 = vpack.c.bf16 %v4537, %v4537
    %s4539 = scalar_lea.vmem %s5, 384
    %v4540 = vld [vmem:[%s4539] sm:$0xf]
    %v4541 = vld [vmem:[%s4539 + $0x4] sm:$0xf]
    %v4542 = vld [vmem:[%s4539 + $0x8] sm:$0xf]
    %v4543 = vld [vmem:[%s4539 + $0xc] sm:$0xf]
    %v4544 = vld [vmem:[%s4539 + $0x10] sm:$0xf]
    %v4545 = vld [vmem:[%s4539 + $0x14] sm:$0xf]
    %v4546 = vld [vmem:[%s4539 + $0x18] sm:$0xf]
    %v4547 = vld [vmem:[%s4539 + $0x1c] sm:$0xf]
    %v4548 = vld [vmem:[%s4539 + $0x20] sm:$0xf]
    %v4549 = vld [vmem:[%s4539 + $0x24] sm:$0xf]
    %v4550 = vld [vmem:[%s4539 + $0x28] sm:$0xf]
    %v4551 = vld [vmem:[%s4539 + $0x2c] sm:$0xf]
    %v4552 = vld [vmem:[%s4539 + $0x30] sm:$0xf]
    %v4553 = vld [vmem:[%s4539 + $0x34] sm:$0xf]
    %v4554 = vld [vmem:[%s4539 + $0x38] sm:$0xf]
    %v4555 = vld [vmem:[%s4539 + $0x3c] sm:$0xf]
    %v4572 = vunpack.c.l.b16 %v4540
    %v4573 = vunpack.c.l.b16 %v4541
    %v4574 = vunpack.c.l.b16 %v4542
    %v4575 = vunpack.c.l.b16 %v4543
    %v4576 = vunpack.c.l.b16 %v4544
    %v4577 = vunpack.c.l.b16 %v4545
    %v4578 = vunpack.c.l.b16 %v4546
    %v4579 = vunpack.c.l.b16 %v4547
    %v4580 = vunpack.c.l.b16 %v4548
    %v4581 = vunpack.c.l.b16 %v4549
    %v4582 = vunpack.c.l.b16 %v4550
    %v4583 = vunpack.c.l.b16 %v4551
    %v4584 = vunpack.c.l.b16 %v4552
    %v4585 = vunpack.c.l.b16 %v4553
    %v4586 = vunpack.c.l.b16 %v4554
    %v4587 = vunpack.c.l.b16 %v4555
    %v4588 = vpack.c.b16 %v4573, %v4572
    %v4589 = vpack.c.b16 %v4575, %v4574
    %v4590 = vpack.c.b16 %v4577, %v4576
    %v4591 = vpack.c.b16 %v4579, %v4578
    %v4592 = vpack.c.b16 %v4581, %v4580
    %v4593 = vpack.c.b16 %v4583, %v4582
    %v4594 = vpack.c.b16 %v4585, %v4584
    %v4595 = vpack.c.b16 %v4587, %v4586
    %4604 = vmatprep.subr.bf16.mxu0 0
    %4605 = vmatpush1.bf16.msra.mxu0 %v4588
    %4606 = vmatprep.subr.bf16.mxu0 0
    %4607 = vmatpush1.bf16.msra.mxu0 %v4589
    %4608 = vmatprep.subr.bf16.mxu0 0
    %4609 = vmatpush1.bf16.msra.mxu0 %v4590
    %4610 = vmatprep.subr.bf16.mxu0 0
    %4611 = vmatpush1.bf16.msra.mxu0 %v4591
    %4612 = vmatprep.subr.bf16.mxu0 0
    %4613 = vmatpush1.bf16.msra.mxu0 %v4592
    %4614 = vmatprep.subr.bf16.mxu0 0
    %4615 = vmatpush1.bf16.msra.mxu0 %v4593
    %4616 = vmatprep.subr.bf16.mxu0 0
    %4617 = vmatpush1.bf16.msra.mxu0 %v4594
    %4618 = vmatprep.subr.bf16.mxu0 0
    %4619 = vmatpush1.bf16.msra.mxu0 %v4595
    %4620 = vmatprep.subr.bf16.mxu0 0
    %4621 = vmatpush1.bf16.msra.mxu0 0
    %4622 = vmatprep.subr.bf16.mxu0 0
    %4623 = vmatpush1.bf16.msra.mxu0 0
    %4624 = vmatprep.subr.bf16.mxu0 0
    %4625 = vmatpush1.bf16.msra.mxu0 0
    %4626 = vmatprep.subr.bf16.mxu0 0
    %4627 = vmatpush1.bf16.msra.mxu0 0
    %4628 = vmatprep.subr.bf16.mxu0 0
    %4629 = vmatpush1.bf16.msra.mxu0 0
    %4630 = vmatprep.subr.bf16.mxu0 0
    %4631 = vmatpush1.bf16.msra.mxu0 0
    %4632 = vmatprep.subr.bf16.mxu0 0
    %4633 = vmatpush1.bf16.msra.mxu0 0
    %4634 = vmatprep.subr.bf16.mxu0 0
    %4635 = vmatpush1.bf16.msra.mxu0 0
    %4636 = vmatprep.mubr.bf16.mxu0 0
    %4637 = vmatmul.mubr.bf16.gmra.mrb[0].mxu0 %v4538
    %v4638 = vpop.f32.mrb[0].mxu0
    %v4639 = vadd.f32 0.0, %v4638
    %v4640 = vpop.f32.mrb[0].mxu0
    %v4641 = vpop.f32.mrb[0].mxu0
    %v4642 = vpop.f32.mrb[0].mxu0
    %4643 = vdwg.mxu0
    %v4644 = vadd.f32 %v4527, %v4639
    %s4645 = sld [smem:[#allocation2 + $0x7]]
    %v4646 = vstv %s4645
    %v4647 = vmul.f32 %v3826, %v4646
    %s4648 = sld [smem:[#allocation5 + $0x7]]
    %v4649 = vstv %s4648
    %v4650 = vadd.f32 %v4647, %v4649
    %v4651 = vmul.f32 %v4650, 0.5
    %v4652 = vtanh.pop %v4651
    %v4653 = vmul.f32 %v4652, 0.5
    %v4654 = vadd.f32 %v4653, 0.5
    %v4655 = vpack.c.bf16 %v4654, %v4654
    %s4656 = scalar_lea.vmem %s5, 448
    %v4657 = vld [vmem:[%s4656] sm:$0xf]
    %v4658 = vld [vmem:[%s4656 + $0x4] sm:$0xf]
    %v4659 = vld [vmem:[%s4656 + $0x8] sm:$0xf]
    %v4660 = vld [vmem:[%s4656 + $0xc] sm:$0xf]
    %v4661 = vld [vmem:[%s4656 + $0x10] sm:$0xf]
    %v4662 = vld [vmem:[%s4656 + $0x14] sm:$0xf]
    %v4663 = vld [vmem:[%s4656 + $0x18] sm:$0xf]
    %v4664 = vld [vmem:[%s4656 + $0x1c] sm:$0xf]
    %v4665 = vld [vmem:[%s4656 + $0x20] sm:$0xf]
    %v4666 = vld [vmem:[%s4656 + $0x24] sm:$0xf]
    %v4667 = vld [vmem:[%s4656 + $0x28] sm:$0xf]
    %v4668 = vld [vmem:[%s4656 + $0x2c] sm:$0xf]
    %v4669 = vld [vmem:[%s4656 + $0x30] sm:$0xf]
    %v4670 = vld [vmem:[%s4656 + $0x34] sm:$0xf]
    %v4671 = vld [vmem:[%s4656 + $0x38] sm:$0xf]
    %v4672 = vld [vmem:[%s4656 + $0x3c] sm:$0xf]
    %v4689 = vunpack.c.l.b16 %v4657
    %v4690 = vunpack.c.l.b16 %v4658
    %v4691 = vunpack.c.l.b16 %v4659
    %v4692 = vunpack.c.l.b16 %v4660
    %v4693 = vunpack.c.l.b16 %v4661
    %v4694 = vunpack.c.l.b16 %v4662
    %v4695 = vunpack.c.l.b16 %v4663
    %v4696 = vunpack.c.l.b16 %v4664
    %v4697 = vunpack.c.l.b16 %v4665
    %v4698 = vunpack.c.l.b16 %v4666
    %v4699 = vunpack.c.l.b16 %v4667
    %v4700 = vunpack.c.l.b16 %v4668
    %v4701 = vunpack.c.l.b16 %v4669
    %v4702 = vunpack.c.l.b16 %v4670
    %v4703 = vunpack.c.l.b16 %v4671
    %v4704 = vunpack.c.l.b16 %v4672
    %v4705 = vpack.c.b16 %v4690, %v4689
    %v4706 = vpack.c.b16 %v4692, %v4691
    %v4707 = vpack.c.b16 %v4694, %v4693
    %v4708 = vpack.c.b16 %v4696, %v4695
    %v4709 = vpack.c.b16 %v4698, %v4697
    %v4710 = vpack.c.b16 %v4700, %v4699
    %v4711 = vpack.c.b16 %v4702, %v4701
    %v4712 = vpack.c.b16 %v4704, %v4703
    %4721 = vmatprep.subr.bf16.mxu0 0
    %4722 = vmatpush1.bf16.msra.mxu0 %v4705
    %4723 = vmatprep.subr.bf16.mxu0 0
    %4724 = vmatpush1.bf16.msra.mxu0 %v4706
    %4725 = vmatprep.subr.bf16.mxu0 0
    %4726 = vmatpush1.bf16.msra.mxu0 %v4707
    %4727 = vmatprep.subr.bf16.mxu0 0
    %4728 = vmatpush1.bf16.msra.mxu0 %v4708
    %4729 = vmatprep.subr.bf16.mxu0 0
    %4730 = vmatpush1.bf16.msra.mxu0 %v4709
    %4731 = vmatprep.subr.bf16.mxu0 0
    %4732 = vmatpush1.bf16.msra.mxu0 %v4710
    %4733 = vmatprep.subr.bf16.mxu0 0
    %4734 = vmatpush1.bf16.msra.mxu0 %v4711
    %4735 = vmatprep.subr.bf16.mxu0 0
    %4736 = vmatpush1.bf16.msra.mxu0 %v4712
    %4737 = vmatprep.subr.bf16.mxu0 0
    %4738 = vmatpush1.bf16.msra.mxu0 0
    %4739 = vmatprep.subr.bf16.mxu0 0
    %4740 = vmatpush1.bf16.msra.mxu0 0
    %4741 = vmatprep.subr.bf16.mxu0 0
    %4742 = vmatpush1.bf16.msra.mxu0 0
    %4743 = vmatprep.subr.bf16.mxu0 0
    %4744 = vmatpush1.bf16.msra.mxu0 0
    %4745 = vmatprep.subr.bf16.mxu0 0
    %4746 = vmatpush1.bf16.msra.mxu0 0
    %4747 = vmatprep.subr.bf16.mxu0 0
    %4748 = vmatpush1.bf16.msra.mxu0 0
    %4749 = vmatprep.subr.bf16.mxu0 0
    %4750 = vmatpush1.bf16.msra.mxu0 0
    %4751 = vmatprep.subr.bf16.mxu0 0
    %4752 = vmatpush1.bf16.msra.mxu0 0
    %4753 = vmatprep.mubr.bf16.mxu0 0
    %4754 = vmatmul.mubr.bf16.gmra.mrb[0].mxu0 %v4655
    %v4755 = vpop.f32.mrb[0].mxu0
    %v4756 = vadd.f32 0.0, %v4755
    %v4757 = vpop.f32.mrb[0].mxu0
    %v4758 = vpop.f32.mrb[0].mxu0
    %v4759 = vpop.f32.mrb[0].mxu0
    %4760 = vdwg.mxu0
    %v4761 = vadd.f32 %v4644, %v4756
    %v4762 = vld [vmem:[%s6] sm:$0x1]
    %v4764 = vlaneseq
    %v4765 = vshrl.u32 %v4764, 7
    %v4766 = vsub.s32 0, %v4765
    %v4767 = vrot.slane %v4762, %v4766
    %v4769 = vadd.f32 %v4761, %v4767
    %v4770 = vmax.f32 %v4769, 0.0
    %v4771 = vpack.c.bf16 %v4770, %v4770
    %v4772 = vld [vmem:[#allocation10] sm:$0xf]
    %v4773 = vld [vmem:[#allocation10 + $0x4] sm:$0xf]
    %v4774 = vld [vmem:[#allocation10 + $0x8] sm:$0xf]
    %v4775 = vld [vmem:[#allocation10 + $0xc] sm:$0xf]
    %v4776 = vld [vmem:[#allocation10 + $0x10] sm:$0xf]
    %v4777 = vld [vmem:[#allocation10 + $0x14] sm:$0xf]
    %v4778 = vld [vmem:[#allocation10 + $0x18] sm:$0xf]
    %v4779 = vld [vmem:[#allocation10 + $0x1c] sm:$0xf]
    %v4780 = vld [vmem:[#allocation10 + $0x20] sm:$0xf]
    %v4781 = vld [vmem:[#allocation10 + $0x24] sm:$0xf]
    %v4782 = vld [vmem:[#allocation10 + $0x28] sm:$0xf]
    %v4783 = vld [vmem:[#allocation10 + $0x2c] sm:$0xf]
    %v4784 = vld [vmem:[#allocation10 + $0x30] sm:$0xf]
    %v4785 = vld [vmem:[#allocation10 + $0x34] sm:$0xf]
    %v4786 = vld [vmem:[#allocation10 + $0x38] sm:$0xf]
    %v4787 = vld [vmem:[#allocation10 + $0x3c] sm:$0xf]
    %v4788 = vld [vmem:[%s8] sm:$0x1]
    %v4790 = vlaneseq
    %v4791 = vshrl.u32 %v4790, 7
    %v4792 = vsub.s32 0, %v4791
    %v4793 = vrot.slane %v4788, %v4792
    %v4811 = vunpack.c.l.b16 %v4772
    %v4812 = vunpack.c.l.b16 %v4773
    %v4813 = vunpack.c.l.b16 %v4774
    %v4814 = vunpack.c.l.b16 %v4775
    %v4815 = vunpack.c.l.b16 %v4776
    %v4816 = vunpack.c.l.b16 %v4777
    %v4817 = vunpack.c.l.b16 %v4778
    %v4818 = vunpack.c.l.b16 %v4779
    %v4819 = vunpack.c.l.b16 %v4780
    %v4820 = vunpack.c.l.b16 %v4781
    %v4821 = vunpack.c.l.b16 %v4782
    %v4822 = vunpack.c.l.b16 %v4783
    %v4823 = vunpack.c.l.b16 %v4784
    %v4824 = vunpack.c.l.b16 %v4785
    %v4825 = vunpack.c.l.b16 %v4786
    %v4826 = vunpack.c.l.b16 %v4787
    %v4827 = vpack.c.b16 %v4812, %v4811
    %v4828 = vpack.c.b16 %v4814, %v4813
    %v4829 = vpack.c.b16 %v4816, %v4815
    %v4830 = vpack.c.b16 %v4818, %v4817
    %v4831 = vpack.c.b16 %v4820, %v4819
    %v4832 = vpack.c.b16 %v4822, %v4821
    %v4833 = vpack.c.b16 %v4824, %v4823
    %v4834 = vpack.c.b16 %v4826, %v4825
    %4843 = vmatprep.subr.bf16.mxu0 0
    %4844 = vmatpush1.bf16.msra.mxu0 %v4827
    %4845 = vmatprep.subr.bf16.mxu0 0
    %4846 = vmatpush1.bf16.msra.mxu0 %v4828
    %4847 = vmatprep.subr.bf16.mxu0 0
    %4848 = vmatpush1.bf16.msra.mxu0 %v4829
    %4849 = vmatprep.subr.bf16.mxu0 0
    %4850 = vmatpush1.bf16.msra.mxu0 %v4830
    %4851 = vmatprep.subr.bf16.mxu0 0
    %4852 = vmatpush1.bf16.msra.mxu0 %v4831
    %4853 = vmatprep.subr.bf16.mxu0 0
    %4854 = vmatpush1.bf16.msra.mxu0 %v4832
    %4855 = vmatprep.subr.bf16.mxu0 0
    %4856 = vmatpush1.bf16.msra.mxu0 %v4833
    %4857 = vmatprep.subr.bf16.mxu0 0
    %4858 = vmatpush1.bf16.msra.mxu0 %v4834
    %4859 = vmatprep.subr.bf16.mxu0 0
    %4860 = vmatpush1.bf16.msra.mxu0 0
    %4861 = vmatprep.subr.bf16.mxu0 0
    %4862 = vmatpush1.bf16.msra.mxu0 0
    %4863 = vmatprep.subr.bf16.mxu0 0
    %4864 = vmatpush1.bf16.msra.mxu0 0
    %4865 = vmatprep.subr.bf16.mxu0 0
    %4866 = vmatpush1.bf16.msra.mxu0 0
    %4867 = vmatprep.subr.bf16.mxu0 0
    %4868 = vmatpush1.bf16.msra.mxu0 0
    %4869 = vmatprep.subr.bf16.mxu0 0
    %4870 = vmatpush1.bf16.msra.mxu0 0
    %4871 = vmatprep.subr.bf16.mxu0 0
    %4872 = vmatpush1.bf16.msra.mxu0 0
    %4873 = vmatprep.subr.bf16.mxu0 0
    %4874 = vmatpush1.bf16.msra.mxu0 0
    %4875 = vmatprep.mubr.bf16.mxu0 0
    %4876 = vmatmul.mubr.bf16.gmra.mrb[0].mxu0 %v4771
    %v4877 = vpop.f32.mrb[0].mxu0
    %v4878 = vadd.f32 %v4793, %v4877
    %v4879 = vpop.f32.mrb[0].mxu0
    %v4880 = vpop.f32.mrb[0].mxu0
    %v4881 = vpop.f32.mrb[0].mxu0
    %4882 = vdwg.mxu0
    %4883 = vst [vmem:[%s9] sm:$0xff] %v4878
    // Predicated region
    $region58: #{densevm_forward.1} parent=1 // pred_check
      _
    $region59: #{densevm_forward.1} parent=1 // pred_check_branch
      %4885 = sbr.rel (0) target = $region61
    $region60: #{densevm_forward.1} parent=1 // pred_region
      _
    $region61: #{densevm_forward.1} parent=1 // pred_fallthru
      _
    // Predicated region
    $region62: #{densevm_forward.1} parent=1 // pred_check
      _
    $region63: #{densevm_forward.1} parent=1 // pred_check_branch
      %4887 = sbr.rel (0) target = $region65
    $region64: #{densevm_forward.1} parent=1 // pred_region
      _
    $region65: #{densevm_forward.1} parent=1 // pred_fallthru
      _
    %4888 = vsyncpa [#allocation3], 1
    %4889 = vsyncpa [#allocation9], 1
    %4890 = vsyncpa [#allocation4], 1
    %4891 = vsyncpa [#allocation6], 1

</llo_original>
